<compile_context>
chip_gen: v5e
topology: v5e:2x2
jax: 0.10.0
libtpu: 0.0.40
codegen_flags: <defaults>
</compile_context>

<pallas_src>
import jax
import jax.numpy as jnp
from jax.experimental import pallas as pl
from jax.experimental.pallas import tpu as pltpu


def _se_gate_1x1conv_kernel(gate_ref, x_ref, w_ref, o_ref):
    # gate_ref: (Cin, 1)    f32
    # x_ref:    (Cin, HW)   f32   (native NCHW, flattened spatial)
    # w_ref:    (Cout, Cin) bf16  (persistent, prepared once at init)
    # o_ref:    (Cout, HW)  f32
    g = jax.nn.sigmoid(gate_ref[...])                      # (Cin, 1)  f32, EUP
    # Gate x in f32 (lane-broadcast of the per-channel gate) and round to
    # bf16 exactly once before feeding the MXU.
    xg = (x_ref[...] * g).astype(jnp.bfloat16)             # (Cin, HW) bf16
    o_ref[...] = jnp.dot(
        w_ref[...], xg, preferred_element_type=jnp.float32
    ).astype(o_ref.dtype)                                  # MXU, f32 accumulate


def prepare_weight(weight_oi11):
    """One-time init: Conv2d weight (Cout, Cin, 1, 1) f32 -> (Cout, Cin) bf16."""
    Cout, Cin, kh, kw = weight_oi11.shape
    assert (kh, kw) == (1, 1)
    return weight_oi11.reshape(Cout, Cin).astype(jnp.bfloat16)


@jax.jit
def se_gate_1x1conv(x316_gate, x312, w_bf16):
    """Equivalent of M.forward(x316, x312), with w_bf16 = prepare_weight(conv2d106.weight).

    x316_gate: (N, Cin, 1, 1) float32
    x312:      (N, Cin, H, W) float32
    w_bf16:    (Cout, Cin)    bfloat16  (persistent)
    returns:   (N, Cout, H, W) float32
    """
    N, Cin, H, W = x312.shape
    Cout = w_bf16.shape[0]
    assert N == 1 and x316_gate.shape == (N, Cin, 1, 1)
    assert w_bf16.shape == (Cout, Cin)

    HW = H * W
    # Native-layout flattening: pure reshapes, no transposes, no casts.
    x_flat = x312.reshape(Cin, HW)            # (Cin, HW) f32
    gate = x316_gate.reshape(Cin, 1)          # (Cin, 1)  f32

    out_flat = pl.pallas_call(
        _se_gate_1x1conv_kernel,
        out_shape=jax.ShapeDtypeStruct((Cout, HW), x312.dtype),
        grid=(1,),
        in_specs=[
            pl.BlockSpec((Cin, 1), lambda i: (0, 0)),      # gate (full array)
            pl.BlockSpec((Cin, HW), lambda i: (0, 0)),     # x    (full array)
            pl.BlockSpec((Cout, Cin), lambda i: (0, 0)),   # w    (full array)
        ],
        out_specs=pl.BlockSpec((Cout, HW), lambda i: (0, 0)),
        compiler_params=pltpu.CompilerParams(
            dimension_semantics=("arbitrary",),
        ),
        cost_estimate=pl.CostEstimate(
            flops=2 * Cout * Cin * HW,
            transcendentals=Cin,
            bytes_accessed=(Cin * HW * 4      # x   (f32 in)
                            + Cin * 4         # gate (f32 in)
                            + Cout * Cin * 2  # w   (bf16 in)
                            + Cout * HW * 4), # out (f32 out)
        ),
    )(gate, x_flat, w_bf16)

    # (Cout, HW) -> (N, Cout, H, W): pure reshape, no transpose.
    return out_flat.reshape(N, Cout, H, W)


if __name__ == "__main__":
    key = jax.random.PRNGKey(0)
    k1, k2, k3 = jax.random.split(key, 3)

    # Shapes from the module spec: (1, 960, 14, 14) -> (1, 160, 14, 14).
    N, Cin, H, W, Cout = 1, 960, 14, 14, 160
    x312 = jax.random.normal(k1, (N, Cin, H, W), dtype=jnp.float32)
    x316 = jax.random.normal(k2, (N, Cin, 1, 1), dtype=jnp.float32)
    # Deterministic synthetic conv weight (Conv2d(960, 160, 1, bias=False)).
    weight = (jax.random.normal(k3, (Cout, Cin, 1, 1), dtype=jnp.float32)
              * (1.0 / jnp.sqrt(Cin)))

    # One-time weight prep (hoisted out of the per-call path).
    w_bf16 = prepare_weight(weight)

    out = se_gate_1x1conv(x316, x312, w_bf16)
    out = jax.block_until_ready(out)

    # Pure-JAX f32 reference (bf16 MXU operands -> looser tolerance).
    gated = x312 * jax.nn.sigmoid(x316)
    ref = jnp.einsum("nchw,oc->nohw", gated, weight.reshape(Cout, Cin))
    assert out.shape == (N, Cout, H, W)
    assert jnp.allclose(out, ref, atol=3e-2, rtol=3e-2)

    print("KERNEL_OK")
</pallas_src>

<mosaic_0001>
module attributes {stable_mosaic.version = 11 : i64} {
  func.func @_se_gate_1x1conv_kernel(%arg0: i32, %arg1: memref<960x1xf32, #tpu.memory_space<vmem>>, %arg2: memref<960x196xf32, #tpu.memory_space<vmem>>, %arg3: memref<160x960xbf16, #tpu.memory_space<vmem>>, %arg4: memref<160x196xf32, #tpu.memory_space<vmem>>) attributes {dimension_semantics = [#tpu.dimension_semantics<arbitrary>], iteration_bounds = array<i64: 1>, scalar_prefetch = 0 : i64, scratch_operands = 0 : i64, tpu.core_type = #tpu.core_type<tc>, window_params = [{pipeline_mode = #tpu.pipeline_mode<synchronous>, transform_indices = @transform_0, window_bounds = array<i64: 960, 1>}, {pipeline_mode = #tpu.pipeline_mode<synchronous>, transform_indices = @transform_1, window_bounds = array<i64: 960, 196>}, {pipeline_mode = #tpu.pipeline_mode<synchronous>, transform_indices = @transform_2, window_bounds = array<i64: 160, 960>}, {pipeline_mode = #tpu.pipeline_mode<synchronous>, transform_indices = @transform_3, window_bounds = array<i64: 160, 196>}]} {
    %c0 = arith.constant 0 : index
    %c0_0 = arith.constant 0 : index
    %0 = vector.load %arg1[%c0, %c0_0] : memref<960x1xf32, #tpu.memory_space<vmem>>, vector<960x1xf32>
    %1 = arith.negf %0 : vector<960x1xf32>
    %2 = math.exp %1 : vector<960x1xf32>
    %cst = arith.constant 1.000000e+00 : f32
    %3 = vector.broadcast %cst : f32 to vector<960x1xf32>
    %4 = arith.addf %3, %2 : vector<960x1xf32>
    %5 = arith.divf %3, %4 : vector<960x1xf32>
    %c0_1 = arith.constant 0 : index
    %c0_2 = arith.constant 0 : index
    %6 = vector.load %arg2[%c0_1, %c0_2] : memref<960x196xf32, #tpu.memory_space<vmem>>, vector<960x196xf32>
    %7 = vector.broadcast %5 : vector<960x1xf32> to vector<960x196xf32>
    %8 = arith.mulf %6, %7 : vector<960x196xf32>
    %9 = arith.truncf %8 : vector<960x196xf32> to vector<960x196xbf16>
    %c0_3 = arith.constant 0 : index
    %c0_4 = arith.constant 0 : index
    %10 = vector.load %arg3[%c0_3, %c0_4] : memref<160x960xbf16, #tpu.memory_space<vmem>>, vector<160x960xbf16>
    %cst_5 = arith.constant dense<0.000000e+00> : vector<160x196xf32>
    %11 = tpu.matmul %10, %9, %cst_5 {dimension_numbers = #tpu.dot_dimension_numbers<[1], [0], [0], [1], [0, 0, 1, 1], [], []>} : vector<160x960xbf16>, vector<960x196xbf16>, vector<160x196xf32> -> vector<160x196xf32>
    %c0_6 = arith.constant 0 : index
    %c0_7 = arith.constant 0 : index
    %12 = vector.load %arg4[%c0_6, %c0_7] : memref<160x196xf32, #tpu.memory_space<vmem>>, vector<160x196xf32>
    tpu.vector_store %arg4[%c0_6, %c0_7], %11 {strides = array<i32>} : memref<160x196xf32, #tpu.memory_space<vmem>>, vector<160x196xf32>,
    return
  }
  func.func @transform_0(%arg0: i32) -> (i32, i32) {
    %c0_i32 = arith.constant 0 : i32
    %c0_i32_0 = arith.constant 0 : i32
    %c0_i32_1 = arith.constant 0 : i32
    return %c0_i32, %c0_i32_0 : i32, i32
  }
  func.func @transform_1(%arg0: i32) -> (i32, i32) {
    %c0_i32 = arith.constant 0 : i32
    %c0_i32_0 = arith.constant 0 : i32
    %c0_i32_1 = arith.constant 0 : i32
    return %c0_i32, %c0_i32_0 : i32, i32
  }
  func.func @transform_2(%arg0: i32) -> (i32, i32) {
    %c0_i32 = arith.constant 0 : i32
    %c0_i32_0 = arith.constant 0 : i32
    %c0_i32_1 = arith.constant 0 : i32
    return %c0_i32, %c0_i32_0 : i32, i32
  }
  func.func @transform_3(%arg0: i32) -> (i32, i32) {
    %c0_i32 = arith.constant 0 : i32
    %c0_i32_0 = arith.constant 0 : i32
    %c0_i32_1 = arith.constant 0 : i32
    return %c0_i32, %c0_i32_0 : i32, i32
  }
}

</mosaic_0001>

<llo_original>
// kernel: se_gate_1x1conv.1
$region0: #{se_gate_1x1conv.1}
  #allocation0 [shape = 'u32[]', space=smem, size = 0x4, offset = 0x4, fixed_abs, tag = 'smem constant byte address 0x4 - core index']
  #allocation1 [shape = 'u32[72,128]{1,0:T(1,128)}', space=vmem, size = 0x9000, scoped, tag = 'internal scratch']
  %s0 = inlined_call_operand.vmem [shape: f32[960,1], index: 0, kind: input, shape index: {}]
  %s1 = inlined_call_operand.vmem [shape: f32[960,196], index: 1, kind: input, shape index: {}]
  %s2 = inlined_call_operand.vmem [shape: bf16[160,960], index: 2, kind: input, shape index: {}]
  %s3 = inlined_call_operand.vmem [shape: f32[160,196], index: 3, kind: output, shape index: {}]
  %s4 = sld [smem:[#allocation0]]
  $region22: #{se_gate_1x1conv.1} parent=0
    _
  %s6 = ssub.s32 1, %s4
  %s7 = scalar_select 0, %s6, %s4
  // Predicated region
  $region2: #{se_gate_1x1conv.1} parent=0 // pred_check
    _
  $region3: #{se_gate_1x1conv.1} parent=0 // pred_check_branch
    %9 = sbr.rel (0) target = $region5
  $region4: #{se_gate_1x1conv.1} parent=0 // pred_region
    _
  $region5: #{se_gate_1x1conv.1} parent=0 // pred_fallthru
    _
  // Predicated region
  $region6: #{se_gate_1x1conv.1} parent=0 // pred_check
    _
  $region7: #{se_gate_1x1conv.1} parent=0 // pred_check_branch
    %11 = sbr.rel (0) target = $region9
  $region8: #{se_gate_1x1conv.1} parent=0 // pred_region
    _
  $region9: #{se_gate_1x1conv.1} parent=0 // pred_fallthru
    _
  // Predicated region
  $region10: #{se_gate_1x1conv.1} parent=0 // pred_check
    _
  $region11: #{se_gate_1x1conv.1} parent=0 // pred_check_branch
    %13 = sbr.rel (0) target = $region13
  $region12: #{se_gate_1x1conv.1} parent=0 // pred_region
    _
  $region13: #{se_gate_1x1conv.1} parent=0 // pred_fallthru
    _
  %v15 = vld [vmem:[%s0] sm:$0xff]
  %v16 = vld [vmem:[%s0 + $0x8] sm:$0xff]
  %v17 = vld [vmem:[%s0 + $0x10] sm:$0xff]
  %v18 = vld [vmem:[%s0 + $0x18] sm:$0xff]
  %v19 = vld [vmem:[%s0 + $0x20] sm:$0xff]
  %v20 = vld [vmem:[%s0 + $0x28] sm:$0xff]
  %v21 = vld [vmem:[%s0 + $0x30] sm:$0xff]
  %v22 = vld [vmem:[%s0 + $0x38] sm:$0xff]
  %v23 = vld [vmem:[%s0 + $0x40] sm:$0xff]
  %v24 = vld [vmem:[%s0 + $0x48] sm:$0xff]
  %v25 = vld [vmem:[%s0 + $0x50] sm:$0xff]
  %v26 = vld [vmem:[%s0 + $0x58] sm:$0xff]
  %v27 = vld [vmem:[%s0 + $0x60] sm:$0xff]
  %v28 = vld [vmem:[%s0 + $0x68] sm:$0xff]
  %v29 = vld [vmem:[%s0 + $0x70] sm:$0xff]
  %v30 = vld [vmem:[%s0 + $0x78] sm:$0xff]
  %v31 = vld [vmem:[%s0 + $0x80] sm:$0xff]
  %v32 = vld [vmem:[%s0 + $0x88] sm:$0xff]
  %v33 = vld [vmem:[%s0 + $0x90] sm:$0xff]
  %v34 = vld [vmem:[%s0 + $0x98] sm:$0xff]
  %v35 = vld [vmem:[%s0 + $0xa0] sm:$0xff]
  %v36 = vld [vmem:[%s0 + $0xa8] sm:$0xff]
  %v37 = vld [vmem:[%s0 + $0xb0] sm:$0xff]
  %v38 = vld [vmem:[%s0 + $0xb8] sm:$0xff]
  %v39 = vld [vmem:[%s0 + $0xc0] sm:$0xff]
  %v40 = vld [vmem:[%s0 + $0xc8] sm:$0xff]
  %v41 = vld [vmem:[%s0 + $0xd0] sm:$0xff]
  %v42 = vld [vmem:[%s0 + $0xd8] sm:$0xff]
  %v43 = vld [vmem:[%s0 + $0xe0] sm:$0xff]
  %v44 = vld [vmem:[%s0 + $0xe8] sm:$0xff]
  %v45 = vld [vmem:[%s0 + $0xf0] sm:$0xff]
  %v46 = vld [vmem:[%s0 + $0xf8] sm:$0xff]
  %v47 = vld [vmem:[%s0 + $0x100] sm:$0xff]
  %v48 = vld [vmem:[%s0 + $0x108] sm:$0xff]
  %v49 = vld [vmem:[%s0 + $0x110] sm:$0xff]
  %v50 = vld [vmem:[%s0 + $0x118] sm:$0xff]
  %v51 = vld [vmem:[%s0 + $0x120] sm:$0xff]
  %v52 = vld [vmem:[%s0 + $0x128] sm:$0xff]
  %v53 = vld [vmem:[%s0 + $0x130] sm:$0xff]
  %v54 = vld [vmem:[%s0 + $0x138] sm:$0xff]
  %v55 = vld [vmem:[%s0 + $0x140] sm:$0xff]
  %v56 = vld [vmem:[%s0 + $0x148] sm:$0xff]
  %v57 = vld [vmem:[%s0 + $0x150] sm:$0xff]
  %v58 = vld [vmem:[%s0 + $0x158] sm:$0xff]
  %v59 = vld [vmem:[%s0 + $0x160] sm:$0xff]
  %v60 = vld [vmem:[%s0 + $0x168] sm:$0xff]
  %v61 = vld [vmem:[%s0 + $0x170] sm:$0xff]
  %v62 = vld [vmem:[%s0 + $0x178] sm:$0xff]
  %v63 = vld [vmem:[%s0 + $0x180] sm:$0xff]
  %v64 = vld [vmem:[%s0 + $0x188] sm:$0xff]
  %v65 = vld [vmem:[%s0 + $0x190] sm:$0xff]
  %v66 = vld [vmem:[%s0 + $0x198] sm:$0xff]
  %v67 = vld [vmem:[%s0 + $0x1a0] sm:$0xff]
  %v68 = vld [vmem:[%s0 + $0x1a8] sm:$0xff]
  %v69 = vld [vmem:[%s0 + $0x1b0] sm:$0xff]
  %v70 = vld [vmem:[%s0 + $0x1b8] sm:$0xff]
  %v71 = vld [vmem:[%s0 + $0x1c0] sm:$0xff]
  %v72 = vld [vmem:[%s0 + $0x1c8] sm:$0xff]
  %v73 = vld [vmem:[%s0 + $0x1d0] sm:$0xff]
  %v74 = vld [vmem:[%s0 + $0x1d8] sm:$0xff]
  %v75 = vld [vmem:[%s0 + $0x1e0] sm:$0xff]
  %v76 = vld [vmem:[%s0 + $0x1e8] sm:$0xff]
  %v77 = vld [vmem:[%s0 + $0x1f0] sm:$0xff]
  %v78 = vld [vmem:[%s0 + $0x1f8] sm:$0xff]
  %v79 = vld [vmem:[%s0 + $0x200] sm:$0xff]
  %v80 = vld [vmem:[%s0 + $0x208] sm:$0xff]
  %v81 = vld [vmem:[%s0 + $0x210] sm:$0xff]
  %v82 = vld [vmem:[%s0 + $0x218] sm:$0xff]
  %v83 = vld [vmem:[%s0 + $0x220] sm:$0xff]
  %v84 = vld [vmem:[%s0 + $0x228] sm:$0xff]
  %v85 = vld [vmem:[%s0 + $0x230] sm:$0xff]
  %v86 = vld [vmem:[%s0 + $0x238] sm:$0xff]
  %v87 = vld [vmem:[%s0 + $0x240] sm:$0xff]
  %v88 = vld [vmem:[%s0 + $0x248] sm:$0xff]
  %v89 = vld [vmem:[%s0 + $0x250] sm:$0xff]
  %v90 = vld [vmem:[%s0 + $0x258] sm:$0xff]
  %v91 = vld [vmem:[%s0 + $0x260] sm:$0xff]
  %v92 = vld [vmem:[%s0 + $0x268] sm:$0xff]
  %v93 = vld [vmem:[%s0 + $0x270] sm:$0xff]
  %v94 = vld [vmem:[%s0 + $0x278] sm:$0xff]
  %v95 = vld [vmem:[%s0 + $0x280] sm:$0xff]
  %v96 = vld [vmem:[%s0 + $0x288] sm:$0xff]
  %v97 = vld [vmem:[%s0 + $0x290] sm:$0xff]
  %v98 = vld [vmem:[%s0 + $0x298] sm:$0xff]
  %v99 = vld [vmem:[%s0 + $0x2a0] sm:$0xff]
  %v100 = vld [vmem:[%s0 + $0x2a8] sm:$0xff]
  %v101 = vld [vmem:[%s0 + $0x2b0] sm:$0xff]
  %v102 = vld [vmem:[%s0 + $0x2b8] sm:$0xff]
  %v103 = vld [vmem:[%s0 + $0x2c0] sm:$0xff]
  %v104 = vld [vmem:[%s0 + $0x2c8] sm:$0xff]
  %v105 = vld [vmem:[%s0 + $0x2d0] sm:$0xff]
  %v106 = vld [vmem:[%s0 + $0x2d8] sm:$0xff]
  %v107 = vld [vmem:[%s0 + $0x2e0] sm:$0xff]
  %v108 = vld [vmem:[%s0 + $0x2e8] sm:$0xff]
  %v109 = vld [vmem:[%s0 + $0x2f0] sm:$0xff]
  %v110 = vld [vmem:[%s0 + $0x2f8] sm:$0xff]
  %v111 = vld [vmem:[%s0 + $0x300] sm:$0xff]
  %v112 = vld [vmem:[%s0 + $0x308] sm:$0xff]
  %v113 = vld [vmem:[%s0 + $0x310] sm:$0xff]
  %v114 = vld [vmem:[%s0 + $0x318] sm:$0xff]
  %v115 = vld [vmem:[%s0 + $0x320] sm:$0xff]
  %v116 = vld [vmem:[%s0 + $0x328] sm:$0xff]
  %v117 = vld [vmem:[%s0 + $0x330] sm:$0xff]
  %v118 = vld [vmem:[%s0 + $0x338] sm:$0xff]
  %v119 = vld [vmem:[%s0 + $0x340] sm:$0xff]
  %v120 = vld [vmem:[%s0 + $0x348] sm:$0xff]
  %v121 = vld [vmem:[%s0 + $0x350] sm:$0xff]
  %v122 = vld [vmem:[%s0 + $0x358] sm:$0xff]
  %v123 = vld [vmem:[%s0 + $0x360] sm:$0xff]
  %v124 = vld [vmem:[%s0 + $0x368] sm:$0xff]
  %v125 = vld [vmem:[%s0 + $0x370] sm:$0xff]
  %v126 = vld [vmem:[%s0 + $0x378] sm:$0xff]
  %v127 = vld [vmem:[%s0 + $0x380] sm:$0xff]
  %v128 = vld [vmem:[%s0 + $0x388] sm:$0xff]
  %v129 = vld [vmem:[%s0 + $0x390] sm:$0xff]
  %v130 = vld [vmem:[%s0 + $0x398] sm:$0xff]
  %v131 = vld [vmem:[%s0 + $0x3a0] sm:$0xff]
  %v132 = vld [vmem:[%s0 + $0x3a8] sm:$0xff]
  %v133 = vld [vmem:[%s0 + $0x3b0] sm:$0xff]
  %v134 = vld [vmem:[%s0 + $0x3b8] sm:$0xff]
  %v135 = vxor.u32 %v15, 2147483648
  %v136 = vxor.u32 %v16, 2147483648
  %v137 = vxor.u32 %v17, 2147483648
  %v138 = vxor.u32 %v18, 2147483648
  %v139 = vxor.u32 %v19, 2147483648
  %v140 = vxor.u32 %v20, 2147483648
  %v141 = vxor.u32 %v21, 2147483648
  %v142 = vxor.u32 %v22, 2147483648
  %v143 = vxor.u32 %v23, 2147483648
  %v144 = vxor.u32 %v24, 2147483648
  %v145 = vxor.u32 %v25, 2147483648
  %v146 = vxor.u32 %v26, 2147483648
  %v147 = vxor.u32 %v27, 2147483648
  %v148 = vxor.u32 %v28, 2147483648
  %v149 = vxor.u32 %v29, 2147483648
  %v150 = vxor.u32 %v30, 2147483648
  %v151 = vxor.u32 %v31, 2147483648
  %v152 = vxor.u32 %v32, 2147483648
  %v153 = vxor.u32 %v33, 2147483648
  %v154 = vxor.u32 %v34, 2147483648
  %v155 = vxor.u32 %v35, 2147483648
  %v156 = vxor.u32 %v36, 2147483648
  %v157 = vxor.u32 %v37, 2147483648
  %v158 = vxor.u32 %v38, 2147483648
  %v159 = vxor.u32 %v39, 2147483648
  %v160 = vxor.u32 %v40, 2147483648
  %v161 = vxor.u32 %v41, 2147483648
  %v162 = vxor.u32 %v42, 2147483648
  %v163 = vxor.u32 %v43, 2147483648
  %v164 = vxor.u32 %v44, 2147483648
  %v165 = vxor.u32 %v45, 2147483648
  %v166 = vxor.u32 %v46, 2147483648
  %v167 = vxor.u32 %v47, 2147483648
  %v168 = vxor.u32 %v48, 2147483648
  %v169 = vxor.u32 %v49, 2147483648
  %v170 = vxor.u32 %v50, 2147483648
  %v171 = vxor.u32 %v51, 2147483648
  %v172 = vxor.u32 %v52, 2147483648
  %v173 = vxor.u32 %v53, 2147483648
  %v174 = vxor.u32 %v54, 2147483648
  %v175 = vxor.u32 %v55, 2147483648
  %v176 = vxor.u32 %v56, 2147483648
  %v177 = vxor.u32 %v57, 2147483648
  %v178 = vxor.u32 %v58, 2147483648
  %v179 = vxor.u32 %v59, 2147483648
  %v180 = vxor.u32 %v60, 2147483648
  %v181 = vxor.u32 %v61, 2147483648
  %v182 = vxor.u32 %v62, 2147483648
  %v183 = vxor.u32 %v63, 2147483648
  %v184 = vxor.u32 %v64, 2147483648
  %v185 = vxor.u32 %v65, 2147483648
  %v186 = vxor.u32 %v66, 2147483648
  %v187 = vxor.u32 %v67, 2147483648
  %v188 = vxor.u32 %v68, 2147483648
  %v189 = vxor.u32 %v69, 2147483648
  %v190 = vxor.u32 %v70, 2147483648
  %v191 = vxor.u32 %v71, 2147483648
  %v192 = vxor.u32 %v72, 2147483648
  %v193 = vxor.u32 %v73, 2147483648
  %v194 = vxor.u32 %v74, 2147483648
  %v195 = vxor.u32 %v75, 2147483648
  %v196 = vxor.u32 %v76, 2147483648
  %v197 = vxor.u32 %v77, 2147483648
  %v198 = vxor.u32 %v78, 2147483648
  %v199 = vxor.u32 %v79, 2147483648
  %v200 = vxor.u32 %v80, 2147483648
  %v201 = vxor.u32 %v81, 2147483648
  %v202 = vxor.u32 %v82, 2147483648
  %v203 = vxor.u32 %v83, 2147483648
  %v204 = vxor.u32 %v84, 2147483648
  %v205 = vxor.u32 %v85, 2147483648
  %v206 = vxor.u32 %v86, 2147483648
  %v207 = vxor.u32 %v87, 2147483648
  %v208 = vxor.u32 %v88, 2147483648
  %v209 = vxor.u32 %v89, 2147483648
  %v210 = vxor.u32 %v90, 2147483648
  %v211 = vxor.u32 %v91, 2147483648
  %v212 = vxor.u32 %v92, 2147483648
  %v213 = vxor.u32 %v93, 2147483648
  %v214 = vxor.u32 %v94, 2147483648
  %v215 = vxor.u32 %v95, 2147483648
  %v216 = vxor.u32 %v96, 2147483648
  %v217 = vxor.u32 %v97, 2147483648
  %v218 = vxor.u32 %v98, 2147483648
  %v219 = vxor.u32 %v99, 2147483648
  %v220 = vxor.u32 %v100, 2147483648
  %v221 = vxor.u32 %v101, 2147483648
  %v222 = vxor.u32 %v102, 2147483648
  %v223 = vxor.u32 %v103, 2147483648
  %v224 = vxor.u32 %v104, 2147483648
  %v225 = vxor.u32 %v105, 2147483648
  %v226 = vxor.u32 %v106, 2147483648
  %v227 = vxor.u32 %v107, 2147483648
  %v228 = vxor.u32 %v108, 2147483648
  %v229 = vxor.u32 %v109, 2147483648
  %v230 = vxor.u32 %v110, 2147483648
  %v231 = vxor.u32 %v111, 2147483648
  %v232 = vxor.u32 %v112, 2147483648
  %v233 = vxor.u32 %v113, 2147483648
  %v234 = vxor.u32 %v114, 2147483648
  %v235 = vxor.u32 %v115, 2147483648
  %v236 = vxor.u32 %v116, 2147483648
  %v237 = vxor.u32 %v117, 2147483648
  %v238 = vxor.u32 %v118, 2147483648
  %v239 = vxor.u32 %v119, 2147483648
  %v240 = vxor.u32 %v120, 2147483648
  %v241 = vxor.u32 %v121, 2147483648
  %v242 = vxor.u32 %v122, 2147483648
  %v243 = vxor.u32 %v123, 2147483648
  %v244 = vxor.u32 %v124, 2147483648
  %v245 = vxor.u32 %v125, 2147483648
  %v246 = vxor.u32 %v126, 2147483648
  %v247 = vxor.u32 %v127, 2147483648
  %v248 = vxor.u32 %v128, 2147483648
  %v249 = vxor.u32 %v129, 2147483648
  %v250 = vxor.u32 %v130, 2147483648
  %v251 = vxor.u32 %v131, 2147483648
  %v252 = vxor.u32 %v132, 2147483648
  %v253 = vxor.u32 %v133, 2147483648
  %v254 = vxor.u32 %v134, 2147483648
  %v255 = vmul.f32 %v135, 1.442695
  %v256 = vpow.pop %v255
  %v257 = vmul.f32 %v136, 1.442695
  %v258 = vpow.pop %v257
  %v259 = vmul.f32 %v137, 1.442695
  %v260 = vpow.pop %v259
  %v261 = vmul.f32 %v138, 1.442695
  %v262 = vpow.pop %v261
  %v263 = vmul.f32 %v139, 1.442695
  %v264 = vpow.pop %v263
  %v265 = vmul.f32 %v140, 1.442695
  %v266 = vpow.pop %v265
  %v267 = vmul.f32 %v141, 1.442695
  %v268 = vpow.pop %v267
  %v269 = vmul.f32 %v142, 1.442695
  %v270 = vpow.pop %v269
  %v271 = vmul.f32 %v143, 1.442695
  %v272 = vpow.pop %v271
  %v273 = vmul.f32 %v144, 1.442695
  %v274 = vpow.pop %v273
  %v275 = vmul.f32 %v145, 1.442695
  %v276 = vpow.pop %v275
  %v277 = vmul.f32 %v146, 1.442695
  %v278 = vpow.pop %v277
  %v279 = vmul.f32 %v147, 1.442695
  %v280 = vpow.pop %v279
  %v281 = vmul.f32 %v148, 1.442695
  %v282 = vpow.pop %v281
  %v283 = vmul.f32 %v149, 1.442695
  %v284 = vpow.pop %v283
  %v285 = vmul.f32 %v150, 1.442695
  %v286 = vpow.pop %v285
  %v287 = vmul.f32 %v151, 1.442695
  %v288 = vpow.pop %v287
  %v289 = vmul.f32 %v152, 1.442695
  %v290 = vpow.pop %v289
  %v291 = vmul.f32 %v153, 1.442695
  %v292 = vpow.pop %v291
  %v293 = vmul.f32 %v154, 1.442695
  %v294 = vpow.pop %v293
  %v295 = vmul.f32 %v155, 1.442695
  %v296 = vpow.pop %v295
  %v297 = vmul.f32 %v156, 1.442695
  %v298 = vpow.pop %v297
  %v299 = vmul.f32 %v157, 1.442695
  %v300 = vpow.pop %v299
  %v301 = vmul.f32 %v158, 1.442695
  %v302 = vpow.pop %v301
  %v303 = vmul.f32 %v159, 1.442695
  %v304 = vpow.pop %v303
  %v305 = vmul.f32 %v160, 1.442695
  %v306 = vpow.pop %v305
  %v307 = vmul.f32 %v161, 1.442695
  %v308 = vpow.pop %v307
  %v309 = vmul.f32 %v162, 1.442695
  %v310 = vpow.pop %v309
  %v311 = vmul.f32 %v163, 1.442695
  %v312 = vpow.pop %v311
  %v313 = vmul.f32 %v164, 1.442695
  %v314 = vpow.pop %v313
  %v315 = vmul.f32 %v165, 1.442695
  %v316 = vpow.pop %v315
  %v317 = vmul.f32 %v166, 1.442695
  %v318 = vpow.pop %v317
  %v319 = vmul.f32 %v167, 1.442695
  %v320 = vpow.pop %v319
  %v321 = vmul.f32 %v168, 1.442695
  %v322 = vpow.pop %v321
  %v323 = vmul.f32 %v169, 1.442695
  %v324 = vpow.pop %v323
  %v325 = vmul.f32 %v170, 1.442695
  %v326 = vpow.pop %v325
  %v327 = vmul.f32 %v171, 1.442695
  %v328 = vpow.pop %v327
  %v329 = vmul.f32 %v172, 1.442695
  %v330 = vpow.pop %v329
  %v331 = vmul.f32 %v173, 1.442695
  %v332 = vpow.pop %v331
  %v333 = vmul.f32 %v174, 1.442695
  %v334 = vpow.pop %v333
  %v335 = vmul.f32 %v175, 1.442695
  %v336 = vpow.pop %v335
  %v337 = vmul.f32 %v176, 1.442695
  %v338 = vpow.pop %v337
  %v339 = vmul.f32 %v177, 1.442695
  %v340 = vpow.pop %v339
  %v341 = vmul.f32 %v178, 1.442695
  %v342 = vpow.pop %v341
  %v343 = vmul.f32 %v179, 1.442695
  %v344 = vpow.pop %v343
  %v345 = vmul.f32 %v180, 1.442695
  %v346 = vpow.pop %v345
  %v347 = vmul.f32 %v181, 1.442695
  %v348 = vpow.pop %v347
  %v349 = vmul.f32 %v182, 1.442695
  %v350 = vpow.pop %v349
  %v351 = vmul.f32 %v183, 1.442695
  %v352 = vpow.pop %v351
  %v353 = vmul.f32 %v184, 1.442695
  %v354 = vpow.pop %v353
  %v355 = vmul.f32 %v185, 1.442695
  %v356 = vpow.pop %v355
  %v357 = vmul.f32 %v186, 1.442695
  %v358 = vpow.pop %v357
  %v359 = vmul.f32 %v187, 1.442695
  %v360 = vpow.pop %v359
  %v361 = vmul.f32 %v188, 1.442695
  %v362 = vpow.pop %v361
  %v363 = vmul.f32 %v189, 1.442695
  %v364 = vpow.pop %v363
  %v365 = vmul.f32 %v190, 1.442695
  %v366 = vpow.pop %v365
  %v367 = vmul.f32 %v191, 1.442695
  %v368 = vpow.pop %v367
  %v369 = vmul.f32 %v192, 1.442695
  %v370 = vpow.pop %v369
  %v371 = vmul.f32 %v193, 1.442695
  %v372 = vpow.pop %v371
  %v373 = vmul.f32 %v194, 1.442695
  %v374 = vpow.pop %v373
  %v375 = vmul.f32 %v195, 1.442695
  %v376 = vpow.pop %v375
  %v377 = vmul.f32 %v196, 1.442695
  %v378 = vpow.pop %v377
  %v379 = vmul.f32 %v197, 1.442695
  %v380 = vpow.pop %v379
  %v381 = vmul.f32 %v198, 1.442695
  %v382 = vpow.pop %v381
  %v383 = vmul.f32 %v199, 1.442695
  %v384 = vpow.pop %v383
  %v385 = vmul.f32 %v200, 1.442695
  %v386 = vpow.pop %v385
  %v387 = vmul.f32 %v201, 1.442695
  %v388 = vpow.pop %v387
  %v389 = vmul.f32 %v202, 1.442695
  %v390 = vpow.pop %v389
  %v391 = vmul.f32 %v203, 1.442695
  %v392 = vpow.pop %v391
  %v393 = vmul.f32 %v204, 1.442695
  %v394 = vpow.pop %v393
  %v395 = vmul.f32 %v205, 1.442695
  %v396 = vpow.pop %v395
  %v397 = vmul.f32 %v206, 1.442695
  %v398 = vpow.pop %v397
  %v399 = vmul.f32 %v207, 1.442695
  %v400 = vpow.pop %v399
  %v401 = vmul.f32 %v208, 1.442695
  %v402 = vpow.pop %v401
  %v403 = vmul.f32 %v209, 1.442695
  %v404 = vpow.pop %v403
  %v405 = vmul.f32 %v210, 1.442695
  %v406 = vpow.pop %v405
  %v407 = vmul.f32 %v211, 1.442695
  %v408 = vpow.pop %v407
  %v409 = vmul.f32 %v212, 1.442695
  %v410 = vpow.pop %v409
  %v411 = vmul.f32 %v213, 1.442695
  %v412 = vpow.pop %v411
  %v413 = vmul.f32 %v214, 1.442695
  %v414 = vpow.pop %v413
  %v415 = vmul.f32 %v215, 1.442695
  %v416 = vpow.pop %v415
  %v417 = vmul.f32 %v216, 1.442695
  %v418 = vpow.pop %v417
  %v419 = vmul.f32 %v217, 1.442695
  %v420 = vpow.pop %v419
  %v421 = vmul.f32 %v218, 1.442695
  %v422 = vpow.pop %v421
  %v423 = vmul.f32 %v219, 1.442695
  %v424 = vpow.pop %v423
  %v425 = vmul.f32 %v220, 1.442695
  %v426 = vpow.pop %v425
  %v427 = vmul.f32 %v221, 1.442695
  %v428 = vpow.pop %v427
  %v429 = vmul.f32 %v222, 1.442695
  %v430 = vpow.pop %v429
  %v431 = vmul.f32 %v223, 1.442695
  %v432 = vpow.pop %v431
  %v433 = vmul.f32 %v224, 1.442695
  %v434 = vpow.pop %v433
  %v435 = vmul.f32 %v225, 1.442695
  %v436 = vpow.pop %v435
  %v437 = vmul.f32 %v226, 1.442695
  %v438 = vpow.pop %v437
  %v439 = vmul.f32 %v227, 1.442695
  %v440 = vpow.pop %v439
  %v441 = vmul.f32 %v228, 1.442695
  %v442 = vpow.pop %v441
  %v443 = vmul.f32 %v229, 1.442695
  %v444 = vpow.pop %v443
  %v445 = vmul.f32 %v230, 1.442695
  %v446 = vpow.pop %v445
  %v447 = vmul.f32 %v231, 1.442695
  %v448 = vpow.pop %v447
  %v449 = vmul.f32 %v232, 1.442695
  %v450 = vpow.pop %v449
  %v451 = vmul.f32 %v233, 1.442695
  %v452 = vpow.pop %v451
  %v453 = vmul.f32 %v234, 1.442695
  %v454 = vpow.pop %v453
  %v455 = vmul.f32 %v235, 1.442695
  %v456 = vpow.pop %v455
  %v457 = vmul.f32 %v236, 1.442695
  %v458 = vpow.pop %v457
  %v459 = vmul.f32 %v237, 1.442695
  %v460 = vpow.pop %v459
  %v461 = vmul.f32 %v238, 1.442695
  %v462 = vpow.pop %v461
  %v463 = vmul.f32 %v239, 1.442695
  %v464 = vpow.pop %v463
  %v465 = vmul.f32 %v240, 1.442695
  %v466 = vpow.pop %v465
  %v467 = vmul.f32 %v241, 1.442695
  %v468 = vpow.pop %v467
  %v469 = vmul.f32 %v242, 1.442695
  %v470 = vpow.pop %v469
  %v471 = vmul.f32 %v243, 1.442695
  %v472 = vpow.pop %v471
  %v473 = vmul.f32 %v244, 1.442695
  %v474 = vpow.pop %v473
  %v475 = vmul.f32 %v245, 1.442695
  %v476 = vpow.pop %v475
  %v477 = vmul.f32 %v246, 1.442695
  %v478 = vpow.pop %v477
  %v479 = vmul.f32 %v247, 1.442695
  %v480 = vpow.pop %v479
  %v481 = vmul.f32 %v248, 1.442695
  %v482 = vpow.pop %v481
  %v483 = vmul.f32 %v249, 1.442695
  %v484 = vpow.pop %v483
  %v485 = vmul.f32 %v250, 1.442695
  %v486 = vpow.pop %v485
  %v487 = vmul.f32 %v251, 1.442695
  %v488 = vpow.pop %v487
  %v489 = vmul.f32 %v252, 1.442695
  %v490 = vpow.pop %v489
  %v491 = vmul.f32 %v253, 1.442695
  %v492 = vpow.pop %v491
  %v493 = vmul.f32 %v254, 1.442695
  %v494 = vpow.pop %v493
  %v495 = vadd.f32 %v256, 1.0
  %v496 = vadd.f32 %v258, 1.0
  %v497 = vadd.f32 %v260, 1.0
  %v498 = vadd.f32 %v262, 1.0
  %v499 = vadd.f32 %v264, 1.0
  %v500 = vadd.f32 %v266, 1.0
  %v501 = vadd.f32 %v268, 1.0
  %v502 = vadd.f32 %v270, 1.0
  %v503 = vadd.f32 %v272, 1.0
  %v504 = vadd.f32 %v274, 1.0
  %v505 = vadd.f32 %v276, 1.0
  %v506 = vadd.f32 %v278, 1.0
  %v507 = vadd.f32 %v280, 1.0
  %v508 = vadd.f32 %v282, 1.0
  %v509 = vadd.f32 %v284, 1.0
  %v510 = vadd.f32 %v286, 1.0
  %v511 = vadd.f32 %v288, 1.0
  %v512 = vadd.f32 %v290, 1.0
  %v513 = vadd.f32 %v292, 1.0
  %v514 = vadd.f32 %v294, 1.0
  %v515 = vadd.f32 %v296, 1.0
  %v516 = vadd.f32 %v298, 1.0
  %v517 = vadd.f32 %v300, 1.0
  %v518 = vadd.f32 %v302, 1.0
  %v519 = vadd.f32 %v304, 1.0
  %v520 = vadd.f32 %v306, 1.0
  %v521 = vadd.f32 %v308, 1.0
  %v522 = vadd.f32 %v310, 1.0
  %v523 = vadd.f32 %v312, 1.0
  %v524 = vadd.f32 %v314, 1.0
  %v525 = vadd.f32 %v316, 1.0
  %v526 = vadd.f32 %v318, 1.0
  %v527 = vadd.f32 %v320, 1.0
  %v528 = vadd.f32 %v322, 1.0
  %v529 = vadd.f32 %v324, 1.0
  %v530 = vadd.f32 %v326, 1.0
  %v531 = vadd.f32 %v328, 1.0
  %v532 = vadd.f32 %v330, 1.0
  %v533 = vadd.f32 %v332, 1.0
  %v534 = vadd.f32 %v334, 1.0
  %v535 = vadd.f32 %v336, 1.0
  %v536 = vadd.f32 %v338, 1.0
  %v537 = vadd.f32 %v340, 1.0
  %v538 = vadd.f32 %v342, 1.0
  %v539 = vadd.f32 %v344, 1.0
  %v540 = vadd.f32 %v346, 1.0
  %v541 = vadd.f32 %v348, 1.0
  %v542 = vadd.f32 %v350, 1.0
  %v543 = vadd.f32 %v352, 1.0
  %v544 = vadd.f32 %v354, 1.0
  %v545 = vadd.f32 %v356, 1.0
  %v546 = vadd.f32 %v358, 1.0
  %v547 = vadd.f32 %v360, 1.0
  %v548 = vadd.f32 %v362, 1.0
  %v549 = vadd.f32 %v364, 1.0
  %v550 = vadd.f32 %v366, 1.0
  %v551 = vadd.f32 %v368, 1.0
  %v552 = vadd.f32 %v370, 1.0
  %v553 = vadd.f32 %v372, 1.0
  %v554 = vadd.f32 %v374, 1.0
  %v555 = vadd.f32 %v376, 1.0
  %v556 = vadd.f32 %v378, 1.0
  %v557 = vadd.f32 %v380, 1.0
  %v558 = vadd.f32 %v382, 1.0
  %v559 = vadd.f32 %v384, 1.0
  %v560 = vadd.f32 %v386, 1.0
  %v561 = vadd.f32 %v388, 1.0
  %v562 = vadd.f32 %v390, 1.0
  %v563 = vadd.f32 %v392, 1.0
  %v564 = vadd.f32 %v394, 1.0
  %v565 = vadd.f32 %v396, 1.0
  %v566 = vadd.f32 %v398, 1.0
  %v567 = vadd.f32 %v400, 1.0
  %v568 = vadd.f32 %v402, 1.0
  %v569 = vadd.f32 %v404, 1.0
  %v570 = vadd.f32 %v406, 1.0
  %v571 = vadd.f32 %v408, 1.0
  %v572 = vadd.f32 %v410, 1.0
  %v573 = vadd.f32 %v412, 1.0
  %v574 = vadd.f32 %v414, 1.0
  %v575 = vadd.f32 %v416, 1.0
  %v576 = vadd.f32 %v418, 1.0
  %v577 = vadd.f32 %v420, 1.0
  %v578 = vadd.f32 %v422, 1.0
  %v579 = vadd.f32 %v424, 1.0
  %v580 = vadd.f32 %v426, 1.0
  %v581 = vadd.f32 %v428, 1.0
  %v582 = vadd.f32 %v430, 1.0
  %v583 = vadd.f32 %v432, 1.0
  %v584 = vadd.f32 %v434, 1.0
  %v585 = vadd.f32 %v436, 1.0
  %v586 = vadd.f32 %v438, 1.0
  %v587 = vadd.f32 %v440, 1.0
  %v588 = vadd.f32 %v442, 1.0
  %v589 = vadd.f32 %v444, 1.0
  %v590 = vadd.f32 %v446, 1.0
  %v591 = vadd.f32 %v448, 1.0
  %v592 = vadd.f32 %v450, 1.0
  %v593 = vadd.f32 %v452, 1.0
  %v594 = vadd.f32 %v454, 1.0
  %v595 = vadd.f32 %v456, 1.0
  %v596 = vadd.f32 %v458, 1.0
  %v597 = vadd.f32 %v460, 1.0
  %v598 = vadd.f32 %v462, 1.0
  %v599 = vadd.f32 %v464, 1.0
  %v600 = vadd.f32 %v466, 1.0
  %v601 = vadd.f32 %v468, 1.0
  %v602 = vadd.f32 %v470, 1.0
  %v603 = vadd.f32 %v472, 1.0
  %v604 = vadd.f32 %v474, 1.0
  %v605 = vadd.f32 %v476, 1.0
  %v606 = vadd.f32 %v478, 1.0
  %v607 = vadd.f32 %v480, 1.0
  %v608 = vadd.f32 %v482, 1.0
  %v609 = vadd.f32 %v484, 1.0
  %v610 = vadd.f32 %v486, 1.0
  %v611 = vadd.f32 %v488, 1.0
  %v612 = vadd.f32 %v490, 1.0
  %v613 = vadd.f32 %v492, 1.0
  %v614 = vadd.f32 %v494, 1.0
  %v615 = vrcp.pop %v495
  %v616 = vmul.f32 %v495, %v615
  %v617 = vsub.f32 1.0, %v616
  %v618 = vmul.f32 %v615, %v617
  %v619 = vadd.f32 %v615, %v618
  %vm620 = vweird.f32 %v495
  %vm621 = vweird.f32 %v615
  %vm622 = vmor %vm620, %vm621
  %v623 = vsel %vm622, %v615, %v619
  %v624 = vand.u32 2147483647, %v495
  %vm625 = vcmp.eq.f32.partialorder %v624, 8.507059e+37
  %v626 = vand.u32 %v495, 2147483648
  %v627 = vor.u32 1.1754944e-38, %v626
  %v628 = vsel %vm625, %v627, %v623
  %v629 = vmul.f32 1.0, %v628
  %v630 = vrcp.pop %v496
  %v631 = vmul.f32 %v496, %v630
  %v632 = vsub.f32 1.0, %v631
  %v633 = vmul.f32 %v630, %v632
  %v634 = vadd.f32 %v630, %v633
  %vm635 = vweird.f32 %v496
  %vm636 = vweird.f32 %v630
  %vm637 = vmor %vm635, %vm636
  %v638 = vsel %vm637, %v630, %v634
  %v639 = vand.u32 2147483647, %v496
  %vm640 = vcmp.eq.f32.partialorder %v639, 8.507059e+37
  %v641 = vand.u32 %v496, 2147483648
  %v642 = vor.u32 1.1754944e-38, %v641
  %v643 = vsel %vm640, %v642, %v638
  %v644 = vmul.f32 1.0, %v643
  %v645 = vrcp.pop %v497
  %v646 = vmul.f32 %v497, %v645
  %v647 = vsub.f32 1.0, %v646
  %v648 = vmul.f32 %v645, %v647
  %v649 = vadd.f32 %v645, %v648
  %vm650 = vweird.f32 %v497
  %vm651 = vweird.f32 %v645
  %vm652 = vmor %vm650, %vm651
  %v653 = vsel %vm652, %v645, %v649
  %v654 = vand.u32 2147483647, %v497
  %vm655 = vcmp.eq.f32.partialorder %v654, 8.507059e+37
  %v656 = vand.u32 %v497, 2147483648
  %v657 = vor.u32 1.1754944e-38, %v656
  %v658 = vsel %vm655, %v657, %v653
  %v659 = vmul.f32 1.0, %v658
  %v660 = vrcp.pop %v498
  %v661 = vmul.f32 %v498, %v660
  %v662 = vsub.f32 1.0, %v661
  %v663 = vmul.f32 %v660, %v662
  %v664 = vadd.f32 %v660, %v663
  %vm665 = vweird.f32 %v498
  %vm666 = vweird.f32 %v660
  %vm667 = vmor %vm665, %vm666
  %v668 = vsel %vm667, %v660, %v664
  %v669 = vand.u32 2147483647, %v498
  %vm670 = vcmp.eq.f32.partialorder %v669, 8.507059e+37
  %v671 = vand.u32 %v498, 2147483648
  %v672 = vor.u32 1.1754944e-38, %v671
  %v673 = vsel %vm670, %v672, %v668
  %v674 = vmul.f32 1.0, %v673
  %v675 = vrcp.pop %v499
  %v676 = vmul.f32 %v499, %v675
  %v677 = vsub.f32 1.0, %v676
  %v678 = vmul.f32 %v675, %v677
  %v679 = vadd.f32 %v675, %v678
  %vm680 = vweird.f32 %v499
  %vm681 = vweird.f32 %v675
  %vm682 = vmor %vm680, %vm681
  %v683 = vsel %vm682, %v675, %v679
  %v684 = vand.u32 2147483647, %v499
  %vm685 = vcmp.eq.f32.partialorder %v684, 8.507059e+37
  %v686 = vand.u32 %v499, 2147483648
  %v687 = vor.u32 1.1754944e-38, %v686
  %v688 = vsel %vm685, %v687, %v683
  %v689 = vmul.f32 1.0, %v688
  %v690 = vrcp.pop %v500
  %v691 = vmul.f32 %v500, %v690
  %v692 = vsub.f32 1.0, %v691
  %v693 = vmul.f32 %v690, %v692
  %v694 = vadd.f32 %v690, %v693
  %vm695 = vweird.f32 %v500
  %vm696 = vweird.f32 %v690
  %vm697 = vmor %vm695, %vm696
  %v698 = vsel %vm697, %v690, %v694
  %v699 = vand.u32 2147483647, %v500
  %vm700 = vcmp.eq.f32.partialorder %v699, 8.507059e+37
  %v701 = vand.u32 %v500, 2147483648
  %v702 = vor.u32 1.1754944e-38, %v701
  %v703 = vsel %vm700, %v702, %v698
  %v704 = vmul.f32 1.0, %v703
  %v705 = vrcp.pop %v501
  %v706 = vmul.f32 %v501, %v705
  %v707 = vsub.f32 1.0, %v706
  %v708 = vmul.f32 %v705, %v707
  %v709 = vadd.f32 %v705, %v708
  %vm710 = vweird.f32 %v501
  %vm711 = vweird.f32 %v705
  %vm712 = vmor %vm710, %vm711
  %v713 = vsel %vm712, %v705, %v709
  %v714 = vand.u32 2147483647, %v501
  %vm715 = vcmp.eq.f32.partialorder %v714, 8.507059e+37
  %v716 = vand.u32 %v501, 2147483648
  %v717 = vor.u32 1.1754944e-38, %v716
  %v718 = vsel %vm715, %v717, %v713
  %v719 = vmul.f32 1.0, %v718
  %v720 = vrcp.pop %v502
  %v721 = vmul.f32 %v502, %v720
  %v722 = vsub.f32 1.0, %v721
  %v723 = vmul.f32 %v720, %v722
  %v724 = vadd.f32 %v720, %v723
  %vm725 = vweird.f32 %v502
  %vm726 = vweird.f32 %v720
  %vm727 = vmor %vm725, %vm726
  %v728 = vsel %vm727, %v720, %v724
  %v729 = vand.u32 2147483647, %v502
  %vm730 = vcmp.eq.f32.partialorder %v729, 8.507059e+37
  %v731 = vand.u32 %v502, 2147483648
  %v732 = vor.u32 1.1754944e-38, %v731
  %v733 = vsel %vm730, %v732, %v728
  %v734 = vmul.f32 1.0, %v733
  %v735 = vrcp.pop %v503
  %v736 = vmul.f32 %v503, %v735
  %v737 = vsub.f32 1.0, %v736
  %v738 = vmul.f32 %v735, %v737
  %v739 = vadd.f32 %v735, %v738
  %vm740 = vweird.f32 %v503
  %vm741 = vweird.f32 %v735
  %vm742 = vmor %vm740, %vm741
  %v743 = vsel %vm742, %v735, %v739
  %v744 = vand.u32 2147483647, %v503
  %vm745 = vcmp.eq.f32.partialorder %v744, 8.507059e+37
  %v746 = vand.u32 %v503, 2147483648
  %v747 = vor.u32 1.1754944e-38, %v746
  %v748 = vsel %vm745, %v747, %v743
  %v749 = vmul.f32 1.0, %v748
  %v750 = vrcp.pop %v504
  %v751 = vmul.f32 %v504, %v750
  %v752 = vsub.f32 1.0, %v751
  %v753 = vmul.f32 %v750, %v752
  %v754 = vadd.f32 %v750, %v753
  %vm755 = vweird.f32 %v504
  %vm756 = vweird.f32 %v750
  %vm757 = vmor %vm755, %vm756
  %v758 = vsel %vm757, %v750, %v754
  %v759 = vand.u32 2147483647, %v504
  %vm760 = vcmp.eq.f32.partialorder %v759, 8.507059e+37
  %v761 = vand.u32 %v504, 2147483648
  %v762 = vor.u32 1.1754944e-38, %v761
  %v763 = vsel %vm760, %v762, %v758
  %v764 = vmul.f32 1.0, %v763
  %v765 = vrcp.pop %v505
  %v766 = vmul.f32 %v505, %v765
  %v767 = vsub.f32 1.0, %v766
  %v768 = vmul.f32 %v765, %v767
  %v769 = vadd.f32 %v765, %v768
  %vm770 = vweird.f32 %v505
  %vm771 = vweird.f32 %v765
  %vm772 = vmor %vm770, %vm771
  %v773 = vsel %vm772, %v765, %v769
  %v774 = vand.u32 2147483647, %v505
  %vm775 = vcmp.eq.f32.partialorder %v774, 8.507059e+37
  %v776 = vand.u32 %v505, 2147483648
  %v777 = vor.u32 1.1754944e-38, %v776
  %v778 = vsel %vm775, %v777, %v773
  %v779 = vmul.f32 1.0, %v778
  %v780 = vrcp.pop %v506
  %v781 = vmul.f32 %v506, %v780
  %v782 = vsub.f32 1.0, %v781
  %v783 = vmul.f32 %v780, %v782
  %v784 = vadd.f32 %v780, %v783
  %vm785 = vweird.f32 %v506
  %vm786 = vweird.f32 %v780
  %vm787 = vmor %vm785, %vm786
  %v788 = vsel %vm787, %v780, %v784
  %v789 = vand.u32 2147483647, %v506
  %vm790 = vcmp.eq.f32.partialorder %v789, 8.507059e+37
  %v791 = vand.u32 %v506, 2147483648
  %v792 = vor.u32 1.1754944e-38, %v791
  %v793 = vsel %vm790, %v792, %v788
  %v794 = vmul.f32 1.0, %v793
  %v795 = vrcp.pop %v507
  %v796 = vmul.f32 %v507, %v795
  %v797 = vsub.f32 1.0, %v796
  %v798 = vmul.f32 %v795, %v797
  %v799 = vadd.f32 %v795, %v798
  %vm800 = vweird.f32 %v507
  %vm801 = vweird.f32 %v795
  %vm802 = vmor %vm800, %vm801
  %v803 = vsel %vm802, %v795, %v799
  %v804 = vand.u32 2147483647, %v507
  %vm805 = vcmp.eq.f32.partialorder %v804, 8.507059e+37
  %v806 = vand.u32 %v507, 2147483648
  %v807 = vor.u32 1.1754944e-38, %v806
  %v808 = vsel %vm805, %v807, %v803
  %v809 = vmul.f32 1.0, %v808
  %v810 = vrcp.pop %v508
  %v811 = vmul.f32 %v508, %v810
  %v812 = vsub.f32 1.0, %v811
  %v813 = vmul.f32 %v810, %v812
  %v814 = vadd.f32 %v810, %v813
  %vm815 = vweird.f32 %v508
  %vm816 = vweird.f32 %v810
  %vm817 = vmor %vm815, %vm816
  %v818 = vsel %vm817, %v810, %v814
  %v819 = vand.u32 2147483647, %v508
  %vm820 = vcmp.eq.f32.partialorder %v819, 8.507059e+37
  %v821 = vand.u32 %v508, 2147483648
  %v822 = vor.u32 1.1754944e-38, %v821
  %v823 = vsel %vm820, %v822, %v818
  %v824 = vmul.f32 1.0, %v823
  %v825 = vrcp.pop %v509
  %v826 = vmul.f32 %v509, %v825
  %v827 = vsub.f32 1.0, %v826
  %v828 = vmul.f32 %v825, %v827
  %v829 = vadd.f32 %v825, %v828
  %vm830 = vweird.f32 %v509
  %vm831 = vweird.f32 %v825
  %vm832 = vmor %vm830, %vm831
  %v833 = vsel %vm832, %v825, %v829
  %v834 = vand.u32 2147483647, %v509
  %vm835 = vcmp.eq.f32.partialorder %v834, 8.507059e+37
  %v836 = vand.u32 %v509, 2147483648
  %v837 = vor.u32 1.1754944e-38, %v836
  %v838 = vsel %vm835, %v837, %v833
  %v839 = vmul.f32 1.0, %v838
  %v840 = vrcp.pop %v510
  %v841 = vmul.f32 %v510, %v840
  %v842 = vsub.f32 1.0, %v841
  %v843 = vmul.f32 %v840, %v842
  %v844 = vadd.f32 %v840, %v843
  %vm845 = vweird.f32 %v510
  %vm846 = vweird.f32 %v840
  %vm847 = vmor %vm845, %vm846
  %v848 = vsel %vm847, %v840, %v844
  %v849 = vand.u32 2147483647, %v510
  %vm850 = vcmp.eq.f32.partialorder %v849, 8.507059e+37
  %v851 = vand.u32 %v510, 2147483648
  %v852 = vor.u32 1.1754944e-38, %v851
  %v853 = vsel %vm850, %v852, %v848
  %v854 = vmul.f32 1.0, %v853
  %v855 = vrcp.pop %v511
  %v856 = vmul.f32 %v511, %v855
  %v857 = vsub.f32 1.0, %v856
  %v858 = vmul.f32 %v855, %v857
  %v859 = vadd.f32 %v855, %v858
  %vm860 = vweird.f32 %v511
  %vm861 = vweird.f32 %v855
  %vm862 = vmor %vm860, %vm861
  %v863 = vsel %vm862, %v855, %v859
  %v864 = vand.u32 2147483647, %v511
  %vm865 = vcmp.eq.f32.partialorder %v864, 8.507059e+37
  %v866 = vand.u32 %v511, 2147483648
  %v867 = vor.u32 1.1754944e-38, %v866
  %v868 = vsel %vm865, %v867, %v863
  %v869 = vmul.f32 1.0, %v868
  %v870 = vrcp.pop %v512
  %v871 = vmul.f32 %v512, %v870
  %v872 = vsub.f32 1.0, %v871
  %v873 = vmul.f32 %v870, %v872
  %v874 = vadd.f32 %v870, %v873
  %vm875 = vweird.f32 %v512
  %vm876 = vweird.f32 %v870
  %vm877 = vmor %vm875, %vm876
  %v878 = vsel %vm877, %v870, %v874
  %v879 = vand.u32 2147483647, %v512
  %vm880 = vcmp.eq.f32.partialorder %v879, 8.507059e+37
  %v881 = vand.u32 %v512, 2147483648
  %v882 = vor.u32 1.1754944e-38, %v881
  %v883 = vsel %vm880, %v882, %v878
  %v884 = vmul.f32 1.0, %v883
  %v885 = vrcp.pop %v513
  %v886 = vmul.f32 %v513, %v885
  %v887 = vsub.f32 1.0, %v886
  %v888 = vmul.f32 %v885, %v887
  %v889 = vadd.f32 %v885, %v888
  %vm890 = vweird.f32 %v513
  %vm891 = vweird.f32 %v885
  %vm892 = vmor %vm890, %vm891
  %v893 = vsel %vm892, %v885, %v889
  %v894 = vand.u32 2147483647, %v513
  %vm895 = vcmp.eq.f32.partialorder %v894, 8.507059e+37
  %v896 = vand.u32 %v513, 2147483648
  %v897 = vor.u32 1.1754944e-38, %v896
  %v898 = vsel %vm895, %v897, %v893
  %v899 = vmul.f32 1.0, %v898
  %v900 = vrcp.pop %v514
  %v901 = vmul.f32 %v514, %v900
  %v902 = vsub.f32 1.0, %v901
  %v903 = vmul.f32 %v900, %v902
  %v904 = vadd.f32 %v900, %v903
  %vm905 = vweird.f32 %v514
  %vm906 = vweird.f32 %v900
  %vm907 = vmor %vm905, %vm906
  %v908 = vsel %vm907, %v900, %v904
  %v909 = vand.u32 2147483647, %v514
  %vm910 = vcmp.eq.f32.partialorder %v909, 8.507059e+37
  %v911 = vand.u32 %v514, 2147483648
  %v912 = vor.u32 1.1754944e-38, %v911
  %v913 = vsel %vm910, %v912, %v908
  %v914 = vmul.f32 1.0, %v913
  %v915 = vrcp.pop %v515
  %v916 = vmul.f32 %v515, %v915
  %v917 = vsub.f32 1.0, %v916
  %v918 = vmul.f32 %v915, %v917
  %v919 = vadd.f32 %v915, %v918
  %vm920 = vweird.f32 %v515
  %vm921 = vweird.f32 %v915
  %vm922 = vmor %vm920, %vm921
  %v923 = vsel %vm922, %v915, %v919
  %v924 = vand.u32 2147483647, %v515
  %vm925 = vcmp.eq.f32.partialorder %v924, 8.507059e+37
  %v926 = vand.u32 %v515, 2147483648
  %v927 = vor.u32 1.1754944e-38, %v926
  %v928 = vsel %vm925, %v927, %v923
  %v929 = vmul.f32 1.0, %v928
  %v930 = vrcp.pop %v516
  %v931 = vmul.f32 %v516, %v930
  %v932 = vsub.f32 1.0, %v931
  %v933 = vmul.f32 %v930, %v932
  %v934 = vadd.f32 %v930, %v933
  %vm935 = vweird.f32 %v516
  %vm936 = vweird.f32 %v930
  %vm937 = vmor %vm935, %vm936
  %v938 = vsel %vm937, %v930, %v934
  %v939 = vand.u32 2147483647, %v516
  %vm940 = vcmp.eq.f32.partialorder %v939, 8.507059e+37
  %v941 = vand.u32 %v516, 2147483648
  %v942 = vor.u32 1.1754944e-38, %v941
  %v943 = vsel %vm940, %v942, %v938
  %v944 = vmul.f32 1.0, %v943
  %v945 = vrcp.pop %v517
  %v946 = vmul.f32 %v517, %v945
  %v947 = vsub.f32 1.0, %v946
  %v948 = vmul.f32 %v945, %v947
  %v949 = vadd.f32 %v945, %v948
  %vm950 = vweird.f32 %v517
  %vm951 = vweird.f32 %v945
  %vm952 = vmor %vm950, %vm951
  %v953 = vsel %vm952, %v945, %v949
  %v954 = vand.u32 2147483647, %v517
  %vm955 = vcmp.eq.f32.partialorder %v954, 8.507059e+37
  %v956 = vand.u32 %v517, 2147483648
  %v957 = vor.u32 1.1754944e-38, %v956
  %v958 = vsel %vm955, %v957, %v953
  %v959 = vmul.f32 1.0, %v958
  %v960 = vrcp.pop %v518
  %v961 = vmul.f32 %v518, %v960
  %v962 = vsub.f32 1.0, %v961
  %v963 = vmul.f32 %v960, %v962
  %v964 = vadd.f32 %v960, %v963
  %vm965 = vweird.f32 %v518
  %vm966 = vweird.f32 %v960
  %vm967 = vmor %vm965, %vm966
  %v968 = vsel %vm967, %v960, %v964
  %v969 = vand.u32 2147483647, %v518
  %vm970 = vcmp.eq.f32.partialorder %v969, 8.507059e+37
  %v971 = vand.u32 %v518, 2147483648
  %v972 = vor.u32 1.1754944e-38, %v971
  %v973 = vsel %vm970, %v972, %v968
  %v974 = vmul.f32 1.0, %v973
  %v975 = vrcp.pop %v519
  %v976 = vmul.f32 %v519, %v975
  %v977 = vsub.f32 1.0, %v976
  %v978 = vmul.f32 %v975, %v977
  %v979 = vadd.f32 %v975, %v978
  %vm980 = vweird.f32 %v519
  %vm981 = vweird.f32 %v975
  %vm982 = vmor %vm980, %vm981
  %v983 = vsel %vm982, %v975, %v979
  %v984 = vand.u32 2147483647, %v519
  %vm985 = vcmp.eq.f32.partialorder %v984, 8.507059e+37
  %v986 = vand.u32 %v519, 2147483648
  %v987 = vor.u32 1.1754944e-38, %v986
  %v988 = vsel %vm985, %v987, %v983
  %v989 = vmul.f32 1.0, %v988
  %v990 = vrcp.pop %v520
  %v991 = vmul.f32 %v520, %v990
  %v992 = vsub.f32 1.0, %v991
  %v993 = vmul.f32 %v990, %v992
  %v994 = vadd.f32 %v990, %v993
  %vm995 = vweird.f32 %v520
  %vm996 = vweird.f32 %v990
  %vm997 = vmor %vm995, %vm996
  %v998 = vsel %vm997, %v990, %v994
  %v999 = vand.u32 2147483647, %v520
  %vm1000 = vcmp.eq.f32.partialorder %v999, 8.507059e+37
  %v1001 = vand.u32 %v520, 2147483648
  %v1002 = vor.u32 1.1754944e-38, %v1001
  %v1003 = vsel %vm1000, %v1002, %v998
  %v1004 = vmul.f32 1.0, %v1003
  %v1005 = vrcp.pop %v521
  %v1006 = vmul.f32 %v521, %v1005
  %v1007 = vsub.f32 1.0, %v1006
  %v1008 = vmul.f32 %v1005, %v1007
  %v1009 = vadd.f32 %v1005, %v1008
  %vm1010 = vweird.f32 %v521
  %vm1011 = vweird.f32 %v1005
  %vm1012 = vmor %vm1010, %vm1011
  %v1013 = vsel %vm1012, %v1005, %v1009
  %v1014 = vand.u32 2147483647, %v521
  %vm1015 = vcmp.eq.f32.partialorder %v1014, 8.507059e+37
  %v1016 = vand.u32 %v521, 2147483648
  %v1017 = vor.u32 1.1754944e-38, %v1016
  %v1018 = vsel %vm1015, %v1017, %v1013
  %v1019 = vmul.f32 1.0, %v1018
  %v1020 = vrcp.pop %v522
  %v1021 = vmul.f32 %v522, %v1020
  %v1022 = vsub.f32 1.0, %v1021
  %v1023 = vmul.f32 %v1020, %v1022
  %v1024 = vadd.f32 %v1020, %v1023
  %vm1025 = vweird.f32 %v522
  %vm1026 = vweird.f32 %v1020
  %vm1027 = vmor %vm1025, %vm1026
  %v1028 = vsel %vm1027, %v1020, %v1024
  %v1029 = vand.u32 2147483647, %v522
  %vm1030 = vcmp.eq.f32.partialorder %v1029, 8.507059e+37
  %v1031 = vand.u32 %v522, 2147483648
  %v1032 = vor.u32 1.1754944e-38, %v1031
  %v1033 = vsel %vm1030, %v1032, %v1028
  %v1034 = vmul.f32 1.0, %v1033
  %v1035 = vrcp.pop %v523
  %v1036 = vmul.f32 %v523, %v1035
  %v1037 = vsub.f32 1.0, %v1036
  %v1038 = vmul.f32 %v1035, %v1037
  %v1039 = vadd.f32 %v1035, %v1038
  %vm1040 = vweird.f32 %v523
  %vm1041 = vweird.f32 %v1035
  %vm1042 = vmor %vm1040, %vm1041
  %v1043 = vsel %vm1042, %v1035, %v1039
  %v1044 = vand.u32 2147483647, %v523
  %vm1045 = vcmp.eq.f32.partialorder %v1044, 8.507059e+37
  %v1046 = vand.u32 %v523, 2147483648
  %v1047 = vor.u32 1.1754944e-38, %v1046
  %v1048 = vsel %vm1045, %v1047, %v1043
  %v1049 = vmul.f32 1.0, %v1048
  %v1050 = vrcp.pop %v524
  %v1051 = vmul.f32 %v524, %v1050
  %v1052 = vsub.f32 1.0, %v1051
  %v1053 = vmul.f32 %v1050, %v1052
  %v1054 = vadd.f32 %v1050, %v1053
  %vm1055 = vweird.f32 %v524
  %vm1056 = vweird.f32 %v1050
  %vm1057 = vmor %vm1055, %vm1056
  %v1058 = vsel %vm1057, %v1050, %v1054
  %v1059 = vand.u32 2147483647, %v524
  %vm1060 = vcmp.eq.f32.partialorder %v1059, 8.507059e+37
  %v1061 = vand.u32 %v524, 2147483648
  %v1062 = vor.u32 1.1754944e-38, %v1061
  %v1063 = vsel %vm1060, %v1062, %v1058
  %v1064 = vmul.f32 1.0, %v1063
  %v1065 = vrcp.pop %v525
  %v1066 = vmul.f32 %v525, %v1065
  %v1067 = vsub.f32 1.0, %v1066
  %v1068 = vmul.f32 %v1065, %v1067
  %v1069 = vadd.f32 %v1065, %v1068
  %vm1070 = vweird.f32 %v525
  %vm1071 = vweird.f32 %v1065
  %vm1072 = vmor %vm1070, %vm1071
  %v1073 = vsel %vm1072, %v1065, %v1069
  %v1074 = vand.u32 2147483647, %v525
  %vm1075 = vcmp.eq.f32.partialorder %v1074, 8.507059e+37
  %v1076 = vand.u32 %v525, 2147483648
  %v1077 = vor.u32 1.1754944e-38, %v1076
  %v1078 = vsel %vm1075, %v1077, %v1073
  %v1079 = vmul.f32 1.0, %v1078
  %v1080 = vrcp.pop %v526
  %v1081 = vmul.f32 %v526, %v1080
  %v1082 = vsub.f32 1.0, %v1081
  %v1083 = vmul.f32 %v1080, %v1082
  %v1084 = vadd.f32 %v1080, %v1083
  %vm1085 = vweird.f32 %v526
  %vm1086 = vweird.f32 %v1080
  %vm1087 = vmor %vm1085, %vm1086
  %v1088 = vsel %vm1087, %v1080, %v1084
  %v1089 = vand.u32 2147483647, %v526
  %vm1090 = vcmp.eq.f32.partialorder %v1089, 8.507059e+37
  %v1091 = vand.u32 %v526, 2147483648
  %v1092 = vor.u32 1.1754944e-38, %v1091
  %v1093 = vsel %vm1090, %v1092, %v1088
  %v1094 = vmul.f32 1.0, %v1093
  %v1095 = vrcp.pop %v527
  %v1096 = vmul.f32 %v527, %v1095
  %v1097 = vsub.f32 1.0, %v1096
  %v1098 = vmul.f32 %v1095, %v1097
  %v1099 = vadd.f32 %v1095, %v1098
  %vm1100 = vweird.f32 %v527
  %vm1101 = vweird.f32 %v1095
  %vm1102 = vmor %vm1100, %vm1101
  %v1103 = vsel %vm1102, %v1095, %v1099
  %v1104 = vand.u32 2147483647, %v527
  %vm1105 = vcmp.eq.f32.partialorder %v1104, 8.507059e+37
  %v1106 = vand.u32 %v527, 2147483648
  %v1107 = vor.u32 1.1754944e-38, %v1106
  %v1108 = vsel %vm1105, %v1107, %v1103
  %v1109 = vmul.f32 1.0, %v1108
  %v1110 = vrcp.pop %v528
  %v1111 = vmul.f32 %v528, %v1110
  %v1112 = vsub.f32 1.0, %v1111
  %v1113 = vmul.f32 %v1110, %v1112
  %v1114 = vadd.f32 %v1110, %v1113
  %vm1115 = vweird.f32 %v528
  %vm1116 = vweird.f32 %v1110
  %vm1117 = vmor %vm1115, %vm1116
  %v1118 = vsel %vm1117, %v1110, %v1114
  %v1119 = vand.u32 2147483647, %v528
  %vm1120 = vcmp.eq.f32.partialorder %v1119, 8.507059e+37
  %v1121 = vand.u32 %v528, 2147483648
  %v1122 = vor.u32 1.1754944e-38, %v1121
  %v1123 = vsel %vm1120, %v1122, %v1118
  %v1124 = vmul.f32 1.0, %v1123
  %v1125 = vrcp.pop %v529
  %v1126 = vmul.f32 %v529, %v1125
  %v1127 = vsub.f32 1.0, %v1126
  %v1128 = vmul.f32 %v1125, %v1127
  %v1129 = vadd.f32 %v1125, %v1128
  %vm1130 = vweird.f32 %v529
  %vm1131 = vweird.f32 %v1125
  %vm1132 = vmor %vm1130, %vm1131
  %v1133 = vsel %vm1132, %v1125, %v1129
  %v1134 = vand.u32 2147483647, %v529
  %vm1135 = vcmp.eq.f32.partialorder %v1134, 8.507059e+37
  %v1136 = vand.u32 %v529, 2147483648
  %v1137 = vor.u32 1.1754944e-38, %v1136
  %v1138 = vsel %vm1135, %v1137, %v1133
  %v1139 = vmul.f32 1.0, %v1138
  %v1140 = vrcp.pop %v530
  %v1141 = vmul.f32 %v530, %v1140
  %v1142 = vsub.f32 1.0, %v1141
  %v1143 = vmul.f32 %v1140, %v1142
  %v1144 = vadd.f32 %v1140, %v1143
  %vm1145 = vweird.f32 %v530
  %vm1146 = vweird.f32 %v1140
  %vm1147 = vmor %vm1145, %vm1146
  %v1148 = vsel %vm1147, %v1140, %v1144
  %v1149 = vand.u32 2147483647, %v530
  %vm1150 = vcmp.eq.f32.partialorder %v1149, 8.507059e+37
  %v1151 = vand.u32 %v530, 2147483648
  %v1152 = vor.u32 1.1754944e-38, %v1151
  %v1153 = vsel %vm1150, %v1152, %v1148
  %v1154 = vmul.f32 1.0, %v1153
  %v1155 = vrcp.pop %v531
  %v1156 = vmul.f32 %v531, %v1155
  %v1157 = vsub.f32 1.0, %v1156
  %v1158 = vmul.f32 %v1155, %v1157
  %v1159 = vadd.f32 %v1155, %v1158
  %vm1160 = vweird.f32 %v531
  %vm1161 = vweird.f32 %v1155
  %vm1162 = vmor %vm1160, %vm1161
  %v1163 = vsel %vm1162, %v1155, %v1159
  %v1164 = vand.u32 2147483647, %v531
  %vm1165 = vcmp.eq.f32.partialorder %v1164, 8.507059e+37
  %v1166 = vand.u32 %v531, 2147483648
  %v1167 = vor.u32 1.1754944e-38, %v1166
  %v1168 = vsel %vm1165, %v1167, %v1163
  %v1169 = vmul.f32 1.0, %v1168
  %v1170 = vrcp.pop %v532
  %v1171 = vmul.f32 %v532, %v1170
  %v1172 = vsub.f32 1.0, %v1171
  %v1173 = vmul.f32 %v1170, %v1172
  %v1174 = vadd.f32 %v1170, %v1173
  %vm1175 = vweird.f32 %v532
  %vm1176 = vweird.f32 %v1170
  %vm1177 = vmor %vm1175, %vm1176
  %v1178 = vsel %vm1177, %v1170, %v1174
  %v1179 = vand.u32 2147483647, %v532
  %vm1180 = vcmp.eq.f32.partialorder %v1179, 8.507059e+37
  %v1181 = vand.u32 %v532, 2147483648
  %v1182 = vor.u32 1.1754944e-38, %v1181
  %v1183 = vsel %vm1180, %v1182, %v1178
  %v1184 = vmul.f32 1.0, %v1183
  %v1185 = vrcp.pop %v533
  %v1186 = vmul.f32 %v533, %v1185
  %v1187 = vsub.f32 1.0, %v1186
  %v1188 = vmul.f32 %v1185, %v1187
  %v1189 = vadd.f32 %v1185, %v1188
  %vm1190 = vweird.f32 %v533
  %vm1191 = vweird.f32 %v1185
  %vm1192 = vmor %vm1190, %vm1191
  %v1193 = vsel %vm1192, %v1185, %v1189
  %v1194 = vand.u32 2147483647, %v533
  %vm1195 = vcmp.eq.f32.partialorder %v1194, 8.507059e+37
  %v1196 = vand.u32 %v533, 2147483648
  %v1197 = vor.u32 1.1754944e-38, %v1196
  %v1198 = vsel %vm1195, %v1197, %v1193
  %v1199 = vmul.f32 1.0, %v1198
  %v1200 = vrcp.pop %v534
  %v1201 = vmul.f32 %v534, %v1200
  %v1202 = vsub.f32 1.0, %v1201
  %v1203 = vmul.f32 %v1200, %v1202
  %v1204 = vadd.f32 %v1200, %v1203
  %vm1205 = vweird.f32 %v534
  %vm1206 = vweird.f32 %v1200
  %vm1207 = vmor %vm1205, %vm1206
  %v1208 = vsel %vm1207, %v1200, %v1204
  %v1209 = vand.u32 2147483647, %v534
  %vm1210 = vcmp.eq.f32.partialorder %v1209, 8.507059e+37
  %v1211 = vand.u32 %v534, 2147483648
  %v1212 = vor.u32 1.1754944e-38, %v1211
  %v1213 = vsel %vm1210, %v1212, %v1208
  %v1214 = vmul.f32 1.0, %v1213
  %v1215 = vrcp.pop %v535
  %v1216 = vmul.f32 %v535, %v1215
  %v1217 = vsub.f32 1.0, %v1216
  %v1218 = vmul.f32 %v1215, %v1217
  %v1219 = vadd.f32 %v1215, %v1218
  %vm1220 = vweird.f32 %v535
  %vm1221 = vweird.f32 %v1215
  %vm1222 = vmor %vm1220, %vm1221
  %v1223 = vsel %vm1222, %v1215, %v1219
  %v1224 = vand.u32 2147483647, %v535
  %vm1225 = vcmp.eq.f32.partialorder %v1224, 8.507059e+37
  %v1226 = vand.u32 %v535, 2147483648
  %v1227 = vor.u32 1.1754944e-38, %v1226
  %v1228 = vsel %vm1225, %v1227, %v1223
  %v1229 = vmul.f32 1.0, %v1228
  %v1230 = vrcp.pop %v536
  %v1231 = vmul.f32 %v536, %v1230
  %v1232 = vsub.f32 1.0, %v1231
  %v1233 = vmul.f32 %v1230, %v1232
  %v1234 = vadd.f32 %v1230, %v1233
  %vm1235 = vweird.f32 %v536
  %vm1236 = vweird.f32 %v1230
  %vm1237 = vmor %vm1235, %vm1236
  %v1238 = vsel %vm1237, %v1230, %v1234
  %v1239 = vand.u32 2147483647, %v536
  %vm1240 = vcmp.eq.f32.partialorder %v1239, 8.507059e+37
  %v1241 = vand.u32 %v536, 2147483648
  %v1242 = vor.u32 1.1754944e-38, %v1241
  %v1243 = vsel %vm1240, %v1242, %v1238
  %v1244 = vmul.f32 1.0, %v1243
  %v1245 = vrcp.pop %v537
  %v1246 = vmul.f32 %v537, %v1245
  %v1247 = vsub.f32 1.0, %v1246
  %v1248 = vmul.f32 %v1245, %v1247
  %v1249 = vadd.f32 %v1245, %v1248
  %vm1250 = vweird.f32 %v537
  %vm1251 = vweird.f32 %v1245
  %vm1252 = vmor %vm1250, %vm1251
  %v1253 = vsel %vm1252, %v1245, %v1249
  %v1254 = vand.u32 2147483647, %v537
  %vm1255 = vcmp.eq.f32.partialorder %v1254, 8.507059e+37
  %v1256 = vand.u32 %v537, 2147483648
  %v1257 = vor.u32 1.1754944e-38, %v1256
  %v1258 = vsel %vm1255, %v1257, %v1253
  %v1259 = vmul.f32 1.0, %v1258
  %v1260 = vrcp.pop %v538
  %v1261 = vmul.f32 %v538, %v1260
  %v1262 = vsub.f32 1.0, %v1261
  %v1263 = vmul.f32 %v1260, %v1262
  %v1264 = vadd.f32 %v1260, %v1263
  %vm1265 = vweird.f32 %v538
  %vm1266 = vweird.f32 %v1260
  %vm1267 = vmor %vm1265, %vm1266
  %v1268 = vsel %vm1267, %v1260, %v1264
  %v1269 = vand.u32 2147483647, %v538
  %vm1270 = vcmp.eq.f32.partialorder %v1269, 8.507059e+37
  %v1271 = vand.u32 %v538, 2147483648
  %v1272 = vor.u32 1.1754944e-38, %v1271
  %v1273 = vsel %vm1270, %v1272, %v1268
  %v1274 = vmul.f32 1.0, %v1273
  %v1275 = vrcp.pop %v539
  %v1276 = vmul.f32 %v539, %v1275
  %v1277 = vsub.f32 1.0, %v1276
  %v1278 = vmul.f32 %v1275, %v1277
  %v1279 = vadd.f32 %v1275, %v1278
  %vm1280 = vweird.f32 %v539
  %vm1281 = vweird.f32 %v1275
  %vm1282 = vmor %vm1280, %vm1281
  %v1283 = vsel %vm1282, %v1275, %v1279
  %v1284 = vand.u32 2147483647, %v539
  %vm1285 = vcmp.eq.f32.partialorder %v1284, 8.507059e+37
  %v1286 = vand.u32 %v539, 2147483648
  %v1287 = vor.u32 1.1754944e-38, %v1286
  %v1288 = vsel %vm1285, %v1287, %v1283
  %v1289 = vmul.f32 1.0, %v1288
  %v1290 = vrcp.pop %v540
  %v1291 = vmul.f32 %v540, %v1290
  %v1292 = vsub.f32 1.0, %v1291
  %v1293 = vmul.f32 %v1290, %v1292
  %v1294 = vadd.f32 %v1290, %v1293
  %vm1295 = vweird.f32 %v540
  %vm1296 = vweird.f32 %v1290
  %vm1297 = vmor %vm1295, %vm1296
  %v1298 = vsel %vm1297, %v1290, %v1294
  %v1299 = vand.u32 2147483647, %v540
  %vm1300 = vcmp.eq.f32.partialorder %v1299, 8.507059e+37
  %v1301 = vand.u32 %v540, 2147483648
  %v1302 = vor.u32 1.1754944e-38, %v1301
  %v1303 = vsel %vm1300, %v1302, %v1298
  %v1304 = vmul.f32 1.0, %v1303
  %v1305 = vrcp.pop %v541
  %v1306 = vmul.f32 %v541, %v1305
  %v1307 = vsub.f32 1.0, %v1306
  %v1308 = vmul.f32 %v1305, %v1307
  %v1309 = vadd.f32 %v1305, %v1308
  %vm1310 = vweird.f32 %v541
  %vm1311 = vweird.f32 %v1305
  %vm1312 = vmor %vm1310, %vm1311
  %v1313 = vsel %vm1312, %v1305, %v1309
  %v1314 = vand.u32 2147483647, %v541
  %vm1315 = vcmp.eq.f32.partialorder %v1314, 8.507059e+37
  %v1316 = vand.u32 %v541, 2147483648
  %v1317 = vor.u32 1.1754944e-38, %v1316
  %v1318 = vsel %vm1315, %v1317, %v1313
  %v1319 = vmul.f32 1.0, %v1318
  %v1320 = vrcp.pop %v542
  %v1321 = vmul.f32 %v542, %v1320
  %v1322 = vsub.f32 1.0, %v1321
  %v1323 = vmul.f32 %v1320, %v1322
  %v1324 = vadd.f32 %v1320, %v1323
  %vm1325 = vweird.f32 %v542
  %vm1326 = vweird.f32 %v1320
  %vm1327 = vmor %vm1325, %vm1326
  %v1328 = vsel %vm1327, %v1320, %v1324
  %v1329 = vand.u32 2147483647, %v542
  %vm1330 = vcmp.eq.f32.partialorder %v1329, 8.507059e+37
  %v1331 = vand.u32 %v542, 2147483648
  %v1332 = vor.u32 1.1754944e-38, %v1331
  %v1333 = vsel %vm1330, %v1332, %v1328
  %v1334 = vmul.f32 1.0, %v1333
  %v1335 = vrcp.pop %v543
  %v1336 = vmul.f32 %v543, %v1335
  %v1337 = vsub.f32 1.0, %v1336
  %v1338 = vmul.f32 %v1335, %v1337
  %v1339 = vadd.f32 %v1335, %v1338
  %vm1340 = vweird.f32 %v543
  %vm1341 = vweird.f32 %v1335
  %vm1342 = vmor %vm1340, %vm1341
  %v1343 = vsel %vm1342, %v1335, %v1339
  %v1344 = vand.u32 2147483647, %v543
  %vm1345 = vcmp.eq.f32.partialorder %v1344, 8.507059e+37
  %v1346 = vand.u32 %v543, 2147483648
  %v1347 = vor.u32 1.1754944e-38, %v1346
  %v1348 = vsel %vm1345, %v1347, %v1343
  %v1349 = vmul.f32 1.0, %v1348
  %v1350 = vrcp.pop %v544
  %v1351 = vmul.f32 %v544, %v1350
  %v1352 = vsub.f32 1.0, %v1351
  %v1353 = vmul.f32 %v1350, %v1352
  %v1354 = vadd.f32 %v1350, %v1353
  %vm1355 = vweird.f32 %v544
  %vm1356 = vweird.f32 %v1350
  %vm1357 = vmor %vm1355, %vm1356
  %v1358 = vsel %vm1357, %v1350, %v1354
  %v1359 = vand.u32 2147483647, %v544
  %vm1360 = vcmp.eq.f32.partialorder %v1359, 8.507059e+37
  %v1361 = vand.u32 %v544, 2147483648
  %v1362 = vor.u32 1.1754944e-38, %v1361
  %v1363 = vsel %vm1360, %v1362, %v1358
  %v1364 = vmul.f32 1.0, %v1363
  %v1365 = vrcp.pop %v545
  %v1366 = vmul.f32 %v545, %v1365
  %v1367 = vsub.f32 1.0, %v1366
  %v1368 = vmul.f32 %v1365, %v1367
  %v1369 = vadd.f32 %v1365, %v1368
  %vm1370 = vweird.f32 %v545
  %vm1371 = vweird.f32 %v1365
  %vm1372 = vmor %vm1370, %vm1371
  %v1373 = vsel %vm1372, %v1365, %v1369
  %v1374 = vand.u32 2147483647, %v545
  %vm1375 = vcmp.eq.f32.partialorder %v1374, 8.507059e+37
  %v1376 = vand.u32 %v545, 2147483648
  %v1377 = vor.u32 1.1754944e-38, %v1376
  %v1378 = vsel %vm1375, %v1377, %v1373
  %v1379 = vmul.f32 1.0, %v1378
  %v1380 = vrcp.pop %v546
  %v1381 = vmul.f32 %v546, %v1380
  %v1382 = vsub.f32 1.0, %v1381
  %v1383 = vmul.f32 %v1380, %v1382
  %v1384 = vadd.f32 %v1380, %v1383
  %vm1385 = vweird.f32 %v546
  %vm1386 = vweird.f32 %v1380
  %vm1387 = vmor %vm1385, %vm1386
  %v1388 = vsel %vm1387, %v1380, %v1384
  %v1389 = vand.u32 2147483647, %v546
  %vm1390 = vcmp.eq.f32.partialorder %v1389, 8.507059e+37
  %v1391 = vand.u32 %v546, 2147483648
  %v1392 = vor.u32 1.1754944e-38, %v1391
  %v1393 = vsel %vm1390, %v1392, %v1388
  %v1394 = vmul.f32 1.0, %v1393
  %v1395 = vrcp.pop %v547
  %v1396 = vmul.f32 %v547, %v1395
  %v1397 = vsub.f32 1.0, %v1396
  %v1398 = vmul.f32 %v1395, %v1397
  %v1399 = vadd.f32 %v1395, %v1398
  %vm1400 = vweird.f32 %v547
  %vm1401 = vweird.f32 %v1395
  %vm1402 = vmor %vm1400, %vm1401
  %v1403 = vsel %vm1402, %v1395, %v1399
  %v1404 = vand.u32 2147483647, %v547
  %vm1405 = vcmp.eq.f32.partialorder %v1404, 8.507059e+37
  %v1406 = vand.u32 %v547, 2147483648
  %v1407 = vor.u32 1.1754944e-38, %v1406
  %v1408 = vsel %vm1405, %v1407, %v1403
  %v1409 = vmul.f32 1.0, %v1408
  %v1410 = vrcp.pop %v548
  %v1411 = vmul.f32 %v548, %v1410
  %v1412 = vsub.f32 1.0, %v1411
  %v1413 = vmul.f32 %v1410, %v1412
  %v1414 = vadd.f32 %v1410, %v1413
  %vm1415 = vweird.f32 %v548
  %vm1416 = vweird.f32 %v1410
  %vm1417 = vmor %vm1415, %vm1416
  %v1418 = vsel %vm1417, %v1410, %v1414
  %v1419 = vand.u32 2147483647, %v548
  %vm1420 = vcmp.eq.f32.partialorder %v1419, 8.507059e+37
  %v1421 = vand.u32 %v548, 2147483648
  %v1422 = vor.u32 1.1754944e-38, %v1421
  %v1423 = vsel %vm1420, %v1422, %v1418
  %v1424 = vmul.f32 1.0, %v1423
  %v1425 = vrcp.pop %v549
  %v1426 = vmul.f32 %v549, %v1425
  %v1427 = vsub.f32 1.0, %v1426
  %v1428 = vmul.f32 %v1425, %v1427
  %v1429 = vadd.f32 %v1425, %v1428
  %vm1430 = vweird.f32 %v549
  %vm1431 = vweird.f32 %v1425
  %vm1432 = vmor %vm1430, %vm1431
  %v1433 = vsel %vm1432, %v1425, %v1429
  %v1434 = vand.u32 2147483647, %v549
  %vm1435 = vcmp.eq.f32.partialorder %v1434, 8.507059e+37
  %v1436 = vand.u32 %v549, 2147483648
  %v1437 = vor.u32 1.1754944e-38, %v1436
  %v1438 = vsel %vm1435, %v1437, %v1433
  %v1439 = vmul.f32 1.0, %v1438
  %v1440 = vrcp.pop %v550
  %v1441 = vmul.f32 %v550, %v1440
  %v1442 = vsub.f32 1.0, %v1441
  %v1443 = vmul.f32 %v1440, %v1442
  %v1444 = vadd.f32 %v1440, %v1443
  %vm1445 = vweird.f32 %v550
  %vm1446 = vweird.f32 %v1440
  %vm1447 = vmor %vm1445, %vm1446
  %v1448 = vsel %vm1447, %v1440, %v1444
  %v1449 = vand.u32 2147483647, %v550
  %vm1450 = vcmp.eq.f32.partialorder %v1449, 8.507059e+37
  %v1451 = vand.u32 %v550, 2147483648
  %v1452 = vor.u32 1.1754944e-38, %v1451
  %v1453 = vsel %vm1450, %v1452, %v1448
  %v1454 = vmul.f32 1.0, %v1453
  %v1455 = vrcp.pop %v551
  %v1456 = vmul.f32 %v551, %v1455
  %v1457 = vsub.f32 1.0, %v1456
  %v1458 = vmul.f32 %v1455, %v1457
  %v1459 = vadd.f32 %v1455, %v1458
  %vm1460 = vweird.f32 %v551
  %vm1461 = vweird.f32 %v1455
  %vm1462 = vmor %vm1460, %vm1461
  %v1463 = vsel %vm1462, %v1455, %v1459
  %v1464 = vand.u32 2147483647, %v551
  %vm1465 = vcmp.eq.f32.partialorder %v1464, 8.507059e+37
  %v1466 = vand.u32 %v551, 2147483648
  %v1467 = vor.u32 1.1754944e-38, %v1466
  %v1468 = vsel %vm1465, %v1467, %v1463
  %v1469 = vmul.f32 1.0, %v1468
  %v1470 = vrcp.pop %v552
  %v1471 = vmul.f32 %v552, %v1470
  %v1472 = vsub.f32 1.0, %v1471
  %v1473 = vmul.f32 %v1470, %v1472
  %v1474 = vadd.f32 %v1470, %v1473
  %vm1475 = vweird.f32 %v552
  %vm1476 = vweird.f32 %v1470
  %vm1477 = vmor %vm1475, %vm1476
  %v1478 = vsel %vm1477, %v1470, %v1474
  %v1479 = vand.u32 2147483647, %v552
  %vm1480 = vcmp.eq.f32.partialorder %v1479, 8.507059e+37
  %v1481 = vand.u32 %v552, 2147483648
  %v1482 = vor.u32 1.1754944e-38, %v1481
  %v1483 = vsel %vm1480, %v1482, %v1478
  %v1484 = vmul.f32 1.0, %v1483
  %v1485 = vrcp.pop %v553
  %v1486 = vmul.f32 %v553, %v1485
  %v1487 = vsub.f32 1.0, %v1486
  %v1488 = vmul.f32 %v1485, %v1487
  %v1489 = vadd.f32 %v1485, %v1488
  %vm1490 = vweird.f32 %v553
  %vm1491 = vweird.f32 %v1485
  %vm1492 = vmor %vm1490, %vm1491
  %v1493 = vsel %vm1492, %v1485, %v1489
  %v1494 = vand.u32 2147483647, %v553
  %vm1495 = vcmp.eq.f32.partialorder %v1494, 8.507059e+37
  %v1496 = vand.u32 %v553, 2147483648
  %v1497 = vor.u32 1.1754944e-38, %v1496
  %v1498 = vsel %vm1495, %v1497, %v1493
  %v1499 = vmul.f32 1.0, %v1498
  %v1500 = vrcp.pop %v554
  %v1501 = vmul.f32 %v554, %v1500
  %v1502 = vsub.f32 1.0, %v1501
  %v1503 = vmul.f32 %v1500, %v1502
  %v1504 = vadd.f32 %v1500, %v1503
  %vm1505 = vweird.f32 %v554
  %vm1506 = vweird.f32 %v1500
  %vm1507 = vmor %vm1505, %vm1506
  %v1508 = vsel %vm1507, %v1500, %v1504
  %v1509 = vand.u32 2147483647, %v554
  %vm1510 = vcmp.eq.f32.partialorder %v1509, 8.507059e+37
  %v1511 = vand.u32 %v554, 2147483648
  %v1512 = vor.u32 1.1754944e-38, %v1511
  %v1513 = vsel %vm1510, %v1512, %v1508
  %v1514 = vmul.f32 1.0, %v1513
  %v1515 = vrcp.pop %v555
  %v1516 = vmul.f32 %v555, %v1515
  %v1517 = vsub.f32 1.0, %v1516
  %v1518 = vmul.f32 %v1515, %v1517
  %v1519 = vadd.f32 %v1515, %v1518
  %vm1520 = vweird.f32 %v555
  %vm1521 = vweird.f32 %v1515
  %vm1522 = vmor %vm1520, %vm1521
  %v1523 = vsel %vm1522, %v1515, %v1519
  %v1524 = vand.u32 2147483647, %v555
  %vm1525 = vcmp.eq.f32.partialorder %v1524, 8.507059e+37
  %v1526 = vand.u32 %v555, 2147483648
  %v1527 = vor.u32 1.1754944e-38, %v1526
  %v1528 = vsel %vm1525, %v1527, %v1523
  %v1529 = vmul.f32 1.0, %v1528
  %v1530 = vrcp.pop %v556
  %v1531 = vmul.f32 %v556, %v1530
  %v1532 = vsub.f32 1.0, %v1531
  %v1533 = vmul.f32 %v1530, %v1532
  %v1534 = vadd.f32 %v1530, %v1533
  %vm1535 = vweird.f32 %v556
  %vm1536 = vweird.f32 %v1530
  %vm1537 = vmor %vm1535, %vm1536
  %v1538 = vsel %vm1537, %v1530, %v1534
  %v1539 = vand.u32 2147483647, %v556
  %vm1540 = vcmp.eq.f32.partialorder %v1539, 8.507059e+37
  %v1541 = vand.u32 %v556, 2147483648
  %v1542 = vor.u32 1.1754944e-38, %v1541
  %v1543 = vsel %vm1540, %v1542, %v1538
  %v1544 = vmul.f32 1.0, %v1543
  %v1545 = vrcp.pop %v557
  %v1546 = vmul.f32 %v557, %v1545
  %v1547 = vsub.f32 1.0, %v1546
  %v1548 = vmul.f32 %v1545, %v1547
  %v1549 = vadd.f32 %v1545, %v1548
  %vm1550 = vweird.f32 %v557
  %vm1551 = vweird.f32 %v1545
  %vm1552 = vmor %vm1550, %vm1551
  %v1553 = vsel %vm1552, %v1545, %v1549
  %v1554 = vand.u32 2147483647, %v557
  %vm1555 = vcmp.eq.f32.partialorder %v1554, 8.507059e+37
  %v1556 = vand.u32 %v557, 2147483648
  %v1557 = vor.u32 1.1754944e-38, %v1556
  %v1558 = vsel %vm1555, %v1557, %v1553
  %v1559 = vmul.f32 1.0, %v1558
  %v1560 = vrcp.pop %v558
  %v1561 = vmul.f32 %v558, %v1560
  %v1562 = vsub.f32 1.0, %v1561
  %v1563 = vmul.f32 %v1560, %v1562
  %v1564 = vadd.f32 %v1560, %v1563
  %vm1565 = vweird.f32 %v558
  %vm1566 = vweird.f32 %v1560
  %vm1567 = vmor %vm1565, %vm1566
  %v1568 = vsel %vm1567, %v1560, %v1564
  %v1569 = vand.u32 2147483647, %v558
  %vm1570 = vcmp.eq.f32.partialorder %v1569, 8.507059e+37
  %v1571 = vand.u32 %v558, 2147483648
  %v1572 = vor.u32 1.1754944e-38, %v1571
  %v1573 = vsel %vm1570, %v1572, %v1568
  %v1574 = vmul.f32 1.0, %v1573
  %v1575 = vrcp.pop %v559
  %v1576 = vmul.f32 %v559, %v1575
  %v1577 = vsub.f32 1.0, %v1576
  %v1578 = vmul.f32 %v1575, %v1577
  %v1579 = vadd.f32 %v1575, %v1578
  %vm1580 = vweird.f32 %v559
  %vm1581 = vweird.f32 %v1575
  %vm1582 = vmor %vm1580, %vm1581
  %v1583 = vsel %vm1582, %v1575, %v1579
  %v1584 = vand.u32 2147483647, %v559
  %vm1585 = vcmp.eq.f32.partialorder %v1584, 8.507059e+37
  %v1586 = vand.u32 %v559, 2147483648
  %v1587 = vor.u32 1.1754944e-38, %v1586
  %v1588 = vsel %vm1585, %v1587, %v1583
  %v1589 = vmul.f32 1.0, %v1588
  %v1590 = vrcp.pop %v560
  %v1591 = vmul.f32 %v560, %v1590
  %v1592 = vsub.f32 1.0, %v1591
  %v1593 = vmul.f32 %v1590, %v1592
  %v1594 = vadd.f32 %v1590, %v1593
  %vm1595 = vweird.f32 %v560
  %vm1596 = vweird.f32 %v1590
  %vm1597 = vmor %vm1595, %vm1596
  %v1598 = vsel %vm1597, %v1590, %v1594
  %v1599 = vand.u32 2147483647, %v560
  %vm1600 = vcmp.eq.f32.partialorder %v1599, 8.507059e+37
  %v1601 = vand.u32 %v560, 2147483648
  %v1602 = vor.u32 1.1754944e-38, %v1601
  %v1603 = vsel %vm1600, %v1602, %v1598
  %v1604 = vmul.f32 1.0, %v1603
  %v1605 = vrcp.pop %v561
  %v1606 = vmul.f32 %v561, %v1605
  %v1607 = vsub.f32 1.0, %v1606
  %v1608 = vmul.f32 %v1605, %v1607
  %v1609 = vadd.f32 %v1605, %v1608
  %vm1610 = vweird.f32 %v561
  %vm1611 = vweird.f32 %v1605
  %vm1612 = vmor %vm1610, %vm1611
  %v1613 = vsel %vm1612, %v1605, %v1609
  %v1614 = vand.u32 2147483647, %v561
  %vm1615 = vcmp.eq.f32.partialorder %v1614, 8.507059e+37
  %v1616 = vand.u32 %v561, 2147483648
  %v1617 = vor.u32 1.1754944e-38, %v1616
  %v1618 = vsel %vm1615, %v1617, %v1613
  %v1619 = vmul.f32 1.0, %v1618
  %v1620 = vrcp.pop %v562
  %v1621 = vmul.f32 %v562, %v1620
  %v1622 = vsub.f32 1.0, %v1621
  %v1623 = vmul.f32 %v1620, %v1622
  %v1624 = vadd.f32 %v1620, %v1623
  %vm1625 = vweird.f32 %v562
  %vm1626 = vweird.f32 %v1620
  %vm1627 = vmor %vm1625, %vm1626
  %v1628 = vsel %vm1627, %v1620, %v1624
  %v1629 = vand.u32 2147483647, %v562
  %vm1630 = vcmp.eq.f32.partialorder %v1629, 8.507059e+37
  %v1631 = vand.u32 %v562, 2147483648
  %v1632 = vor.u32 1.1754944e-38, %v1631
  %v1633 = vsel %vm1630, %v1632, %v1628
  %v1634 = vmul.f32 1.0, %v1633
  %v1635 = vrcp.pop %v563
  %v1636 = vmul.f32 %v563, %v1635
  %v1637 = vsub.f32 1.0, %v1636
  %v1638 = vmul.f32 %v1635, %v1637
  %v1639 = vadd.f32 %v1635, %v1638
  %vm1640 = vweird.f32 %v563
  %vm1641 = vweird.f32 %v1635
  %vm1642 = vmor %vm1640, %vm1641
  %v1643 = vsel %vm1642, %v1635, %v1639
  %v1644 = vand.u32 2147483647, %v563
  %vm1645 = vcmp.eq.f32.partialorder %v1644, 8.507059e+37
  %v1646 = vand.u32 %v563, 2147483648
  %v1647 = vor.u32 1.1754944e-38, %v1646
  %v1648 = vsel %vm1645, %v1647, %v1643
  %v1649 = vmul.f32 1.0, %v1648
  %v1650 = vrcp.pop %v564
  %v1651 = vmul.f32 %v564, %v1650
  %v1652 = vsub.f32 1.0, %v1651
  %v1653 = vmul.f32 %v1650, %v1652
  %v1654 = vadd.f32 %v1650, %v1653
  %vm1655 = vweird.f32 %v564
  %vm1656 = vweird.f32 %v1650
  %vm1657 = vmor %vm1655, %vm1656
  %v1658 = vsel %vm1657, %v1650, %v1654
  %v1659 = vand.u32 2147483647, %v564
  %vm1660 = vcmp.eq.f32.partialorder %v1659, 8.507059e+37
  %v1661 = vand.u32 %v564, 2147483648
  %v1662 = vor.u32 1.1754944e-38, %v1661
  %v1663 = vsel %vm1660, %v1662, %v1658
  %v1664 = vmul.f32 1.0, %v1663
  %v1665 = vrcp.pop %v565
  %v1666 = vmul.f32 %v565, %v1665
  %v1667 = vsub.f32 1.0, %v1666
  %v1668 = vmul.f32 %v1665, %v1667
  %v1669 = vadd.f32 %v1665, %v1668
  %vm1670 = vweird.f32 %v565
  %vm1671 = vweird.f32 %v1665
  %vm1672 = vmor %vm1670, %vm1671
  %v1673 = vsel %vm1672, %v1665, %v1669
  %v1674 = vand.u32 2147483647, %v565
  %vm1675 = vcmp.eq.f32.partialorder %v1674, 8.507059e+37
  %v1676 = vand.u32 %v565, 2147483648
  %v1677 = vor.u32 1.1754944e-38, %v1676
  %v1678 = vsel %vm1675, %v1677, %v1673
  %v1679 = vmul.f32 1.0, %v1678
  %v1680 = vrcp.pop %v566
  %v1681 = vmul.f32 %v566, %v1680
  %v1682 = vsub.f32 1.0, %v1681
  %v1683 = vmul.f32 %v1680, %v1682
  %v1684 = vadd.f32 %v1680, %v1683
  %vm1685 = vweird.f32 %v566
  %vm1686 = vweird.f32 %v1680
  %vm1687 = vmor %vm1685, %vm1686
  %v1688 = vsel %vm1687, %v1680, %v1684
  %v1689 = vand.u32 2147483647, %v566
  %vm1690 = vcmp.eq.f32.partialorder %v1689, 8.507059e+37
  %v1691 = vand.u32 %v566, 2147483648
  %v1692 = vor.u32 1.1754944e-38, %v1691
  %v1693 = vsel %vm1690, %v1692, %v1688
  %v1694 = vmul.f32 1.0, %v1693
  %v1695 = vrcp.pop %v567
  %v1696 = vmul.f32 %v567, %v1695
  %v1697 = vsub.f32 1.0, %v1696
  %v1698 = vmul.f32 %v1695, %v1697
  %v1699 = vadd.f32 %v1695, %v1698
  %vm1700 = vweird.f32 %v567
  %vm1701 = vweird.f32 %v1695
  %vm1702 = vmor %vm1700, %vm1701
  %v1703 = vsel %vm1702, %v1695, %v1699
  %v1704 = vand.u32 2147483647, %v567
  %vm1705 = vcmp.eq.f32.partialorder %v1704, 8.507059e+37
  %v1706 = vand.u32 %v567, 2147483648
  %v1707 = vor.u32 1.1754944e-38, %v1706
  %v1708 = vsel %vm1705, %v1707, %v1703
  %v1709 = vmul.f32 1.0, %v1708
  %v1710 = vrcp.pop %v568
  %v1711 = vmul.f32 %v568, %v1710
  %v1712 = vsub.f32 1.0, %v1711
  %v1713 = vmul.f32 %v1710, %v1712
  %v1714 = vadd.f32 %v1710, %v1713
  %vm1715 = vweird.f32 %v568
  %vm1716 = vweird.f32 %v1710
  %vm1717 = vmor %vm1715, %vm1716
  %v1718 = vsel %vm1717, %v1710, %v1714
  %v1719 = vand.u32 2147483647, %v568
  %vm1720 = vcmp.eq.f32.partialorder %v1719, 8.507059e+37
  %v1721 = vand.u32 %v568, 2147483648
  %v1722 = vor.u32 1.1754944e-38, %v1721
  %v1723 = vsel %vm1720, %v1722, %v1718
  %v1724 = vmul.f32 1.0, %v1723
  %v1725 = vrcp.pop %v569
  %v1726 = vmul.f32 %v569, %v1725
  %v1727 = vsub.f32 1.0, %v1726
  %v1728 = vmul.f32 %v1725, %v1727
  %v1729 = vadd.f32 %v1725, %v1728
  %vm1730 = vweird.f32 %v569
  %vm1731 = vweird.f32 %v1725
  %vm1732 = vmor %vm1730, %vm1731
  %v1733 = vsel %vm1732, %v1725, %v1729
  %v1734 = vand.u32 2147483647, %v569
  %vm1735 = vcmp.eq.f32.partialorder %v1734, 8.507059e+37
  %v1736 = vand.u32 %v569, 2147483648
  %v1737 = vor.u32 1.1754944e-38, %v1736
  %v1738 = vsel %vm1735, %v1737, %v1733
  %v1739 = vmul.f32 1.0, %v1738
  %v1740 = vrcp.pop %v570
  %v1741 = vmul.f32 %v570, %v1740
  %v1742 = vsub.f32 1.0, %v1741
  %v1743 = vmul.f32 %v1740, %v1742
  %v1744 = vadd.f32 %v1740, %v1743
  %vm1745 = vweird.f32 %v570
  %vm1746 = vweird.f32 %v1740
  %vm1747 = vmor %vm1745, %vm1746
  %v1748 = vsel %vm1747, %v1740, %v1744
  %v1749 = vand.u32 2147483647, %v570
  %vm1750 = vcmp.eq.f32.partialorder %v1749, 8.507059e+37
  %v1751 = vand.u32 %v570, 2147483648
  %v1752 = vor.u32 1.1754944e-38, %v1751
  %v1753 = vsel %vm1750, %v1752, %v1748
  %v1754 = vmul.f32 1.0, %v1753
  %v1755 = vrcp.pop %v571
  %v1756 = vmul.f32 %v571, %v1755
  %v1757 = vsub.f32 1.0, %v1756
  %v1758 = vmul.f32 %v1755, %v1757
  %v1759 = vadd.f32 %v1755, %v1758
  %vm1760 = vweird.f32 %v571
  %vm1761 = vweird.f32 %v1755
  %vm1762 = vmor %vm1760, %vm1761
  %v1763 = vsel %vm1762, %v1755, %v1759
  %v1764 = vand.u32 2147483647, %v571
  %vm1765 = vcmp.eq.f32.partialorder %v1764, 8.507059e+37
  %v1766 = vand.u32 %v571, 2147483648
  %v1767 = vor.u32 1.1754944e-38, %v1766
  %v1768 = vsel %vm1765, %v1767, %v1763
  %v1769 = vmul.f32 1.0, %v1768
  %v1770 = vrcp.pop %v572
  %v1771 = vmul.f32 %v572, %v1770
  %v1772 = vsub.f32 1.0, %v1771
  %v1773 = vmul.f32 %v1770, %v1772
  %v1774 = vadd.f32 %v1770, %v1773
  %vm1775 = vweird.f32 %v572
  %vm1776 = vweird.f32 %v1770
  %vm1777 = vmor %vm1775, %vm1776
  %v1778 = vsel %vm1777, %v1770, %v1774
  %v1779 = vand.u32 2147483647, %v572
  %vm1780 = vcmp.eq.f32.partialorder %v1779, 8.507059e+37
  %v1781 = vand.u32 %v572, 2147483648
  %v1782 = vor.u32 1.1754944e-38, %v1781
  %v1783 = vsel %vm1780, %v1782, %v1778
  %v1784 = vmul.f32 1.0, %v1783
  %v1785 = vrcp.pop %v573
  %v1786 = vmul.f32 %v573, %v1785
  %v1787 = vsub.f32 1.0, %v1786
  %v1788 = vmul.f32 %v1785, %v1787
  %v1789 = vadd.f32 %v1785, %v1788
  %vm1790 = vweird.f32 %v573
  %vm1791 = vweird.f32 %v1785
  %vm1792 = vmor %vm1790, %vm1791
  %v1793 = vsel %vm1792, %v1785, %v1789
  %v1794 = vand.u32 2147483647, %v573
  %vm1795 = vcmp.eq.f32.partialorder %v1794, 8.507059e+37
  %v1796 = vand.u32 %v573, 2147483648
  %v1797 = vor.u32 1.1754944e-38, %v1796
  %v1798 = vsel %vm1795, %v1797, %v1793
  %v1799 = vmul.f32 1.0, %v1798
  %v1800 = vrcp.pop %v574
  %v1801 = vmul.f32 %v574, %v1800
  %v1802 = vsub.f32 1.0, %v1801
  %v1803 = vmul.f32 %v1800, %v1802
  %v1804 = vadd.f32 %v1800, %v1803
  %vm1805 = vweird.f32 %v574
  %vm1806 = vweird.f32 %v1800
  %vm1807 = vmor %vm1805, %vm1806
  %v1808 = vsel %vm1807, %v1800, %v1804
  %v1809 = vand.u32 2147483647, %v574
  %vm1810 = vcmp.eq.f32.partialorder %v1809, 8.507059e+37
  %v1811 = vand.u32 %v574, 2147483648
  %v1812 = vor.u32 1.1754944e-38, %v1811
  %v1813 = vsel %vm1810, %v1812, %v1808
  %v1814 = vmul.f32 1.0, %v1813
  %v1815 = vrcp.pop %v575
  %v1816 = vmul.f32 %v575, %v1815
  %v1817 = vsub.f32 1.0, %v1816
  %v1818 = vmul.f32 %v1815, %v1817
  %v1819 = vadd.f32 %v1815, %v1818
  %vm1820 = vweird.f32 %v575
  %vm1821 = vweird.f32 %v1815
  %vm1822 = vmor %vm1820, %vm1821
  %v1823 = vsel %vm1822, %v1815, %v1819
  %v1824 = vand.u32 2147483647, %v575
  %vm1825 = vcmp.eq.f32.partialorder %v1824, 8.507059e+37
  %v1826 = vand.u32 %v575, 2147483648
  %v1827 = vor.u32 1.1754944e-38, %v1826
  %v1828 = vsel %vm1825, %v1827, %v1823
  %v1829 = vmul.f32 1.0, %v1828
  %v1830 = vrcp.pop %v576
  %v1831 = vmul.f32 %v576, %v1830
  %v1832 = vsub.f32 1.0, %v1831
  %v1833 = vmul.f32 %v1830, %v1832
  %v1834 = vadd.f32 %v1830, %v1833
  %vm1835 = vweird.f32 %v576
  %vm1836 = vweird.f32 %v1830
  %vm1837 = vmor %vm1835, %vm1836
  %v1838 = vsel %vm1837, %v1830, %v1834
  %v1839 = vand.u32 2147483647, %v576
  %vm1840 = vcmp.eq.f32.partialorder %v1839, 8.507059e+37
  %v1841 = vand.u32 %v576, 2147483648
  %v1842 = vor.u32 1.1754944e-38, %v1841
  %v1843 = vsel %vm1840, %v1842, %v1838
  %v1844 = vmul.f32 1.0, %v1843
  %v1845 = vrcp.pop %v577
  %v1846 = vmul.f32 %v577, %v1845
  %v1847 = vsub.f32 1.0, %v1846
  %v1848 = vmul.f32 %v1845, %v1847
  %v1849 = vadd.f32 %v1845, %v1848
  %vm1850 = vweird.f32 %v577
  %vm1851 = vweird.f32 %v1845
  %vm1852 = vmor %vm1850, %vm1851
  %v1853 = vsel %vm1852, %v1845, %v1849
  %v1854 = vand.u32 2147483647, %v577
  %vm1855 = vcmp.eq.f32.partialorder %v1854, 8.507059e+37
  %v1856 = vand.u32 %v577, 2147483648
  %v1857 = vor.u32 1.1754944e-38, %v1856
  %v1858 = vsel %vm1855, %v1857, %v1853
  %v1859 = vmul.f32 1.0, %v1858
  %v1860 = vrcp.pop %v578
  %v1861 = vmul.f32 %v578, %v1860
  %v1862 = vsub.f32 1.0, %v1861
  %v1863 = vmul.f32 %v1860, %v1862
  %v1864 = vadd.f32 %v1860, %v1863
  %vm1865 = vweird.f32 %v578
  %vm1866 = vweird.f32 %v1860
  %vm1867 = vmor %vm1865, %vm1866
  %v1868 = vsel %vm1867, %v1860, %v1864
  %v1869 = vand.u32 2147483647, %v578
  %vm1870 = vcmp.eq.f32.partialorder %v1869, 8.507059e+37
  %v1871 = vand.u32 %v578, 2147483648
  %v1872 = vor.u32 1.1754944e-38, %v1871
  %v1873 = vsel %vm1870, %v1872, %v1868
  %v1874 = vmul.f32 1.0, %v1873
  %v1875 = vrcp.pop %v579
  %v1876 = vmul.f32 %v579, %v1875
  %v1877 = vsub.f32 1.0, %v1876
  %v1878 = vmul.f32 %v1875, %v1877
  %v1879 = vadd.f32 %v1875, %v1878
  %vm1880 = vweird.f32 %v579
  %vm1881 = vweird.f32 %v1875
  %vm1882 = vmor %vm1880, %vm1881
  %v1883 = vsel %vm1882, %v1875, %v1879
  %v1884 = vand.u32 2147483647, %v579
  %vm1885 = vcmp.eq.f32.partialorder %v1884, 8.507059e+37
  %v1886 = vand.u32 %v579, 2147483648
  %v1887 = vor.u32 1.1754944e-38, %v1886
  %v1888 = vsel %vm1885, %v1887, %v1883
  %v1889 = vmul.f32 1.0, %v1888
  %v1890 = vrcp.pop %v580
  %v1891 = vmul.f32 %v580, %v1890
  %v1892 = vsub.f32 1.0, %v1891
  %v1893 = vmul.f32 %v1890, %v1892
  %v1894 = vadd.f32 %v1890, %v1893
  %vm1895 = vweird.f32 %v580
  %vm1896 = vweird.f32 %v1890
  %vm1897 = vmor %vm1895, %vm1896
  %v1898 = vsel %vm1897, %v1890, %v1894
  %v1899 = vand.u32 2147483647, %v580
  %vm1900 = vcmp.eq.f32.partialorder %v1899, 8.507059e+37
  %v1901 = vand.u32 %v580, 2147483648
  %v1902 = vor.u32 1.1754944e-38, %v1901
  %v1903 = vsel %vm1900, %v1902, %v1898
  %v1904 = vmul.f32 1.0, %v1903
  %v1905 = vrcp.pop %v581
  %v1906 = vmul.f32 %v581, %v1905
  %v1907 = vsub.f32 1.0, %v1906
  %v1908 = vmul.f32 %v1905, %v1907
  %v1909 = vadd.f32 %v1905, %v1908
  %vm1910 = vweird.f32 %v581
  %vm1911 = vweird.f32 %v1905
  %vm1912 = vmor %vm1910, %vm1911
  %v1913 = vsel %vm1912, %v1905, %v1909
  %v1914 = vand.u32 2147483647, %v581
  %vm1915 = vcmp.eq.f32.partialorder %v1914, 8.507059e+37
  %v1916 = vand.u32 %v581, 2147483648
  %v1917 = vor.u32 1.1754944e-38, %v1916
  %v1918 = vsel %vm1915, %v1917, %v1913
  %v1919 = vmul.f32 1.0, %v1918
  %v1920 = vrcp.pop %v582
  %v1921 = vmul.f32 %v582, %v1920
  %v1922 = vsub.f32 1.0, %v1921
  %v1923 = vmul.f32 %v1920, %v1922
  %v1924 = vadd.f32 %v1920, %v1923
  %vm1925 = vweird.f32 %v582
  %vm1926 = vweird.f32 %v1920
  %vm1927 = vmor %vm1925, %vm1926
  %v1928 = vsel %vm1927, %v1920, %v1924
  %v1929 = vand.u32 2147483647, %v582
  %vm1930 = vcmp.eq.f32.partialorder %v1929, 8.507059e+37
  %v1931 = vand.u32 %v582, 2147483648
  %v1932 = vor.u32 1.1754944e-38, %v1931
  %v1933 = vsel %vm1930, %v1932, %v1928
  %v1934 = vmul.f32 1.0, %v1933
  %v1935 = vrcp.pop %v583
  %v1936 = vmul.f32 %v583, %v1935
  %v1937 = vsub.f32 1.0, %v1936
  %v1938 = vmul.f32 %v1935, %v1937
  %v1939 = vadd.f32 %v1935, %v1938
  %vm1940 = vweird.f32 %v583
  %vm1941 = vweird.f32 %v1935
  %vm1942 = vmor %vm1940, %vm1941
  %v1943 = vsel %vm1942, %v1935, %v1939
  %v1944 = vand.u32 2147483647, %v583
  %vm1945 = vcmp.eq.f32.partialorder %v1944, 8.507059e+37
  %v1946 = vand.u32 %v583, 2147483648
  %v1947 = vor.u32 1.1754944e-38, %v1946
  %v1948 = vsel %vm1945, %v1947, %v1943
  %v1949 = vmul.f32 1.0, %v1948
  %v1950 = vrcp.pop %v584
  %v1951 = vmul.f32 %v584, %v1950
  %v1952 = vsub.f32 1.0, %v1951
  %v1953 = vmul.f32 %v1950, %v1952
  %v1954 = vadd.f32 %v1950, %v1953
  %vm1955 = vweird.f32 %v584
  %vm1956 = vweird.f32 %v1950
  %vm1957 = vmor %vm1955, %vm1956
  %v1958 = vsel %vm1957, %v1950, %v1954
  %v1959 = vand.u32 2147483647, %v584
  %vm1960 = vcmp.eq.f32.partialorder %v1959, 8.507059e+37
  %v1961 = vand.u32 %v584, 2147483648
  %v1962 = vor.u32 1.1754944e-38, %v1961
  %v1963 = vsel %vm1960, %v1962, %v1958
  %v1964 = vmul.f32 1.0, %v1963
  %v1965 = vrcp.pop %v585
  %v1966 = vmul.f32 %v585, %v1965
  %v1967 = vsub.f32 1.0, %v1966
  %v1968 = vmul.f32 %v1965, %v1967
  %v1969 = vadd.f32 %v1965, %v1968
  %vm1970 = vweird.f32 %v585
  %vm1971 = vweird.f32 %v1965
  %vm1972 = vmor %vm1970, %vm1971
  %v1973 = vsel %vm1972, %v1965, %v1969
  %v1974 = vand.u32 2147483647, %v585
  %vm1975 = vcmp.eq.f32.partialorder %v1974, 8.507059e+37
  %v1976 = vand.u32 %v585, 2147483648
  %v1977 = vor.u32 1.1754944e-38, %v1976
  %v1978 = vsel %vm1975, %v1977, %v1973
  %v1979 = vmul.f32 1.0, %v1978
  %v1980 = vrcp.pop %v586
  %v1981 = vmul.f32 %v586, %v1980
  %v1982 = vsub.f32 1.0, %v1981
  %v1983 = vmul.f32 %v1980, %v1982
  %v1984 = vadd.f32 %v1980, %v1983
  %vm1985 = vweird.f32 %v586
  %vm1986 = vweird.f32 %v1980
  %vm1987 = vmor %vm1985, %vm1986
  %v1988 = vsel %vm1987, %v1980, %v1984
  %v1989 = vand.u32 2147483647, %v586
  %vm1990 = vcmp.eq.f32.partialorder %v1989, 8.507059e+37
  %v1991 = vand.u32 %v586, 2147483648
  %v1992 = vor.u32 1.1754944e-38, %v1991
  %v1993 = vsel %vm1990, %v1992, %v1988
  %v1994 = vmul.f32 1.0, %v1993
  %v1995 = vrcp.pop %v587
  %v1996 = vmul.f32 %v587, %v1995
  %v1997 = vsub.f32 1.0, %v1996
  %v1998 = vmul.f32 %v1995, %v1997
  %v1999 = vadd.f32 %v1995, %v1998
  %vm2000 = vweird.f32 %v587
  %vm2001 = vweird.f32 %v1995
  %vm2002 = vmor %vm2000, %vm2001
  %v2003 = vsel %vm2002, %v1995, %v1999
  %v2004 = vand.u32 2147483647, %v587
  %vm2005 = vcmp.eq.f32.partialorder %v2004, 8.507059e+37
  %v2006 = vand.u32 %v587, 2147483648
  %v2007 = vor.u32 1.1754944e-38, %v2006
  %v2008 = vsel %vm2005, %v2007, %v2003
  %v2009 = vmul.f32 1.0, %v2008
  %v2010 = vrcp.pop %v588
  %v2011 = vmul.f32 %v588, %v2010
  %v2012 = vsub.f32 1.0, %v2011
  %v2013 = vmul.f32 %v2010, %v2012
  %v2014 = vadd.f32 %v2010, %v2013
  %vm2015 = vweird.f32 %v588
  %vm2016 = vweird.f32 %v2010
  %vm2017 = vmor %vm2015, %vm2016
  %v2018 = vsel %vm2017, %v2010, %v2014
  %v2019 = vand.u32 2147483647, %v588
  %vm2020 = vcmp.eq.f32.partialorder %v2019, 8.507059e+37
  %v2021 = vand.u32 %v588, 2147483648
  %v2022 = vor.u32 1.1754944e-38, %v2021
  %v2023 = vsel %vm2020, %v2022, %v2018
  %v2024 = vmul.f32 1.0, %v2023
  %v2025 = vrcp.pop %v589
  %v2026 = vmul.f32 %v589, %v2025
  %v2027 = vsub.f32 1.0, %v2026
  %v2028 = vmul.f32 %v2025, %v2027
  %v2029 = vadd.f32 %v2025, %v2028
  %vm2030 = vweird.f32 %v589
  %vm2031 = vweird.f32 %v2025
  %vm2032 = vmor %vm2030, %vm2031
  %v2033 = vsel %vm2032, %v2025, %v2029
  %v2034 = vand.u32 2147483647, %v589
  %vm2035 = vcmp.eq.f32.partialorder %v2034, 8.507059e+37
  %v2036 = vand.u32 %v589, 2147483648
  %v2037 = vor.u32 1.1754944e-38, %v2036
  %v2038 = vsel %vm2035, %v2037, %v2033
  %v2039 = vmul.f32 1.0, %v2038
  %v2040 = vrcp.pop %v590
  %v2041 = vmul.f32 %v590, %v2040
  %v2042 = vsub.f32 1.0, %v2041
  %v2043 = vmul.f32 %v2040, %v2042
  %v2044 = vadd.f32 %v2040, %v2043
  %vm2045 = vweird.f32 %v590
  %vm2046 = vweird.f32 %v2040
  %vm2047 = vmor %vm2045, %vm2046
  %v2048 = vsel %vm2047, %v2040, %v2044
  %v2049 = vand.u32 2147483647, %v590
  %vm2050 = vcmp.eq.f32.partialorder %v2049, 8.507059e+37
  %v2051 = vand.u32 %v590, 2147483648
  %v2052 = vor.u32 1.1754944e-38, %v2051
  %v2053 = vsel %vm2050, %v2052, %v2048
  %v2054 = vmul.f32 1.0, %v2053
  %v2055 = vrcp.pop %v591
  %v2056 = vmul.f32 %v591, %v2055
  %v2057 = vsub.f32 1.0, %v2056
  %v2058 = vmul.f32 %v2055, %v2057
  %v2059 = vadd.f32 %v2055, %v2058
  %vm2060 = vweird.f32 %v591
  %vm2061 = vweird.f32 %v2055
  %vm2062 = vmor %vm2060, %vm2061
  %v2063 = vsel %vm2062, %v2055, %v2059
  %v2064 = vand.u32 2147483647, %v591
  %vm2065 = vcmp.eq.f32.partialorder %v2064, 8.507059e+37
  %v2066 = vand.u32 %v591, 2147483648
  %v2067 = vor.u32 1.1754944e-38, %v2066
  %v2068 = vsel %vm2065, %v2067, %v2063
  %v2069 = vmul.f32 1.0, %v2068
  %v2070 = vrcp.pop %v592
  %v2071 = vmul.f32 %v592, %v2070
  %v2072 = vsub.f32 1.0, %v2071
  %v2073 = vmul.f32 %v2070, %v2072
  %v2074 = vadd.f32 %v2070, %v2073
  %vm2075 = vweird.f32 %v592
  %vm2076 = vweird.f32 %v2070
  %vm2077 = vmor %vm2075, %vm2076
  %v2078 = vsel %vm2077, %v2070, %v2074
  %v2079 = vand.u32 2147483647, %v592
  %vm2080 = vcmp.eq.f32.partialorder %v2079, 8.507059e+37
  %v2081 = vand.u32 %v592, 2147483648
  %v2082 = vor.u32 1.1754944e-38, %v2081
  %v2083 = vsel %vm2080, %v2082, %v2078
  %v2084 = vmul.f32 1.0, %v2083
  %v2085 = vrcp.pop %v593
  %v2086 = vmul.f32 %v593, %v2085
  %v2087 = vsub.f32 1.0, %v2086
  %v2088 = vmul.f32 %v2085, %v2087
  %v2089 = vadd.f32 %v2085, %v2088
  %vm2090 = vweird.f32 %v593
  %vm2091 = vweird.f32 %v2085
  %vm2092 = vmor %vm2090, %vm2091
  %v2093 = vsel %vm2092, %v2085, %v2089
  %v2094 = vand.u32 2147483647, %v593
  %vm2095 = vcmp.eq.f32.partialorder %v2094, 8.507059e+37
  %v2096 = vand.u32 %v593, 2147483648
  %v2097 = vor.u32 1.1754944e-38, %v2096
  %v2098 = vsel %vm2095, %v2097, %v2093
  %v2099 = vmul.f32 1.0, %v2098
  %v2100 = vrcp.pop %v594
  %v2101 = vmul.f32 %v594, %v2100
  %v2102 = vsub.f32 1.0, %v2101
  %v2103 = vmul.f32 %v2100, %v2102
  %v2104 = vadd.f32 %v2100, %v2103
  %vm2105 = vweird.f32 %v594
  %vm2106 = vweird.f32 %v2100
  %vm2107 = vmor %vm2105, %vm2106
  %v2108 = vsel %vm2107, %v2100, %v2104
  %v2109 = vand.u32 2147483647, %v594
  %vm2110 = vcmp.eq.f32.partialorder %v2109, 8.507059e+37
  %v2111 = vand.u32 %v594, 2147483648
  %v2112 = vor.u32 1.1754944e-38, %v2111
  %v2113 = vsel %vm2110, %v2112, %v2108
  %v2114 = vmul.f32 1.0, %v2113
  %v2115 = vrcp.pop %v595
  %v2116 = vmul.f32 %v595, %v2115
  %v2117 = vsub.f32 1.0, %v2116
  %v2118 = vmul.f32 %v2115, %v2117
  %v2119 = vadd.f32 %v2115, %v2118
  %vm2120 = vweird.f32 %v595
  %vm2121 = vweird.f32 %v2115
  %vm2122 = vmor %vm2120, %vm2121
  %v2123 = vsel %vm2122, %v2115, %v2119
  %v2124 = vand.u32 2147483647, %v595
  %vm2125 = vcmp.eq.f32.partialorder %v2124, 8.507059e+37
  %v2126 = vand.u32 %v595, 2147483648
  %v2127 = vor.u32 1.1754944e-38, %v2126
  %v2128 = vsel %vm2125, %v2127, %v2123
  %v2129 = vmul.f32 1.0, %v2128
  %v2130 = vrcp.pop %v596
  %v2131 = vmul.f32 %v596, %v2130
  %v2132 = vsub.f32 1.0, %v2131
  %v2133 = vmul.f32 %v2130, %v2132
  %v2134 = vadd.f32 %v2130, %v2133
  %vm2135 = vweird.f32 %v596
  %vm2136 = vweird.f32 %v2130
  %vm2137 = vmor %vm2135, %vm2136
  %v2138 = vsel %vm2137, %v2130, %v2134
  %v2139 = vand.u32 2147483647, %v596
  %vm2140 = vcmp.eq.f32.partialorder %v2139, 8.507059e+37
  %v2141 = vand.u32 %v596, 2147483648
  %v2142 = vor.u32 1.1754944e-38, %v2141
  %v2143 = vsel %vm2140, %v2142, %v2138
  %v2144 = vmul.f32 1.0, %v2143
  %v2145 = vrcp.pop %v597
  %v2146 = vmul.f32 %v597, %v2145
  %v2147 = vsub.f32 1.0, %v2146
  %v2148 = vmul.f32 %v2145, %v2147
  %v2149 = vadd.f32 %v2145, %v2148
  %vm2150 = vweird.f32 %v597
  %vm2151 = vweird.f32 %v2145
  %vm2152 = vmor %vm2150, %vm2151
  %v2153 = vsel %vm2152, %v2145, %v2149
  %v2154 = vand.u32 2147483647, %v597
  %vm2155 = vcmp.eq.f32.partialorder %v2154, 8.507059e+37
  %v2156 = vand.u32 %v597, 2147483648
  %v2157 = vor.u32 1.1754944e-38, %v2156
  %v2158 = vsel %vm2155, %v2157, %v2153
  %v2159 = vmul.f32 1.0, %v2158
  %v2160 = vrcp.pop %v598
  %v2161 = vmul.f32 %v598, %v2160
  %v2162 = vsub.f32 1.0, %v2161
  %v2163 = vmul.f32 %v2160, %v2162
  %v2164 = vadd.f32 %v2160, %v2163
  %vm2165 = vweird.f32 %v598
  %vm2166 = vweird.f32 %v2160
  %vm2167 = vmor %vm2165, %vm2166
  %v2168 = vsel %vm2167, %v2160, %v2164
  %v2169 = vand.u32 2147483647, %v598
  %vm2170 = vcmp.eq.f32.partialorder %v2169, 8.507059e+37
  %v2171 = vand.u32 %v598, 2147483648
  %v2172 = vor.u32 1.1754944e-38, %v2171
  %v2173 = vsel %vm2170, %v2172, %v2168
  %v2174 = vmul.f32 1.0, %v2173
  %v2175 = vrcp.pop %v599
  %v2176 = vmul.f32 %v599, %v2175
  %v2177 = vsub.f32 1.0, %v2176
  %v2178 = vmul.f32 %v2175, %v2177
  %v2179 = vadd.f32 %v2175, %v2178
  %vm2180 = vweird.f32 %v599
  %vm2181 = vweird.f32 %v2175
  %vm2182 = vmor %vm2180, %vm2181
  %v2183 = vsel %vm2182, %v2175, %v2179
  %v2184 = vand.u32 2147483647, %v599
  %vm2185 = vcmp.eq.f32.partialorder %v2184, 8.507059e+37
  %v2186 = vand.u32 %v599, 2147483648
  %v2187 = vor.u32 1.1754944e-38, %v2186
  %v2188 = vsel %vm2185, %v2187, %v2183
  %v2189 = vmul.f32 1.0, %v2188
  %v2190 = vrcp.pop %v600
  %v2191 = vmul.f32 %v600, %v2190
  %v2192 = vsub.f32 1.0, %v2191
  %v2193 = vmul.f32 %v2190, %v2192
  %v2194 = vadd.f32 %v2190, %v2193
  %vm2195 = vweird.f32 %v600
  %vm2196 = vweird.f32 %v2190
  %vm2197 = vmor %vm2195, %vm2196
  %v2198 = vsel %vm2197, %v2190, %v2194
  %v2199 = vand.u32 2147483647, %v600
  %vm2200 = vcmp.eq.f32.partialorder %v2199, 8.507059e+37
  %v2201 = vand.u32 %v600, 2147483648
  %v2202 = vor.u32 1.1754944e-38, %v2201
  %v2203 = vsel %vm2200, %v2202, %v2198
  %v2204 = vmul.f32 1.0, %v2203
  %v2205 = vrcp.pop %v601
  %v2206 = vmul.f32 %v601, %v2205
  %v2207 = vsub.f32 1.0, %v2206
  %v2208 = vmul.f32 %v2205, %v2207
  %v2209 = vadd.f32 %v2205, %v2208
  %vm2210 = vweird.f32 %v601
  %vm2211 = vweird.f32 %v2205
  %vm2212 = vmor %vm2210, %vm2211
  %v2213 = vsel %vm2212, %v2205, %v2209
  %v2214 = vand.u32 2147483647, %v601
  %vm2215 = vcmp.eq.f32.partialorder %v2214, 8.507059e+37
  %v2216 = vand.u32 %v601, 2147483648
  %v2217 = vor.u32 1.1754944e-38, %v2216
  %v2218 = vsel %vm2215, %v2217, %v2213
  %v2219 = vmul.f32 1.0, %v2218
  %v2220 = vrcp.pop %v602
  %v2221 = vmul.f32 %v602, %v2220
  %v2222 = vsub.f32 1.0, %v2221
  %v2223 = vmul.f32 %v2220, %v2222
  %v2224 = vadd.f32 %v2220, %v2223
  %vm2225 = vweird.f32 %v602
  %vm2226 = vweird.f32 %v2220
  %vm2227 = vmor %vm2225, %vm2226
  %v2228 = vsel %vm2227, %v2220, %v2224
  %v2229 = vand.u32 2147483647, %v602
  %vm2230 = vcmp.eq.f32.partialorder %v2229, 8.507059e+37
  %v2231 = vand.u32 %v602, 2147483648
  %v2232 = vor.u32 1.1754944e-38, %v2231
  %v2233 = vsel %vm2230, %v2232, %v2228
  %v2234 = vmul.f32 1.0, %v2233
  %v2235 = vrcp.pop %v603
  %v2236 = vmul.f32 %v603, %v2235
  %v2237 = vsub.f32 1.0, %v2236
  %v2238 = vmul.f32 %v2235, %v2237
  %v2239 = vadd.f32 %v2235, %v2238
  %vm2240 = vweird.f32 %v603
  %vm2241 = vweird.f32 %v2235
  %vm2242 = vmor %vm2240, %vm2241
  %v2243 = vsel %vm2242, %v2235, %v2239
  %v2244 = vand.u32 2147483647, %v603
  %vm2245 = vcmp.eq.f32.partialorder %v2244, 8.507059e+37
  %v2246 = vand.u32 %v603, 2147483648
  %v2247 = vor.u32 1.1754944e-38, %v2246
  %v2248 = vsel %vm2245, %v2247, %v2243
  %v2249 = vmul.f32 1.0, %v2248
  %v2250 = vrcp.pop %v604
  %v2251 = vmul.f32 %v604, %v2250
  %v2252 = vsub.f32 1.0, %v2251
  %v2253 = vmul.f32 %v2250, %v2252
  %v2254 = vadd.f32 %v2250, %v2253
  %vm2255 = vweird.f32 %v604
  %vm2256 = vweird.f32 %v2250
  %vm2257 = vmor %vm2255, %vm2256
  %v2258 = vsel %vm2257, %v2250, %v2254
  %v2259 = vand.u32 2147483647, %v604
  %vm2260 = vcmp.eq.f32.partialorder %v2259, 8.507059e+37
  %v2261 = vand.u32 %v604, 2147483648
  %v2262 = vor.u32 1.1754944e-38, %v2261
  %v2263 = vsel %vm2260, %v2262, %v2258
  %v2264 = vmul.f32 1.0, %v2263
  %v2265 = vrcp.pop %v605
  %v2266 = vmul.f32 %v605, %v2265
  %v2267 = vsub.f32 1.0, %v2266
  %v2268 = vmul.f32 %v2265, %v2267
  %v2269 = vadd.f32 %v2265, %v2268
  %vm2270 = vweird.f32 %v605
  %vm2271 = vweird.f32 %v2265
  %vm2272 = vmor %vm2270, %vm2271
  %v2273 = vsel %vm2272, %v2265, %v2269
  %v2274 = vand.u32 2147483647, %v605
  %vm2275 = vcmp.eq.f32.partialorder %v2274, 8.507059e+37
  %v2276 = vand.u32 %v605, 2147483648
  %v2277 = vor.u32 1.1754944e-38, %v2276
  %v2278 = vsel %vm2275, %v2277, %v2273
  %v2279 = vmul.f32 1.0, %v2278
  %v2280 = vrcp.pop %v606
  %v2281 = vmul.f32 %v606, %v2280
  %v2282 = vsub.f32 1.0, %v2281
  %v2283 = vmul.f32 %v2280, %v2282
  %v2284 = vadd.f32 %v2280, %v2283
  %vm2285 = vweird.f32 %v606
  %vm2286 = vweird.f32 %v2280
  %vm2287 = vmor %vm2285, %vm2286
  %v2288 = vsel %vm2287, %v2280, %v2284
  %v2289 = vand.u32 2147483647, %v606
  %vm2290 = vcmp.eq.f32.partialorder %v2289, 8.507059e+37
  %v2291 = vand.u32 %v606, 2147483648
  %v2292 = vor.u32 1.1754944e-38, %v2291
  %v2293 = vsel %vm2290, %v2292, %v2288
  %v2294 = vmul.f32 1.0, %v2293
  %v2295 = vrcp.pop %v607
  %v2296 = vmul.f32 %v607, %v2295
  %v2297 = vsub.f32 1.0, %v2296
  %v2298 = vmul.f32 %v2295, %v2297
  %v2299 = vadd.f32 %v2295, %v2298
  %vm2300 = vweird.f32 %v607
  %vm2301 = vweird.f32 %v2295
  %vm2302 = vmor %vm2300, %vm2301
  %v2303 = vsel %vm2302, %v2295, %v2299
  %v2304 = vand.u32 2147483647, %v607
  %vm2305 = vcmp.eq.f32.partialorder %v2304, 8.507059e+37
  %v2306 = vand.u32 %v607, 2147483648
  %v2307 = vor.u32 1.1754944e-38, %v2306
  %v2308 = vsel %vm2305, %v2307, %v2303
  %v2309 = vmul.f32 1.0, %v2308
  %v2310 = vrcp.pop %v608
  %v2311 = vmul.f32 %v608, %v2310
  %v2312 = vsub.f32 1.0, %v2311
  %v2313 = vmul.f32 %v2310, %v2312
  %v2314 = vadd.f32 %v2310, %v2313
  %vm2315 = vweird.f32 %v608
  %vm2316 = vweird.f32 %v2310
  %vm2317 = vmor %vm2315, %vm2316
  %v2318 = vsel %vm2317, %v2310, %v2314
  %v2319 = vand.u32 2147483647, %v608
  %vm2320 = vcmp.eq.f32.partialorder %v2319, 8.507059e+37
  %v2321 = vand.u32 %v608, 2147483648
  %v2322 = vor.u32 1.1754944e-38, %v2321
  %v2323 = vsel %vm2320, %v2322, %v2318
  %v2324 = vmul.f32 1.0, %v2323
  %v2325 = vrcp.pop %v609
  %v2326 = vmul.f32 %v609, %v2325
  %v2327 = vsub.f32 1.0, %v2326
  %v2328 = vmul.f32 %v2325, %v2327
  %v2329 = vadd.f32 %v2325, %v2328
  %vm2330 = vweird.f32 %v609
  %vm2331 = vweird.f32 %v2325
  %vm2332 = vmor %vm2330, %vm2331
  %v2333 = vsel %vm2332, %v2325, %v2329
  %v2334 = vand.u32 2147483647, %v609
  %vm2335 = vcmp.eq.f32.partialorder %v2334, 8.507059e+37
  %v2336 = vand.u32 %v609, 2147483648
  %v2337 = vor.u32 1.1754944e-38, %v2336
  %v2338 = vsel %vm2335, %v2337, %v2333
  %v2339 = vmul.f32 1.0, %v2338
  %v2340 = vrcp.pop %v610
  %v2341 = vmul.f32 %v610, %v2340
  %v2342 = vsub.f32 1.0, %v2341
  %v2343 = vmul.f32 %v2340, %v2342
  %v2344 = vadd.f32 %v2340, %v2343
  %vm2345 = vweird.f32 %v610
  %vm2346 = vweird.f32 %v2340
  %vm2347 = vmor %vm2345, %vm2346
  %v2348 = vsel %vm2347, %v2340, %v2344
  %v2349 = vand.u32 2147483647, %v610
  %vm2350 = vcmp.eq.f32.partialorder %v2349, 8.507059e+37
  %v2351 = vand.u32 %v610, 2147483648
  %v2352 = vor.u32 1.1754944e-38, %v2351
  %v2353 = vsel %vm2350, %v2352, %v2348
  %v2354 = vmul.f32 1.0, %v2353
  %v2355 = vrcp.pop %v611
  %v2356 = vmul.f32 %v611, %v2355
  %v2357 = vsub.f32 1.0, %v2356
  %v2358 = vmul.f32 %v2355, %v2357
  %v2359 = vadd.f32 %v2355, %v2358
  %vm2360 = vweird.f32 %v611
  %vm2361 = vweird.f32 %v2355
  %vm2362 = vmor %vm2360, %vm2361
  %v2363 = vsel %vm2362, %v2355, %v2359
  %v2364 = vand.u32 2147483647, %v611
  %vm2365 = vcmp.eq.f32.partialorder %v2364, 8.507059e+37
  %v2366 = vand.u32 %v611, 2147483648
  %v2367 = vor.u32 1.1754944e-38, %v2366
  %v2368 = vsel %vm2365, %v2367, %v2363
  %v2369 = vmul.f32 1.0, %v2368
  %v2370 = vrcp.pop %v612
  %v2371 = vmul.f32 %v612, %v2370
  %v2372 = vsub.f32 1.0, %v2371
  %v2373 = vmul.f32 %v2370, %v2372
  %v2374 = vadd.f32 %v2370, %v2373
  %vm2375 = vweird.f32 %v612
  %vm2376 = vweird.f32 %v2370
  %vm2377 = vmor %vm2375, %vm2376
  %v2378 = vsel %vm2377, %v2370, %v2374
  %v2379 = vand.u32 2147483647, %v612
  %vm2380 = vcmp.eq.f32.partialorder %v2379, 8.507059e+37
  %v2381 = vand.u32 %v612, 2147483648
  %v2382 = vor.u32 1.1754944e-38, %v2381
  %v2383 = vsel %vm2380, %v2382, %v2378
  %v2384 = vmul.f32 1.0, %v2383
  %v2385 = vrcp.pop %v613
  %v2386 = vmul.f32 %v613, %v2385
  %v2387 = vsub.f32 1.0, %v2386
  %v2388 = vmul.f32 %v2385, %v2387
  %v2389 = vadd.f32 %v2385, %v2388
  %vm2390 = vweird.f32 %v613
  %vm2391 = vweird.f32 %v2385
  %vm2392 = vmor %vm2390, %vm2391
  %v2393 = vsel %vm2392, %v2385, %v2389
  %v2394 = vand.u32 2147483647, %v613
  %vm2395 = vcmp.eq.f32.partialorder %v2394, 8.507059e+37
  %v2396 = vand.u32 %v613, 2147483648
  %v2397 = vor.u32 1.1754944e-38, %v2396
  %v2398 = vsel %vm2395, %v2397, %v2393
  %v2399 = vmul.f32 1.0, %v2398
  %v2400 = vrcp.pop %v614
  %v2401 = vmul.f32 %v614, %v2400
  %v2402 = vsub.f32 1.0, %v2401
  %v2403 = vmul.f32 %v2400, %v2402
  %v2404 = vadd.f32 %v2400, %v2403
  %vm2405 = vweird.f32 %v614
  %vm2406 = vweird.f32 %v2400
  %vm2407 = vmor %vm2405, %vm2406
  %v2408 = vsel %vm2407, %v2400, %v2404
  %v2409 = vand.u32 2147483647, %v614
  %vm2410 = vcmp.eq.f32.partialorder %v2409, 8.507059e+37
  %v2411 = vand.u32 %v614, 2147483648
  %v2412 = vor.u32 1.1754944e-38, %v2411
  %v2413 = vsel %vm2410, %v2412, %v2408
  %v2414 = vmul.f32 1.0, %v2413
  %v2415 = vld [vmem:[%s1] sm:$0xff]
  %v2416 = vld [vmem:[%s1 + $0x8] sm:$0xff]
  %v2417 = vld [vmem:[%s1 + $0x10] sm:$0xff]
  %v2418 = vld [vmem:[%s1 + $0x18] sm:$0xff]
  %v2419 = vld [vmem:[%s1 + $0x20] sm:$0xff]
  %v2420 = vld [vmem:[%s1 + $0x28] sm:$0xff]
  %v2421 = vld [vmem:[%s1 + $0x30] sm:$0xff]
  %v2422 = vld [vmem:[%s1 + $0x38] sm:$0xff]
  %v2423 = vld [vmem:[%s1 + $0x40] sm:$0xff]
  %v2424 = vld [vmem:[%s1 + $0x48] sm:$0xff]
  %v2425 = vld [vmem:[%s1 + $0x50] sm:$0xff]
  %v2426 = vld [vmem:[%s1 + $0x58] sm:$0xff]
  %v2427 = vld [vmem:[%s1 + $0x60] sm:$0xff]
  %v2428 = vld [vmem:[%s1 + $0x68] sm:$0xff]
  %v2429 = vld [vmem:[%s1 + $0x70] sm:$0xff]
  %v2430 = vld [vmem:[%s1 + $0x78] sm:$0xff]
  %v2431 = vld [vmem:[%s1 + $0x80] sm:$0xff]
  %v2432 = vld [vmem:[%s1 + $0x88] sm:$0xff]
  %v2433 = vld [vmem:[%s1 + $0x90] sm:$0xff]
  %v2434 = vld [vmem:[%s1 + $0x98] sm:$0xff]
  %v2435 = vld [vmem:[%s1 + $0xa0] sm:$0xff]
  %v2436 = vld [vmem:[%s1 + $0xa8] sm:$0xff]
  %v2437 = vld [vmem:[%s1 + $0xb0] sm:$0xff]
  %v2438 = vld [vmem:[%s1 + $0xb8] sm:$0xff]
  %v2439 = vld [vmem:[%s1 + $0xc0] sm:$0xff]
  %v2440 = vld [vmem:[%s1 + $0xc8] sm:$0xff]
  %v2441 = vld [vmem:[%s1 + $0xd0] sm:$0xff]
  %v2442 = vld [vmem:[%s1 + $0xd8] sm:$0xff]
  %v2443 = vld [vmem:[%s1 + $0xe0] sm:$0xff]
  %v2444 = vld [vmem:[%s1 + $0xe8] sm:$0xff]
  %v2445 = vld [vmem:[%s1 + $0xf0] sm:$0xff]
  %v2446 = vld [vmem:[%s1 + $0xf8] sm:$0xff]
  %v2447 = vld [vmem:[%s1 + $0x100] sm:$0xff]
  %v2448 = vld [vmem:[%s1 + $0x108] sm:$0xff]
  %v2449 = vld [vmem:[%s1 + $0x110] sm:$0xff]
  %v2450 = vld [vmem:[%s1 + $0x118] sm:$0xff]
  %v2451 = vld [vmem:[%s1 + $0x120] sm:$0xff]
  %v2452 = vld [vmem:[%s1 + $0x128] sm:$0xff]
  %v2453 = vld [vmem:[%s1 + $0x130] sm:$0xff]
  %v2454 = vld [vmem:[%s1 + $0x138] sm:$0xff]
  %v2455 = vld [vmem:[%s1 + $0x140] sm:$0xff]
  %v2456 = vld [vmem:[%s1 + $0x148] sm:$0xff]
  %v2457 = vld [vmem:[%s1 + $0x150] sm:$0xff]
  %v2458 = vld [vmem:[%s1 + $0x158] sm:$0xff]
  %v2459 = vld [vmem:[%s1 + $0x160] sm:$0xff]
  %v2460 = vld [vmem:[%s1 + $0x168] sm:$0xff]
  %v2461 = vld [vmem:[%s1 + $0x170] sm:$0xff]
  %v2462 = vld [vmem:[%s1 + $0x178] sm:$0xff]
  %v2463 = vld [vmem:[%s1 + $0x180] sm:$0xff]
  %v2464 = vld [vmem:[%s1 + $0x188] sm:$0xff]
  %v2465 = vld [vmem:[%s1 + $0x190] sm:$0xff]
  %v2466 = vld [vmem:[%s1 + $0x198] sm:$0xff]
  %v2467 = vld [vmem:[%s1 + $0x1a0] sm:$0xff]
  %v2468 = vld [vmem:[%s1 + $0x1a8] sm:$0xff]
  %v2469 = vld [vmem:[%s1 + $0x1b0] sm:$0xff]
  %v2470 = vld [vmem:[%s1 + $0x1b8] sm:$0xff]
  %v2471 = vld [vmem:[%s1 + $0x1c0] sm:$0xff]
  %v2472 = vld [vmem:[%s1 + $0x1c8] sm:$0xff]
  %v2473 = vld [vmem:[%s1 + $0x1d0] sm:$0xff]
  %v2474 = vld [vmem:[%s1 + $0x1d8] sm:$0xff]
  %v2475 = vld [vmem:[%s1 + $0x1e0] sm:$0xff]
  %v2476 = vld [vmem:[%s1 + $0x1e8] sm:$0xff]
  %v2477 = vld [vmem:[%s1 + $0x1f0] sm:$0xff]
  %v2478 = vld [vmem:[%s1 + $0x1f8] sm:$0xff]
  %v2479 = vld [vmem:[%s1 + $0x200] sm:$0xff]
  %v2480 = vld [vmem:[%s1 + $0x208] sm:$0xff]
  %v2481 = vld [vmem:[%s1 + $0x210] sm:$0xff]
  %v2482 = vld [vmem:[%s1 + $0x218] sm:$0xff]
  %v2483 = vld [vmem:[%s1 + $0x220] sm:$0xff]
  %v2484 = vld [vmem:[%s1 + $0x228] sm:$0xff]
  %v2485 = vld [vmem:[%s1 + $0x230] sm:$0xff]
  %v2486 = vld [vmem:[%s1 + $0x238] sm:$0xff]
  %v2487 = vld [vmem:[%s1 + $0x240] sm:$0xff]
  %v2488 = vld [vmem:[%s1 + $0x248] sm:$0xff]
  %v2489 = vld [vmem:[%s1 + $0x250] sm:$0xff]
  %v2490 = vld [vmem:[%s1 + $0x258] sm:$0xff]
  %v2491 = vld [vmem:[%s1 + $0x260] sm:$0xff]
  %v2492 = vld [vmem:[%s1 + $0x268] sm:$0xff]
  %v2493 = vld [vmem:[%s1 + $0x270] sm:$0xff]
  %v2494 = vld [vmem:[%s1 + $0x278] sm:$0xff]
  %v2495 = vld [vmem:[%s1 + $0x280] sm:$0xff]
  %v2496 = vld [vmem:[%s1 + $0x288] sm:$0xff]
  %v2497 = vld [vmem:[%s1 + $0x290] sm:$0xff]
  %v2498 = vld [vmem:[%s1 + $0x298] sm:$0xff]
  %v2499 = vld [vmem:[%s1 + $0x2a0] sm:$0xff]
  %v2500 = vld [vmem:[%s1 + $0x2a8] sm:$0xff]
  %v2501 = vld [vmem:[%s1 + $0x2b0] sm:$0xff]
  %v2502 = vld [vmem:[%s1 + $0x2b8] sm:$0xff]
  %v2503 = vld [vmem:[%s1 + $0x2c0] sm:$0xff]
  %v2504 = vld [vmem:[%s1 + $0x2c8] sm:$0xff]
  %v2505 = vld [vmem:[%s1 + $0x2d0] sm:$0xff]
  %v2506 = vld [vmem:[%s1 + $0x2d8] sm:$0xff]
  %v2507 = vld [vmem:[%s1 + $0x2e0] sm:$0xff]
  %v2508 = vld [vmem:[%s1 + $0x2e8] sm:$0xff]
  %v2509 = vld [vmem:[%s1 + $0x2f0] sm:$0xff]
  %v2510 = vld [vmem:[%s1 + $0x2f8] sm:$0xff]
  %v2511 = vld [vmem:[%s1 + $0x300] sm:$0xff]
  %v2512 = vld [vmem:[%s1 + $0x308] sm:$0xff]
  %v2513 = vld [vmem:[%s1 + $0x310] sm:$0xff]
  %v2514 = vld [vmem:[%s1 + $0x318] sm:$0xff]
  %v2515 = vld [vmem:[%s1 + $0x320] sm:$0xff]
  %v2516 = vld [vmem:[%s1 + $0x328] sm:$0xff]
  %v2517 = vld [vmem:[%s1 + $0x330] sm:$0xff]
  %v2518 = vld [vmem:[%s1 + $0x338] sm:$0xff]
  %v2519 = vld [vmem:[%s1 + $0x340] sm:$0xff]
  %v2520 = vld [vmem:[%s1 + $0x348] sm:$0xff]
  %v2521 = vld [vmem:[%s1 + $0x350] sm:$0xff]
  %v2522 = vld [vmem:[%s1 + $0x358] sm:$0xff]
  %v2523 = vld [vmem:[%s1 + $0x360] sm:$0xff]
  %v2524 = vld [vmem:[%s1 + $0x368] sm:$0xff]
  %v2525 = vld [vmem:[%s1 + $0x370] sm:$0xff]
  %v2526 = vld [vmem:[%s1 + $0x378] sm:$0xff]
  %v2527 = vld [vmem:[%s1 + $0x380] sm:$0xff]
  %v2528 = vld [vmem:[%s1 + $0x388] sm:$0xff]
  %v2529 = vld [vmem:[%s1 + $0x390] sm:$0xff]
  %v2530 = vld [vmem:[%s1 + $0x398] sm:$0xff]
  %v2531 = vld [vmem:[%s1 + $0x3a0] sm:$0xff]
  %v2532 = vld [vmem:[%s1 + $0x3a8] sm:$0xff]
  %v2533 = vld [vmem:[%s1 + $0x3b0] sm:$0xff]
  %v2534 = vld [vmem:[%s1 + $0x3b8] sm:$0xff]
  %v2535 = vld [vmem:[%s1 + $0x3c0] sm:$0xff]
  %v2536 = vld [vmem:[%s1 + $0x3c8] sm:$0xff]
  %v2537 = vld [vmem:[%s1 + $0x3d0] sm:$0xff]
  %v2538 = vld [vmem:[%s1 + $0x3d8] sm:$0xff]
  %v2539 = vld [vmem:[%s1 + $0x3e0] sm:$0xff]
  %v2540 = vld [vmem:[%s1 + $0x3e8] sm:$0xff]
  %v2541 = vld [vmem:[%s1 + $0x3f0] sm:$0xff]
  %v2542 = vld [vmem:[%s1 + $0x3f8] sm:$0xff]
  %v2543 = vld [vmem:[%s1 + $0x400] sm:$0xff]
  %v2544 = vld [vmem:[%s1 + $0x408] sm:$0xff]
  %v2545 = vld [vmem:[%s1 + $0x410] sm:$0xff]
  %v2546 = vld [vmem:[%s1 + $0x418] sm:$0xff]
  %v2547 = vld [vmem:[%s1 + $0x420] sm:$0xff]
  %v2548 = vld [vmem:[%s1 + $0x428] sm:$0xff]
  %v2549 = vld [vmem:[%s1 + $0x430] sm:$0xff]
  %v2550 = vld [vmem:[%s1 + $0x438] sm:$0xff]
  %v2551 = vld [vmem:[%s1 + $0x440] sm:$0xff]
  %v2552 = vld [vmem:[%s1 + $0x448] sm:$0xff]
  %v2553 = vld [vmem:[%s1 + $0x450] sm:$0xff]
  %v2554 = vld [vmem:[%s1 + $0x458] sm:$0xff]
  %v2555 = vld [vmem:[%s1 + $0x460] sm:$0xff]
  %v2556 = vld [vmem:[%s1 + $0x468] sm:$0xff]
  %v2557 = vld [vmem:[%s1 + $0x470] sm:$0xff]
  %v2558 = vld [vmem:[%s1 + $0x478] sm:$0xff]
  %v2559 = vld [vmem:[%s1 + $0x480] sm:$0xff]
  %v2560 = vld [vmem:[%s1 + $0x488] sm:$0xff]
  %v2561 = vld [vmem:[%s1 + $0x490] sm:$0xff]
  %v2562 = vld [vmem:[%s1 + $0x498] sm:$0xff]
  %v2563 = vld [vmem:[%s1 + $0x4a0] sm:$0xff]
  %v2564 = vld [vmem:[%s1 + $0x4a8] sm:$0xff]
  %v2565 = vld [vmem:[%s1 + $0x4b0] sm:$0xff]
  %v2566 = vld [vmem:[%s1 + $0x4b8] sm:$0xff]
  %v2567 = vld [vmem:[%s1 + $0x4c0] sm:$0xff]
  %v2568 = vld [vmem:[%s1 + $0x4c8] sm:$0xff]
  %v2569 = vld [vmem:[%s1 + $0x4d0] sm:$0xff]
  %v2570 = vld [vmem:[%s1 + $0x4d8] sm:$0xff]
  %v2571 = vld [vmem:[%s1 + $0x4e0] sm:$0xff]
  %v2572 = vld [vmem:[%s1 + $0x4e8] sm:$0xff]
  %v2573 = vld [vmem:[%s1 + $0x4f0] sm:$0xff]
  %v2574 = vld [vmem:[%s1 + $0x4f8] sm:$0xff]
  %v2575 = vld [vmem:[%s1 + $0x500] sm:$0xff]
  %v2576 = vld [vmem:[%s1 + $0x508] sm:$0xff]
  %v2577 = vld [vmem:[%s1 + $0x510] sm:$0xff]
  %v2578 = vld [vmem:[%s1 + $0x518] sm:$0xff]
  %v2579 = vld [vmem:[%s1 + $0x520] sm:$0xff]
  %v2580 = vld [vmem:[%s1 + $0x528] sm:$0xff]
  %v2581 = vld [vmem:[%s1 + $0x530] sm:$0xff]
  %v2582 = vld [vmem:[%s1 + $0x538] sm:$0xff]
  %v2583 = vld [vmem:[%s1 + $0x540] sm:$0xff]
  %v2584 = vld [vmem:[%s1 + $0x548] sm:$0xff]
  %v2585 = vld [vmem:[%s1 + $0x550] sm:$0xff]
  %v2586 = vld [vmem:[%s1 + $0x558] sm:$0xff]
  %v2587 = vld [vmem:[%s1 + $0x560] sm:$0xff]
  %v2588 = vld [vmem:[%s1 + $0x568] sm:$0xff]
  %v2589 = vld [vmem:[%s1 + $0x570] sm:$0xff]
  %v2590 = vld [vmem:[%s1 + $0x578] sm:$0xff]
  %v2591 = vld [vmem:[%s1 + $0x580] sm:$0xff]
  %v2592 = vld [vmem:[%s1 + $0x588] sm:$0xff]
  %v2593 = vld [vmem:[%s1 + $0x590] sm:$0xff]
  %v2594 = vld [vmem:[%s1 + $0x598] sm:$0xff]
  %v2595 = vld [vmem:[%s1 + $0x5a0] sm:$0xff]
  %v2596 = vld [vmem:[%s1 + $0x5a8] sm:$0xff]
  %v2597 = vld [vmem:[%s1 + $0x5b0] sm:$0xff]
  %v2598 = vld [vmem:[%s1 + $0x5b8] sm:$0xff]
  %v2599 = vld [vmem:[%s1 + $0x5c0] sm:$0xff]
  %v2600 = vld [vmem:[%s1 + $0x5c8] sm:$0xff]
  %v2601 = vld [vmem:[%s1 + $0x5d0] sm:$0xff]
  %v2602 = vld [vmem:[%s1 + $0x5d8] sm:$0xff]
  %v2603 = vld [vmem:[%s1 + $0x5e0] sm:$0xff]
  %v2604 = vld [vmem:[%s1 + $0x5e8] sm:$0xff]
  %v2605 = vld [vmem:[%s1 + $0x5f0] sm:$0xff]
  %v2606 = vld [vmem:[%s1 + $0x5f8] sm:$0xff]
  %v2607 = vld [vmem:[%s1 + $0x600] sm:$0xff]
  %v2608 = vld [vmem:[%s1 + $0x608] sm:$0xff]
  %v2609 = vld [vmem:[%s1 + $0x610] sm:$0xff]
  %v2610 = vld [vmem:[%s1 + $0x618] sm:$0xff]
  %v2611 = vld [vmem:[%s1 + $0x620] sm:$0xff]
  %v2612 = vld [vmem:[%s1 + $0x628] sm:$0xff]
  %v2613 = vld [vmem:[%s1 + $0x630] sm:$0xff]
  %v2614 = vld [vmem:[%s1 + $0x638] sm:$0xff]
  %v2615 = vld [vmem:[%s1 + $0x640] sm:$0xff]
  %v2616 = vld [vmem:[%s1 + $0x648] sm:$0xff]
  %v2617 = vld [vmem:[%s1 + $0x650] sm:$0xff]
  %v2618 = vld [vmem:[%s1 + $0x658] sm:$0xff]
  %v2619 = vld [vmem:[%s1 + $0x660] sm:$0xff]
  %v2620 = vld [vmem:[%s1 + $0x668] sm:$0xff]
  %v2621 = vld [vmem:[%s1 + $0x670] sm:$0xff]
  %v2622 = vld [vmem:[%s1 + $0x678] sm:$0xff]
  %v2623 = vld [vmem:[%s1 + $0x680] sm:$0xff]
  %v2624 = vld [vmem:[%s1 + $0x688] sm:$0xff]
  %v2625 = vld [vmem:[%s1 + $0x690] sm:$0xff]
  %v2626 = vld [vmem:[%s1 + $0x698] sm:$0xff]
  %v2627 = vld [vmem:[%s1 + $0x6a0] sm:$0xff]
  %v2628 = vld [vmem:[%s1 + $0x6a8] sm:$0xff]
  %v2629 = vld [vmem:[%s1 + $0x6b0] sm:$0xff]
  %v2630 = vld [vmem:[%s1 + $0x6b8] sm:$0xff]
  %v2631 = vld [vmem:[%s1 + $0x6c0] sm:$0xff]
  %v2632 = vld [vmem:[%s1 + $0x6c8] sm:$0xff]
  %v2633 = vld [vmem:[%s1 + $0x6d0] sm:$0xff]
  %v2634 = vld [vmem:[%s1 + $0x6d8] sm:$0xff]
  %v2635 = vld [vmem:[%s1 + $0x6e0] sm:$0xff]
  %v2636 = vld [vmem:[%s1 + $0x6e8] sm:$0xff]
  %v2637 = vld [vmem:[%s1 + $0x6f0] sm:$0xff]
  %v2638 = vld [vmem:[%s1 + $0x6f8] sm:$0xff]
  %v2639 = vld [vmem:[%s1 + $0x700] sm:$0xff]
  %v2640 = vld [vmem:[%s1 + $0x708] sm:$0xff]
  %v2641 = vld [vmem:[%s1 + $0x710] sm:$0xff]
  %v2642 = vld [vmem:[%s1 + $0x718] sm:$0xff]
  %v2643 = vld [vmem:[%s1 + $0x720] sm:$0xff]
  %v2644 = vld [vmem:[%s1 + $0x728] sm:$0xff]
  %v2645 = vld [vmem:[%s1 + $0x730] sm:$0xff]
  %v2646 = vld [vmem:[%s1 + $0x738] sm:$0xff]
  %v2647 = vld [vmem:[%s1 + $0x740] sm:$0xff]
  %v2648 = vld [vmem:[%s1 + $0x748] sm:$0xff]
  %v2649 = vld [vmem:[%s1 + $0x750] sm:$0xff]
  %v2650 = vld [vmem:[%s1 + $0x758] sm:$0xff]
  %v2651 = vld [vmem:[%s1 + $0x760] sm:$0xff]
  %v2652 = vld [vmem:[%s1 + $0x768] sm:$0xff]
  %v2653 = vld [vmem:[%s1 + $0x770] sm:$0xff]
  %v2654 = vld [vmem:[%s1 + $0x778] sm:$0xff]
  %2656 = vset.pattern.permute.xlu0 0
  %2657 = vperm.xlu0 %2656, %v629
  %v2658 = vpop.permute.xlu0 %2657
  %2661 = vset.pattern.permute.xlu0 0
  %2662 = vperm.xlu0 %2661, %v644
  %v2663 = vpop.permute.xlu0 %2662
  %2666 = vset.pattern.permute.xlu0 0
  %2667 = vperm.xlu0 %2666, %v659
  %v2668 = vpop.permute.xlu0 %2667
  %2671 = vset.pattern.permute.xlu0 0
  %2672 = vperm.xlu0 %2671, %v674
  %v2673 = vpop.permute.xlu0 %2672
  %2676 = vset.pattern.permute.xlu0 0
  %2677 = vperm.xlu0 %2676, %v689
  %v2678 = vpop.permute.xlu0 %2677
  %2681 = vset.pattern.permute.xlu0 0
  %2682 = vperm.xlu0 %2681, %v704
  %v2683 = vpop.permute.xlu0 %2682
  %2686 = vset.pattern.permute.xlu0 0
  %2687 = vperm.xlu0 %2686, %v719
  %v2688 = vpop.permute.xlu0 %2687
  %2691 = vset.pattern.permute.xlu0 0
  %2692 = vperm.xlu0 %2691, %v734
  %v2693 = vpop.permute.xlu0 %2692
  %2696 = vset.pattern.permute.xlu0 0
  %2697 = vperm.xlu0 %2696, %v749
  %v2698 = vpop.permute.xlu0 %2697
  %2701 = vset.pattern.permute.xlu0 0
  %2702 = vperm.xlu0 %2701, %v764
  %v2703 = vpop.permute.xlu0 %2702
  %2706 = vset.pattern.permute.xlu0 0
  %2707 = vperm.xlu0 %2706, %v779
  %v2708 = vpop.permute.xlu0 %2707
  %2711 = vset.pattern.permute.xlu0 0
  %2712 = vperm.xlu0 %2711, %v794
  %v2713 = vpop.permute.xlu0 %2712
  %2716 = vset.pattern.permute.xlu0 0
  %2717 = vperm.xlu0 %2716, %v809
  %v2718 = vpop.permute.xlu0 %2717
  %2721 = vset.pattern.permute.xlu0 0
  %2722 = vperm.xlu0 %2721, %v824
  %v2723 = vpop.permute.xlu0 %2722
  %2726 = vset.pattern.permute.xlu0 0
  %2727 = vperm.xlu0 %2726, %v839
  %v2728 = vpop.permute.xlu0 %2727
  %2731 = vset.pattern.permute.xlu0 0
  %2732 = vperm.xlu0 %2731, %v854
  %v2733 = vpop.permute.xlu0 %2732
  %2736 = vset.pattern.permute.xlu0 0
  %2737 = vperm.xlu0 %2736, %v869
  %v2738 = vpop.permute.xlu0 %2737
  %2741 = vset.pattern.permute.xlu0 0
  %2742 = vperm.xlu0 %2741, %v884
  %v2743 = vpop.permute.xlu0 %2742
  %2746 = vset.pattern.permute.xlu0 0
  %2747 = vperm.xlu0 %2746, %v899
  %v2748 = vpop.permute.xlu0 %2747
  %2751 = vset.pattern.permute.xlu0 0
  %2752 = vperm.xlu0 %2751, %v914
  %v2753 = vpop.permute.xlu0 %2752
  %2756 = vset.pattern.permute.xlu0 0
  %2757 = vperm.xlu0 %2756, %v929
  %v2758 = vpop.permute.xlu0 %2757
  %2761 = vset.pattern.permute.xlu0 0
  %2762 = vperm.xlu0 %2761, %v944
  %v2763 = vpop.permute.xlu0 %2762
  %2766 = vset.pattern.permute.xlu0 0
  %2767 = vperm.xlu0 %2766, %v959
  %v2768 = vpop.permute.xlu0 %2767
  %2771 = vset.pattern.permute.xlu0 0
  %2772 = vperm.xlu0 %2771, %v974
  %v2773 = vpop.permute.xlu0 %2772
  %2776 = vset.pattern.permute.xlu0 0
  %2777 = vperm.xlu0 %2776, %v989
  %v2778 = vpop.permute.xlu0 %2777
  %2781 = vset.pattern.permute.xlu0 0
  %2782 = vperm.xlu0 %2781, %v1004
  %v2783 = vpop.permute.xlu0 %2782
  %2786 = vset.pattern.permute.xlu0 0
  %2787 = vperm.xlu0 %2786, %v1019
  %v2788 = vpop.permute.xlu0 %2787
  %2791 = vset.pattern.permute.xlu0 0
  %2792 = vperm.xlu0 %2791, %v1034
  %v2793 = vpop.permute.xlu0 %2792
  %2796 = vset.pattern.permute.xlu0 0
  %2797 = vperm.xlu0 %2796, %v1049
  %v2798 = vpop.permute.xlu0 %2797
  %2801 = vset.pattern.permute.xlu0 0
  %2802 = vperm.xlu0 %2801, %v1064
  %v2803 = vpop.permute.xlu0 %2802
  %2806 = vset.pattern.permute.xlu0 0
  %2807 = vperm.xlu0 %2806, %v1079
  %v2808 = vpop.permute.xlu0 %2807
  %2811 = vset.pattern.permute.xlu0 0
  %2812 = vperm.xlu0 %2811, %v1094
  %v2813 = vpop.permute.xlu0 %2812
  %2816 = vset.pattern.permute.xlu0 0
  %2817 = vperm.xlu0 %2816, %v1109
  %v2818 = vpop.permute.xlu0 %2817
  %2821 = vset.pattern.permute.xlu0 0
  %2822 = vperm.xlu0 %2821, %v1124
  %v2823 = vpop.permute.xlu0 %2822
  %2826 = vset.pattern.permute.xlu0 0
  %2827 = vperm.xlu0 %2826, %v1139
  %v2828 = vpop.permute.xlu0 %2827
  %2831 = vset.pattern.permute.xlu0 0
  %2832 = vperm.xlu0 %2831, %v1154
  %v2833 = vpop.permute.xlu0 %2832
  %2836 = vset.pattern.permute.xlu0 0
  %2837 = vperm.xlu0 %2836, %v1169
  %v2838 = vpop.permute.xlu0 %2837
  %2841 = vset.pattern.permute.xlu0 0
  %2842 = vperm.xlu0 %2841, %v1184
  %v2843 = vpop.permute.xlu0 %2842
  %2846 = vset.pattern.permute.xlu0 0
  %2847 = vperm.xlu0 %2846, %v1199
  %v2848 = vpop.permute.xlu0 %2847
  %2851 = vset.pattern.permute.xlu0 0
  %2852 = vperm.xlu0 %2851, %v1214
  %v2853 = vpop.permute.xlu0 %2852
  %2856 = vset.pattern.permute.xlu0 0
  %2857 = vperm.xlu0 %2856, %v1229
  %v2858 = vpop.permute.xlu0 %2857
  %2861 = vset.pattern.permute.xlu0 0
  %2862 = vperm.xlu0 %2861, %v1244
  %v2863 = vpop.permute.xlu0 %2862
  %2866 = vset.pattern.permute.xlu0 0
  %2867 = vperm.xlu0 %2866, %v1259
  %v2868 = vpop.permute.xlu0 %2867
  %2871 = vset.pattern.permute.xlu0 0
  %2872 = vperm.xlu0 %2871, %v1274
  %v2873 = vpop.permute.xlu0 %2872
  %2876 = vset.pattern.permute.xlu0 0
  %2877 = vperm.xlu0 %2876, %v1289
  %v2878 = vpop.permute.xlu0 %2877
  %2881 = vset.pattern.permute.xlu0 0
  %2882 = vperm.xlu0 %2881, %v1304
  %v2883 = vpop.permute.xlu0 %2882
  %2886 = vset.pattern.permute.xlu0 0
  %2887 = vperm.xlu0 %2886, %v1319
  %v2888 = vpop.permute.xlu0 %2887
  %2891 = vset.pattern.permute.xlu0 0
  %2892 = vperm.xlu0 %2891, %v1334
  %v2893 = vpop.permute.xlu0 %2892
  %2896 = vset.pattern.permute.xlu0 0
  %2897 = vperm.xlu0 %2896, %v1349
  %v2898 = vpop.permute.xlu0 %2897
  %2901 = vset.pattern.permute.xlu0 0
  %2902 = vperm.xlu0 %2901, %v1364
  %v2903 = vpop.permute.xlu0 %2902
  %2906 = vset.pattern.permute.xlu0 0
  %2907 = vperm.xlu0 %2906, %v1379
  %v2908 = vpop.permute.xlu0 %2907
  %2911 = vset.pattern.permute.xlu0 0
  %2912 = vperm.xlu0 %2911, %v1394
  %v2913 = vpop.permute.xlu0 %2912
  %2916 = vset.pattern.permute.xlu0 0
  %2917 = vperm.xlu0 %2916, %v1409
  %v2918 = vpop.permute.xlu0 %2917
  %2921 = vset.pattern.permute.xlu0 0
  %2922 = vperm.xlu0 %2921, %v1424
  %v2923 = vpop.permute.xlu0 %2922
  %2926 = vset.pattern.permute.xlu0 0
  %2927 = vperm.xlu0 %2926, %v1439
  %v2928 = vpop.permute.xlu0 %2927
  %2931 = vset.pattern.permute.xlu0 0
  %2932 = vperm.xlu0 %2931, %v1454
  %v2933 = vpop.permute.xlu0 %2932
  %2936 = vset.pattern.permute.xlu0 0
  %2937 = vperm.xlu0 %2936, %v1469
  %v2938 = vpop.permute.xlu0 %2937
  %2941 = vset.pattern.permute.xlu0 0
  %2942 = vperm.xlu0 %2941, %v1484
  %v2943 = vpop.permute.xlu0 %2942
  %2946 = vset.pattern.permute.xlu0 0
  %2947 = vperm.xlu0 %2946, %v1499
  %v2948 = vpop.permute.xlu0 %2947
  %2951 = vset.pattern.permute.xlu0 0
  %2952 = vperm.xlu0 %2951, %v1514
  %v2953 = vpop.permute.xlu0 %2952
  %2956 = vset.pattern.permute.xlu0 0
  %2957 = vperm.xlu0 %2956, %v1529
  %v2958 = vpop.permute.xlu0 %2957
  %2961 = vset.pattern.permute.xlu0 0
  %2962 = vperm.xlu0 %2961, %v1544
  %v2963 = vpop.permute.xlu0 %2962
  %2966 = vset.pattern.permute.xlu0 0
  %2967 = vperm.xlu0 %2966, %v1559
  %v2968 = vpop.permute.xlu0 %2967
  %2971 = vset.pattern.permute.xlu0 0
  %2972 = vperm.xlu0 %2971, %v1574
  %v2973 = vpop.permute.xlu0 %2972
  %2976 = vset.pattern.permute.xlu0 0
  %2977 = vperm.xlu0 %2976, %v1589
  %v2978 = vpop.permute.xlu0 %2977
  %2981 = vset.pattern.permute.xlu0 0
  %2982 = vperm.xlu0 %2981, %v1604
  %v2983 = vpop.permute.xlu0 %2982
  %2986 = vset.pattern.permute.xlu0 0
  %2987 = vperm.xlu0 %2986, %v1619
  %v2988 = vpop.permute.xlu0 %2987
  %2991 = vset.pattern.permute.xlu0 0
  %2992 = vperm.xlu0 %2991, %v1634
  %v2993 = vpop.permute.xlu0 %2992
  %2996 = vset.pattern.permute.xlu0 0
  %2997 = vperm.xlu0 %2996, %v1649
  %v2998 = vpop.permute.xlu0 %2997
  %3001 = vset.pattern.permute.xlu0 0
  %3002 = vperm.xlu0 %3001, %v1664
  %v3003 = vpop.permute.xlu0 %3002
  %3006 = vset.pattern.permute.xlu0 0
  %3007 = vperm.xlu0 %3006, %v1679
  %v3008 = vpop.permute.xlu0 %3007
  %3011 = vset.pattern.permute.xlu0 0
  %3012 = vperm.xlu0 %3011, %v1694
  %v3013 = vpop.permute.xlu0 %3012
  %3016 = vset.pattern.permute.xlu0 0
  %3017 = vperm.xlu0 %3016, %v1709
  %v3018 = vpop.permute.xlu0 %3017
  %3021 = vset.pattern.permute.xlu0 0
  %3022 = vperm.xlu0 %3021, %v1724
  %v3023 = vpop.permute.xlu0 %3022
  %3026 = vset.pattern.permute.xlu0 0
  %3027 = vperm.xlu0 %3026, %v1739
  %v3028 = vpop.permute.xlu0 %3027
  %3031 = vset.pattern.permute.xlu0 0
  %3032 = vperm.xlu0 %3031, %v1754
  %v3033 = vpop.permute.xlu0 %3032
  %3036 = vset.pattern.permute.xlu0 0
  %3037 = vperm.xlu0 %3036, %v1769
  %v3038 = vpop.permute.xlu0 %3037
  %3041 = vset.pattern.permute.xlu0 0
  %3042 = vperm.xlu0 %3041, %v1784
  %v3043 = vpop.permute.xlu0 %3042
  %3046 = vset.pattern.permute.xlu0 0
  %3047 = vperm.xlu0 %3046, %v1799
  %v3048 = vpop.permute.xlu0 %3047
  %3051 = vset.pattern.permute.xlu0 0
  %3052 = vperm.xlu0 %3051, %v1814
  %v3053 = vpop.permute.xlu0 %3052
  %3056 = vset.pattern.permute.xlu0 0
  %3057 = vperm.xlu0 %3056, %v1829
  %v3058 = vpop.permute.xlu0 %3057
  %3061 = vset.pattern.permute.xlu0 0
  %3062 = vperm.xlu0 %3061, %v1844
  %v3063 = vpop.permute.xlu0 %3062
  %3066 = vset.pattern.permute.xlu0 0
  %3067 = vperm.xlu0 %3066, %v1859
  %v3068 = vpop.permute.xlu0 %3067
  %3071 = vset.pattern.permute.xlu0 0
  %3072 = vperm.xlu0 %3071, %v1874
  %v3073 = vpop.permute.xlu0 %3072
  %3076 = vset.pattern.permute.xlu0 0
  %3077 = vperm.xlu0 %3076, %v1889
  %v3078 = vpop.permute.xlu0 %3077
  %3081 = vset.pattern.permute.xlu0 0
  %3082 = vperm.xlu0 %3081, %v1904
  %v3083 = vpop.permute.xlu0 %3082
  %3086 = vset.pattern.permute.xlu0 0
  %3087 = vperm.xlu0 %3086, %v1919
  %v3088 = vpop.permute.xlu0 %3087
  %3091 = vset.pattern.permute.xlu0 0
  %3092 = vperm.xlu0 %3091, %v1934
  %v3093 = vpop.permute.xlu0 %3092
  %3096 = vset.pattern.permute.xlu0 0
  %3097 = vperm.xlu0 %3096, %v1949
  %v3098 = vpop.permute.xlu0 %3097
  %3101 = vset.pattern.permute.xlu0 0
  %3102 = vperm.xlu0 %3101, %v1964
  %v3103 = vpop.permute.xlu0 %3102
  %3106 = vset.pattern.permute.xlu0 0
  %3107 = vperm.xlu0 %3106, %v1979
  %v3108 = vpop.permute.xlu0 %3107
  %3111 = vset.pattern.permute.xlu0 0
  %3112 = vperm.xlu0 %3111, %v1994
  %v3113 = vpop.permute.xlu0 %3112
  %3116 = vset.pattern.permute.xlu0 0
  %3117 = vperm.xlu0 %3116, %v2009
  %v3118 = vpop.permute.xlu0 %3117
  %3121 = vset.pattern.permute.xlu0 0
  %3122 = vperm.xlu0 %3121, %v2024
  %v3123 = vpop.permute.xlu0 %3122
  %3126 = vset.pattern.permute.xlu0 0
  %3127 = vperm.xlu0 %3126, %v2039
  %v3128 = vpop.permute.xlu0 %3127
  %3131 = vset.pattern.permute.xlu0 0
  %3132 = vperm.xlu0 %3131, %v2054
  %v3133 = vpop.permute.xlu0 %3132
  %3136 = vset.pattern.permute.xlu0 0
  %3137 = vperm.xlu0 %3136, %v2069
  %v3138 = vpop.permute.xlu0 %3137
  %3141 = vset.pattern.permute.xlu0 0
  %3142 = vperm.xlu0 %3141, %v2084
  %v3143 = vpop.permute.xlu0 %3142
  %3146 = vset.pattern.permute.xlu0 0
  %3147 = vperm.xlu0 %3146, %v2099
  %v3148 = vpop.permute.xlu0 %3147
  %3151 = vset.pattern.permute.xlu0 0
  %3152 = vperm.xlu0 %3151, %v2114
  %v3153 = vpop.permute.xlu0 %3152
  %3156 = vset.pattern.permute.xlu0 0
  %3157 = vperm.xlu0 %3156, %v2129
  %v3158 = vpop.permute.xlu0 %3157
  %3161 = vset.pattern.permute.xlu0 0
  %3162 = vperm.xlu0 %3161, %v2144
  %v3163 = vpop.permute.xlu0 %3162
  %3166 = vset.pattern.permute.xlu0 0
  %3167 = vperm.xlu0 %3166, %v2159
  %v3168 = vpop.permute.xlu0 %3167
  %3171 = vset.pattern.permute.xlu0 0
  %3172 = vperm.xlu0 %3171, %v2174
  %v3173 = vpop.permute.xlu0 %3172
  %3176 = vset.pattern.permute.xlu0 0
  %3177 = vperm.xlu0 %3176, %v2189
  %v3178 = vpop.permute.xlu0 %3177
  %3181 = vset.pattern.permute.xlu0 0
  %3182 = vperm.xlu0 %3181, %v2204
  %v3183 = vpop.permute.xlu0 %3182
  %3186 = vset.pattern.permute.xlu0 0
  %3187 = vperm.xlu0 %3186, %v2219
  %v3188 = vpop.permute.xlu0 %3187
  %3191 = vset.pattern.permute.xlu0 0
  %3192 = vperm.xlu0 %3191, %v2234
  %v3193 = vpop.permute.xlu0 %3192
  %3196 = vset.pattern.permute.xlu0 0
  %3197 = vperm.xlu0 %3196, %v2249
  %v3198 = vpop.permute.xlu0 %3197
  %3201 = vset.pattern.permute.xlu0 0
  %3202 = vperm.xlu0 %3201, %v2264
  %v3203 = vpop.permute.xlu0 %3202
  %3206 = vset.pattern.permute.xlu0 0
  %3207 = vperm.xlu0 %3206, %v2279
  %v3208 = vpop.permute.xlu0 %3207
  %3211 = vset.pattern.permute.xlu0 0
  %3212 = vperm.xlu0 %3211, %v2294
  %v3213 = vpop.permute.xlu0 %3212
  %3216 = vset.pattern.permute.xlu0 0
  %3217 = vperm.xlu0 %3216, %v2309
  %v3218 = vpop.permute.xlu0 %3217
  %3221 = vset.pattern.permute.xlu0 0
  %3222 = vperm.xlu0 %3221, %v2324
  %v3223 = vpop.permute.xlu0 %3222
  %3226 = vset.pattern.permute.xlu0 0
  %3227 = vperm.xlu0 %3226, %v2339
  %v3228 = vpop.permute.xlu0 %3227
  %3231 = vset.pattern.permute.xlu0 0
  %3232 = vperm.xlu0 %3231, %v2354
  %v3233 = vpop.permute.xlu0 %3232
  %3236 = vset.pattern.permute.xlu0 0
  %3237 = vperm.xlu0 %3236, %v2369
  %v3238 = vpop.permute.xlu0 %3237
  %3241 = vset.pattern.permute.xlu0 0
  %3242 = vperm.xlu0 %3241, %v2384
  %v3243 = vpop.permute.xlu0 %3242
  %3246 = vset.pattern.permute.xlu0 0
  %3247 = vperm.xlu0 %3246, %v2399
  %v3248 = vpop.permute.xlu0 %3247
  %3251 = vset.pattern.permute.xlu0 0
  %3252 = vperm.xlu0 %3251, %v2414
  %v3253 = vpop.permute.xlu0 %3252
  %v3255 = vmul.f32 %v2415, %v2658
  %v3256 = vmul.f32 %v2416, %v2658
  %v3257 = vmul.f32 %v2417, %v2663
  %v3258 = vmul.f32 %v2418, %v2663
  %v3259 = vmul.f32 %v2419, %v2668
  %v3260 = vmul.f32 %v2420, %v2668
  %v3261 = vmul.f32 %v2421, %v2673
  %v3262 = vmul.f32 %v2422, %v2673
  %v3263 = vmul.f32 %v2423, %v2678
  %v3264 = vmul.f32 %v2424, %v2678
  %v3265 = vmul.f32 %v2425, %v2683
  %v3266 = vmul.f32 %v2426, %v2683
  %v3267 = vmul.f32 %v2427, %v2688
  %v3268 = vmul.f32 %v2428, %v2688
  %v3269 = vmul.f32 %v2429, %v2693
  %v3270 = vmul.f32 %v2430, %v2693
  %v3271 = vmul.f32 %v2431, %v2698
  %v3272 = vmul.f32 %v2432, %v2698
  %v3273 = vmul.f32 %v2433, %v2703
  %v3274 = vmul.f32 %v2434, %v2703
  %v3275 = vmul.f32 %v2435, %v2708
  %v3276 = vmul.f32 %v2436, %v2708
  %v3277 = vmul.f32 %v2437, %v2713
  %v3278 = vmul.f32 %v2438, %v2713
  %v3279 = vmul.f32 %v2439, %v2718
  %v3280 = vmul.f32 %v2440, %v2718
  %v3281 = vmul.f32 %v2441, %v2723
  %v3282 = vmul.f32 %v2442, %v2723
  %v3283 = vmul.f32 %v2443, %v2728
  %v3284 = vmul.f32 %v2444, %v2728
  %v3285 = vmul.f32 %v2445, %v2733
  %v3286 = vmul.f32 %v2446, %v2733
  %v3287 = vmul.f32 %v2447, %v2738
  %v3288 = vmul.f32 %v2448, %v2738
  %v3289 = vmul.f32 %v2449, %v2743
  %v3290 = vmul.f32 %v2450, %v2743
  %v3291 = vmul.f32 %v2451, %v2748
  %v3292 = vmul.f32 %v2452, %v2748
  %v3293 = vmul.f32 %v2453, %v2753
  %v3294 = vmul.f32 %v2454, %v2753
  %v3295 = vmul.f32 %v2455, %v2758
  %v3296 = vmul.f32 %v2456, %v2758
  %v3297 = vmul.f32 %v2457, %v2763
  %v3298 = vmul.f32 %v2458, %v2763
  %v3299 = vmul.f32 %v2459, %v2768
  %v3300 = vmul.f32 %v2460, %v2768
  %v3301 = vmul.f32 %v2461, %v2773
  %v3302 = vmul.f32 %v2462, %v2773
  %v3303 = vmul.f32 %v2463, %v2778
  %v3304 = vmul.f32 %v2464, %v2778
  %v3305 = vmul.f32 %v2465, %v2783
  %v3306 = vmul.f32 %v2466, %v2783
  %v3307 = vmul.f32 %v2467, %v2788
  %v3308 = vmul.f32 %v2468, %v2788
  %v3309 = vmul.f32 %v2469, %v2793
  %v3310 = vmul.f32 %v2470, %v2793
  %v3311 = vmul.f32 %v2471, %v2798
  %v3312 = vmul.f32 %v2472, %v2798
  %v3313 = vmul.f32 %v2473, %v2803
  %v3314 = vmul.f32 %v2474, %v2803
  %v3315 = vmul.f32 %v2475, %v2808
  %v3316 = vmul.f32 %v2476, %v2808
  %v3317 = vmul.f32 %v2477, %v2813
  %v3318 = vmul.f32 %v2478, %v2813
  %v3319 = vmul.f32 %v2479, %v2818
  %v3320 = vmul.f32 %v2480, %v2818
  %v3321 = vmul.f32 %v2481, %v2823
  %v3322 = vmul.f32 %v2482, %v2823
  %v3323 = vmul.f32 %v2483, %v2828
  %v3324 = vmul.f32 %v2484, %v2828
  %v3325 = vmul.f32 %v2485, %v2833
  %v3326 = vmul.f32 %v2486, %v2833
  %v3327 = vmul.f32 %v2487, %v2838
  %v3328 = vmul.f32 %v2488, %v2838
  %v3329 = vmul.f32 %v2489, %v2843
  %v3330 = vmul.f32 %v2490, %v2843
  %v3331 = vmul.f32 %v2491, %v2848
  %v3332 = vmul.f32 %v2492, %v2848
  %v3333 = vmul.f32 %v2493, %v2853
  %v3334 = vmul.f32 %v2494, %v2853
  %v3335 = vmul.f32 %v2495, %v2858
  %v3336 = vmul.f32 %v2496, %v2858
  %v3337 = vmul.f32 %v2497, %v2863
  %v3338 = vmul.f32 %v2498, %v2863
  %v3339 = vmul.f32 %v2499, %v2868
  %v3340 = vmul.f32 %v2500, %v2868
  %v3341 = vmul.f32 %v2501, %v2873
  %v3342 = vmul.f32 %v2502, %v2873
  %v3343 = vmul.f32 %v2503, %v2878
  %v3344 = vmul.f32 %v2504, %v2878
  %v3345 = vmul.f32 %v2505, %v2883
  %v3346 = vmul.f32 %v2506, %v2883
  %v3347 = vmul.f32 %v2507, %v2888
  %v3348 = vmul.f32 %v2508, %v2888
  %v3349 = vmul.f32 %v2509, %v2893
  %v3350 = vmul.f32 %v2510, %v2893
  %v3351 = vmul.f32 %v2511, %v2898
  %v3352 = vmul.f32 %v2512, %v2898
  %v3353 = vmul.f32 %v2513, %v2903
  %v3354 = vmul.f32 %v2514, %v2903
  %v3355 = vmul.f32 %v2515, %v2908
  %v3356 = vmul.f32 %v2516, %v2908
  %v3357 = vmul.f32 %v2517, %v2913
  %v3358 = vmul.f32 %v2518, %v2913
  %v3359 = vmul.f32 %v2519, %v2918
  %v3360 = vmul.f32 %v2520, %v2918
  %v3361 = vmul.f32 %v2521, %v2923
  %v3362 = vmul.f32 %v2522, %v2923
  %v3363 = vmul.f32 %v2523, %v2928
  %v3364 = vmul.f32 %v2524, %v2928
  %v3365 = vmul.f32 %v2525, %v2933
  %v3366 = vmul.f32 %v2526, %v2933
  %v3367 = vmul.f32 %v2527, %v2938
  %v3368 = vmul.f32 %v2528, %v2938
  %v3369 = vmul.f32 %v2529, %v2943
  %v3370 = vmul.f32 %v2530, %v2943
  %v3371 = vmul.f32 %v2531, %v2948
  %v3372 = vmul.f32 %v2532, %v2948
  %v3373 = vmul.f32 %v2533, %v2953
  %v3374 = vmul.f32 %v2534, %v2953
  %v3375 = vmul.f32 %v2535, %v2958
  %v3376 = vmul.f32 %v2536, %v2958
  %v3377 = vmul.f32 %v2537, %v2963
  %v3378 = vmul.f32 %v2538, %v2963
  %v3379 = vmul.f32 %v2539, %v2968
  %v3380 = vmul.f32 %v2540, %v2968
  %v3381 = vmul.f32 %v2541, %v2973
  %v3382 = vmul.f32 %v2542, %v2973
  %v3383 = vmul.f32 %v2543, %v2978
  %v3384 = vmul.f32 %v2544, %v2978
  %v3385 = vmul.f32 %v2545, %v2983
  %v3386 = vmul.f32 %v2546, %v2983
  %v3387 = vmul.f32 %v2547, %v2988
  %v3388 = vmul.f32 %v2548, %v2988
  %v3389 = vmul.f32 %v2549, %v2993
  %v3390 = vmul.f32 %v2550, %v2993
  %v3391 = vmul.f32 %v2551, %v2998
  %v3392 = vmul.f32 %v2552, %v2998
  %v3393 = vmul.f32 %v2553, %v3003
  %v3394 = vmul.f32 %v2554, %v3003
  %v3395 = vmul.f32 %v2555, %v3008
  %v3396 = vmul.f32 %v2556, %v3008
  %v3397 = vmul.f32 %v2557, %v3013
  %v3398 = vmul.f32 %v2558, %v3013
  %v3399 = vmul.f32 %v2559, %v3018
  %v3400 = vmul.f32 %v2560, %v3018
  %v3401 = vmul.f32 %v2561, %v3023
  %v3402 = vmul.f32 %v2562, %v3023
  %v3403 = vmul.f32 %v2563, %v3028
  %v3404 = vmul.f32 %v2564, %v3028
  %v3405 = vmul.f32 %v2565, %v3033
  %v3406 = vmul.f32 %v2566, %v3033
  %v3407 = vmul.f32 %v2567, %v3038
  %v3408 = vmul.f32 %v2568, %v3038
  %v3409 = vmul.f32 %v2569, %v3043
  %v3410 = vmul.f32 %v2570, %v3043
  %v3411 = vmul.f32 %v2571, %v3048
  %v3412 = vmul.f32 %v2572, %v3048
  %v3413 = vmul.f32 %v2573, %v3053
  %v3414 = vmul.f32 %v2574, %v3053
  %v3415 = vmul.f32 %v2575, %v3058
  %v3416 = vmul.f32 %v2576, %v3058
  %v3417 = vmul.f32 %v2577, %v3063
  %v3418 = vmul.f32 %v2578, %v3063
  %v3419 = vmul.f32 %v2579, %v3068
  %v3420 = vmul.f32 %v2580, %v3068
  %v3421 = vmul.f32 %v2581, %v3073
  %v3422 = vmul.f32 %v2582, %v3073
  %v3423 = vmul.f32 %v2583, %v3078
  %v3424 = vmul.f32 %v2584, %v3078
  %v3425 = vmul.f32 %v2585, %v3083
  %v3426 = vmul.f32 %v2586, %v3083
  %v3427 = vmul.f32 %v2587, %v3088
  %v3428 = vmul.f32 %v2588, %v3088
  %v3429 = vmul.f32 %v2589, %v3093
  %v3430 = vmul.f32 %v2590, %v3093
  %v3431 = vmul.f32 %v2591, %v3098
  %v3432 = vmul.f32 %v2592, %v3098
  %v3433 = vmul.f32 %v2593, %v3103
  %v3434 = vmul.f32 %v2594, %v3103
  %v3435 = vmul.f32 %v2595, %v3108
  %v3436 = vmul.f32 %v2596, %v3108
  %v3437 = vmul.f32 %v2597, %v3113
  %v3438 = vmul.f32 %v2598, %v3113
  %v3439 = vmul.f32 %v2599, %v3118
  %v3440 = vmul.f32 %v2600, %v3118
  %v3441 = vmul.f32 %v2601, %v3123
  %v3442 = vmul.f32 %v2602, %v3123
  %v3443 = vmul.f32 %v2603, %v3128
  %v3444 = vmul.f32 %v2604, %v3128
  %v3445 = vmul.f32 %v2605, %v3133
  %v3446 = vmul.f32 %v2606, %v3133
  %v3447 = vmul.f32 %v2607, %v3138
  %v3448 = vmul.f32 %v2608, %v3138
  %v3449 = vmul.f32 %v2609, %v3143
  %v3450 = vmul.f32 %v2610, %v3143
  %v3451 = vmul.f32 %v2611, %v3148
  %v3452 = vmul.f32 %v2612, %v3148
  %v3453 = vmul.f32 %v2613, %v3153
  %v3454 = vmul.f32 %v2614, %v3153
  %v3455 = vmul.f32 %v2615, %v3158
  %v3456 = vmul.f32 %v2616, %v3158
  %v3457 = vmul.f32 %v2617, %v3163
  %v3458 = vmul.f32 %v2618, %v3163
  %v3459 = vmul.f32 %v2619, %v3168
  %v3460 = vmul.f32 %v2620, %v3168
  %v3461 = vmul.f32 %v2621, %v3173
  %v3462 = vmul.f32 %v2622, %v3173
  %v3463 = vmul.f32 %v2623, %v3178
  %v3464 = vmul.f32 %v2624, %v3178
  %v3465 = vmul.f32 %v2625, %v3183
  %v3466 = vmul.f32 %v2626, %v3183
  %v3467 = vmul.f32 %v2627, %v3188
  %v3468 = vmul.f32 %v2628, %v3188
  %v3469 = vmul.f32 %v2629, %v3193
  %v3470 = vmul.f32 %v2630, %v3193
  %v3471 = vmul.f32 %v2631, %v3198
  %v3472 = vmul.f32 %v2632, %v3198
  %v3473 = vmul.f32 %v2633, %v3203
  %v3474 = vmul.f32 %v2634, %v3203
  %v3475 = vmul.f32 %v2635, %v3208
  %v3476 = vmul.f32 %v2636, %v3208
  %v3477 = vmul.f32 %v2637, %v3213
  %v3478 = vmul.f32 %v2638, %v3213
  %v3479 = vmul.f32 %v2639, %v3218
  %v3480 = vmul.f32 %v2640, %v3218
  %v3481 = vmul.f32 %v2641, %v3223
  %v3482 = vmul.f32 %v2642, %v3223
  %v3483 = vmul.f32 %v2643, %v3228
  %v3484 = vmul.f32 %v2644, %v3228
  %v3485 = vmul.f32 %v2645, %v3233
  %v3486 = vmul.f32 %v2646, %v3233
  %v3487 = vmul.f32 %v2647, %v3238
  %v3488 = vmul.f32 %v2648, %v3238
  %v3489 = vmul.f32 %v2649, %v3243
  %v3490 = vmul.f32 %v2650, %v3243
  %v3491 = vmul.f32 %v2651, %v3248
  %v3492 = vmul.f32 %v2652, %v3248
  %v3493 = vmul.f32 %v2653, %v3253
  %v3494 = vmul.f32 %v2654, %v3253
  %v3495 = vpack.c.bf16 %v3257, %v3255
  %v3496 = vpack.c.bf16 %v3258, %v3256
  %v3497 = vpack.c.bf16 %v3261, %v3259
  %v3498 = vpack.c.bf16 %v3262, %v3260
  %v3499 = vpack.c.bf16 %v3265, %v3263
  %v3500 = vpack.c.bf16 %v3266, %v3264
  %v3501 = vpack.c.bf16 %v3269, %v3267
  %v3502 = vpack.c.bf16 %v3270, %v3268
  %v3503 = vpack.c.bf16 %v3273, %v3271
  %v3504 = vpack.c.bf16 %v3274, %v3272
  %v3505 = vpack.c.bf16 %v3277, %v3275
  %v3506 = vpack.c.bf16 %v3278, %v3276
  %v3507 = vpack.c.bf16 %v3281, %v3279
  %v3508 = vpack.c.bf16 %v3282, %v3280
  %v3509 = vpack.c.bf16 %v3285, %v3283
  %v3510 = vpack.c.bf16 %v3286, %v3284
  %v3511 = vpack.c.bf16 %v3289, %v3287
  %v3512 = vpack.c.bf16 %v3290, %v3288
  %v3513 = vpack.c.bf16 %v3293, %v3291
  %v3514 = vpack.c.bf16 %v3294, %v3292
  %v3515 = vpack.c.bf16 %v3297, %v3295
  %v3516 = vpack.c.bf16 %v3298, %v3296
  %v3517 = vpack.c.bf16 %v3301, %v3299
  %v3518 = vpack.c.bf16 %v3302, %v3300
  %v3519 = vpack.c.bf16 %v3305, %v3303
  %v3520 = vpack.c.bf16 %v3306, %v3304
  %v3521 = vpack.c.bf16 %v3309, %v3307
  %v3522 = vpack.c.bf16 %v3310, %v3308
  %v3523 = vpack.c.bf16 %v3313, %v3311
  %v3524 = vpack.c.bf16 %v3314, %v3312
  %v3525 = vpack.c.bf16 %v3317, %v3315
  %v3526 = vpack.c.bf16 %v3318, %v3316
  %v3527 = vpack.c.bf16 %v3321, %v3319
  %v3528 = vpack.c.bf16 %v3322, %v3320
  %v3529 = vpack.c.bf16 %v3325, %v3323
  %v3530 = vpack.c.bf16 %v3326, %v3324
  %v3531 = vpack.c.bf16 %v3329, %v3327
  %v3532 = vpack.c.bf16 %v3330, %v3328
  %v3533 = vpack.c.bf16 %v3333, %v3331
  %v3534 = vpack.c.bf16 %v3334, %v3332
  %v3535 = vpack.c.bf16 %v3337, %v3335
  %v3536 = vpack.c.bf16 %v3338, %v3336
  %v3537 = vpack.c.bf16 %v3341, %v3339
  %v3538 = vpack.c.bf16 %v3342, %v3340
  %v3539 = vpack.c.bf16 %v3345, %v3343
  %v3540 = vpack.c.bf16 %v3346, %v3344
  %v3541 = vpack.c.bf16 %v3349, %v3347
  %v3542 = vpack.c.bf16 %v3350, %v3348
  %v3543 = vpack.c.bf16 %v3353, %v3351
  %v3544 = vpack.c.bf16 %v3354, %v3352
  %v3545 = vpack.c.bf16 %v3357, %v3355
  %v3546 = vpack.c.bf16 %v3358, %v3356
  %v3547 = vpack.c.bf16 %v3361, %v3359
  %v3548 = vpack.c.bf16 %v3362, %v3360
  %v3549 = vpack.c.bf16 %v3365, %v3363
  %v3550 = vpack.c.bf16 %v3366, %v3364
  %v3551 = vpack.c.bf16 %v3369, %v3367
  %v3552 = vpack.c.bf16 %v3370, %v3368
  %v3553 = vpack.c.bf16 %v3373, %v3371
  %v3554 = vpack.c.bf16 %v3374, %v3372
  %v3555 = vpack.c.bf16 %v3377, %v3375
  %v3556 = vpack.c.bf16 %v3378, %v3376
  %v3557 = vpack.c.bf16 %v3381, %v3379
  %v3558 = vpack.c.bf16 %v3382, %v3380
  %v3559 = vpack.c.bf16 %v3385, %v3383
  %v3560 = vpack.c.bf16 %v3386, %v3384
  %v3561 = vpack.c.bf16 %v3389, %v3387
  %v3562 = vpack.c.bf16 %v3390, %v3388
  %v3563 = vpack.c.bf16 %v3393, %v3391
  %v3564 = vpack.c.bf16 %v3394, %v3392
  %v3565 = vpack.c.bf16 %v3397, %v3395
  %v3566 = vpack.c.bf16 %v3398, %v3396
  %v3567 = vpack.c.bf16 %v3401, %v3399
  %v3568 = vpack.c.bf16 %v3402, %v3400
  %v3569 = vpack.c.bf16 %v3405, %v3403
  %v3570 = vpack.c.bf16 %v3406, %v3404
  %v3571 = vpack.c.bf16 %v3409, %v3407
  %v3572 = vpack.c.bf16 %v3410, %v3408
  %v3573 = vpack.c.bf16 %v3413, %v3411
  %v3574 = vpack.c.bf16 %v3414, %v3412
  %v3575 = vpack.c.bf16 %v3417, %v3415
  %v3576 = vpack.c.bf16 %v3418, %v3416
  %v3577 = vpack.c.bf16 %v3421, %v3419
  %v3578 = vpack.c.bf16 %v3422, %v3420
  %v3579 = vpack.c.bf16 %v3425, %v3423
  %v3580 = vpack.c.bf16 %v3426, %v3424
  %v3581 = vpack.c.bf16 %v3429, %v3427
  %v3582 = vpack.c.bf16 %v3430, %v3428
  %v3583 = vpack.c.bf16 %v3433, %v3431
  %v3584 = vpack.c.bf16 %v3434, %v3432
  %v3585 = vpack.c.bf16 %v3437, %v3435
  %v3586 = vpack.c.bf16 %v3438, %v3436
  %v3587 = vpack.c.bf16 %v3441, %v3439
  %v3588 = vpack.c.bf16 %v3442, %v3440
  %v3589 = vpack.c.bf16 %v3445, %v3443
  %v3590 = vpack.c.bf16 %v3446, %v3444
  %v3591 = vpack.c.bf16 %v3449, %v3447
  %v3592 = vpack.c.bf16 %v3450, %v3448
  %v3593 = vpack.c.bf16 %v3453, %v3451
  %v3594 = vpack.c.bf16 %v3454, %v3452
  %v3595 = vpack.c.bf16 %v3457, %v3455
  %v3596 = vpack.c.bf16 %v3458, %v3456
  %v3597 = vpack.c.bf16 %v3461, %v3459
  %v3598 = vpack.c.bf16 %v3462, %v3460
  %v3599 = vpack.c.bf16 %v3465, %v3463
  %v3600 = vpack.c.bf16 %v3466, %v3464
  %v3601 = vpack.c.bf16 %v3469, %v3467
  %v3602 = vpack.c.bf16 %v3470, %v3468
  %v3603 = vpack.c.bf16 %v3473, %v3471
  %v3604 = vpack.c.bf16 %v3474, %v3472
  %v3605 = vpack.c.bf16 %v3477, %v3475
  %v3606 = vpack.c.bf16 %v3478, %v3476
  %v3607 = vpack.c.bf16 %v3481, %v3479
  %v3608 = vpack.c.bf16 %v3482, %v3480
  %v3609 = vpack.c.bf16 %v3485, %v3483
  %v3610 = vpack.c.bf16 %v3486, %v3484
  %v3611 = vpack.c.bf16 %v3489, %v3487
  %v3612 = vpack.c.bf16 %v3490, %v3488
  %v3613 = vpack.c.bf16 %v3493, %v3491
  %v3614 = vpack.c.bf16 %v3494, %v3492
  %v3615 = vld [vmem:[%s2] sm:$0xff]
  %v3616 = vld [vmem:[%s2 + $0x8] sm:$0xff]
  %v3617 = vld [vmem:[%s2 + $0x10] sm:$0xff]
  %v3618 = vld [vmem:[%s2 + $0x18] sm:$0xff]
  %v3619 = vld [vmem:[%s2 + $0x20] sm:$0xff]
  %v3620 = vld [vmem:[%s2 + $0x28] sm:$0xff]
  %v3621 = vld [vmem:[%s2 + $0x30] sm:$0xff]
  %v3622 = vld [vmem:[%s2 + $0x38] sm:$0xff]
  %v3623 = vld [vmem:[%s2 + $0x40] sm:$0xff]
  %v3624 = vld [vmem:[%s2 + $0x48] sm:$0xff]
  %v3625 = vld [vmem:[%s2 + $0x50] sm:$0xff]
  %v3626 = vld [vmem:[%s2 + $0x58] sm:$0xff]
  %v3627 = vld [vmem:[%s2 + $0x60] sm:$0xff]
  %v3628 = vld [vmem:[%s2 + $0x68] sm:$0xff]
  %v3629 = vld [vmem:[%s2 + $0x70] sm:$0xff]
  %v3630 = vld [vmem:[%s2 + $0x78] sm:$0xff]
  %v3631 = vld [vmem:[%s2 + $0x80] sm:$0xff]
  %v3632 = vld [vmem:[%s2 + $0x88] sm:$0xff]
  %v3633 = vld [vmem:[%s2 + $0x90] sm:$0xff]
  %v3634 = vld [vmem:[%s2 + $0x98] sm:$0xff]
  %v3635 = vld [vmem:[%s2 + $0xa0] sm:$0xff]
  %v3636 = vld [vmem:[%s2 + $0xa8] sm:$0xff]
  %v3637 = vld [vmem:[%s2 + $0xb0] sm:$0xff]
  %v3638 = vld [vmem:[%s2 + $0xb8] sm:$0xff]
  %v3639 = vld [vmem:[%s2 + $0xc0] sm:$0xff]
  %v3640 = vld [vmem:[%s2 + $0xc8] sm:$0xff]
  %v3641 = vld [vmem:[%s2 + $0xd0] sm:$0xff]
  %v3642 = vld [vmem:[%s2 + $0xd8] sm:$0xff]
  %v3643 = vld [vmem:[%s2 + $0xe0] sm:$0xff]
  %v3644 = vld [vmem:[%s2 + $0xe8] sm:$0xff]
  %v3645 = vld [vmem:[%s2 + $0xf0] sm:$0xff]
  %v3646 = vld [vmem:[%s2 + $0xf8] sm:$0xff]
  %v3647 = vld [vmem:[%s2 + $0x100] sm:$0xff]
  %v3648 = vld [vmem:[%s2 + $0x108] sm:$0xff]
  %v3649 = vld [vmem:[%s2 + $0x110] sm:$0xff]
  %v3650 = vld [vmem:[%s2 + $0x118] sm:$0xff]
  %v3651 = vld [vmem:[%s2 + $0x120] sm:$0xff]
  %v3652 = vld [vmem:[%s2 + $0x128] sm:$0xff]
  %v3653 = vld [vmem:[%s2 + $0x130] sm:$0xff]
  %v3654 = vld [vmem:[%s2 + $0x138] sm:$0xff]
  %v3655 = vld [vmem:[%s2 + $0x140] sm:$0xff]
  %v3656 = vld [vmem:[%s2 + $0x148] sm:$0xff]
  %v3657 = vld [vmem:[%s2 + $0x150] sm:$0xff]
  %v3658 = vld [vmem:[%s2 + $0x158] sm:$0xff]
  %v3659 = vld [vmem:[%s2 + $0x160] sm:$0xff]
  %v3660 = vld [vmem:[%s2 + $0x168] sm:$0xff]
  %v3661 = vld [vmem:[%s2 + $0x170] sm:$0xff]
  %v3662 = vld [vmem:[%s2 + $0x178] sm:$0xff]
  %v3663 = vld [vmem:[%s2 + $0x180] sm:$0xff]
  %v3664 = vld [vmem:[%s2 + $0x188] sm:$0xff]
  %v3665 = vld [vmem:[%s2 + $0x190] sm:$0xff]
  %v3666 = vld [vmem:[%s2 + $0x198] sm:$0xff]
  %v3667 = vld [vmem:[%s2 + $0x1a0] sm:$0xff]
  %v3668 = vld [vmem:[%s2 + $0x1a8] sm:$0xff]
  %v3669 = vld [vmem:[%s2 + $0x1b0] sm:$0xff]
  %v3670 = vld [vmem:[%s2 + $0x1b8] sm:$0xff]
  %v3671 = vld [vmem:[%s2 + $0x1c0] sm:$0xff]
  %v3672 = vld [vmem:[%s2 + $0x1c8] sm:$0xff]
  %v3673 = vld [vmem:[%s2 + $0x1d0] sm:$0xff]
  %v3674 = vld [vmem:[%s2 + $0x1d8] sm:$0xff]
  %v3675 = vld [vmem:[%s2 + $0x1e0] sm:$0xff]
  %v3676 = vld [vmem:[%s2 + $0x1e8] sm:$0xff]
  %v3677 = vld [vmem:[%s2 + $0x1f0] sm:$0xff]
  %v3678 = vld [vmem:[%s2 + $0x1f8] sm:$0xff]
  %v3679 = vld [vmem:[%s2 + $0x200] sm:$0xff]
  %v3680 = vld [vmem:[%s2 + $0x208] sm:$0xff]
  %v3681 = vld [vmem:[%s2 + $0x210] sm:$0xff]
  %v3682 = vld [vmem:[%s2 + $0x218] sm:$0xff]
  %v3683 = vld [vmem:[%s2 + $0x220] sm:$0xff]
  %v3684 = vld [vmem:[%s2 + $0x228] sm:$0xff]
  %v3685 = vld [vmem:[%s2 + $0x230] sm:$0xff]
  %v3686 = vld [vmem:[%s2 + $0x238] sm:$0xff]
  %v3687 = vld [vmem:[%s2 + $0x240] sm:$0xff]
  %v3688 = vld [vmem:[%s2 + $0x248] sm:$0xff]
  %v3689 = vld [vmem:[%s2 + $0x250] sm:$0xff]
  %v3690 = vld [vmem:[%s2 + $0x258] sm:$0xff]
  %v3691 = vld [vmem:[%s2 + $0x260] sm:$0xff]
  %v3692 = vld [vmem:[%s2 + $0x268] sm:$0xff]
  %v3693 = vld [vmem:[%s2 + $0x270] sm:$0xff]
  %v3694 = vld [vmem:[%s2 + $0x278] sm:$0xff]
  %v3775 = vunpack.c.l.b16 %v3615
  %v3776 = vunpack.c.h.b16 %v3615
  %v3777 = vunpack.c.l.b16 %v3616
  %v3778 = vunpack.c.h.b16 %v3616
  %v3779 = vunpack.c.l.b16 %v3617
  %v3780 = vunpack.c.h.b16 %v3617
  %v3781 = vunpack.c.l.b16 %v3618
  %v3782 = vunpack.c.h.b16 %v3618
  %v3783 = vunpack.c.l.b16 %v3619
  %v3784 = vunpack.c.h.b16 %v3619
  %v3785 = vunpack.c.l.b16 %v3620
  %v3786 = vunpack.c.h.b16 %v3620
  %v3787 = vunpack.c.l.b16 %v3621
  %v3788 = vunpack.c.h.b16 %v3621
  %v3789 = vunpack.c.l.b16 %v3622
  %v3790 = vunpack.c.h.b16 %v3622
  %v3791 = vunpack.c.l.b16 %v3623
  %v3792 = vunpack.c.h.b16 %v3623
  %v3793 = vunpack.c.l.b16 %v3624
  %v3794 = vunpack.c.h.b16 %v3624
  %v3795 = vunpack.c.l.b16 %v3625
  %v3796 = vunpack.c.h.b16 %v3625
  %v3797 = vunpack.c.l.b16 %v3626
  %v3798 = vunpack.c.h.b16 %v3626
  %v3799 = vunpack.c.l.b16 %v3627
  %v3800 = vunpack.c.h.b16 %v3627
  %v3801 = vunpack.c.l.b16 %v3628
  %v3802 = vunpack.c.h.b16 %v3628
  %v3803 = vunpack.c.l.b16 %v3629
  %v3804 = vunpack.c.h.b16 %v3629
  %v3805 = vunpack.c.l.b16 %v3630
  %v3806 = vunpack.c.h.b16 %v3630
  %v3807 = vunpack.c.l.b16 %v3631
  %v3808 = vunpack.c.h.b16 %v3631
  %v3809 = vunpack.c.l.b16 %v3632
  %v3810 = vunpack.c.h.b16 %v3632
  %v3811 = vunpack.c.l.b16 %v3633
  %v3812 = vunpack.c.h.b16 %v3633
  %v3813 = vunpack.c.l.b16 %v3634
  %v3814 = vunpack.c.h.b16 %v3634
  %v3815 = vunpack.c.l.b16 %v3635
  %v3816 = vunpack.c.h.b16 %v3635
  %v3817 = vunpack.c.l.b16 %v3636
  %v3818 = vunpack.c.h.b16 %v3636
  %v3819 = vunpack.c.l.b16 %v3637
  %v3820 = vunpack.c.h.b16 %v3637
  %v3821 = vunpack.c.l.b16 %v3638
  %v3822 = vunpack.c.h.b16 %v3638
  %v3823 = vunpack.c.l.b16 %v3639
  %v3824 = vunpack.c.h.b16 %v3639
  %v3825 = vunpack.c.l.b16 %v3640
  %v3826 = vunpack.c.h.b16 %v3640
  %v3827 = vunpack.c.l.b16 %v3641
  %v3828 = vunpack.c.h.b16 %v3641
  %v3829 = vunpack.c.l.b16 %v3642
  %v3830 = vunpack.c.h.b16 %v3642
  %v3831 = vunpack.c.l.b16 %v3643
  %v3832 = vunpack.c.h.b16 %v3643
  %v3833 = vunpack.c.l.b16 %v3644
  %v3834 = vunpack.c.h.b16 %v3644
  %v3835 = vunpack.c.l.b16 %v3645
  %v3836 = vunpack.c.h.b16 %v3645
  %v3837 = vunpack.c.l.b16 %v3646
  %v3838 = vunpack.c.h.b16 %v3646
  %v3839 = vunpack.c.l.b16 %v3647
  %v3840 = vunpack.c.h.b16 %v3647
  %v3841 = vunpack.c.l.b16 %v3648
  %v3842 = vunpack.c.h.b16 %v3648
  %v3843 = vunpack.c.l.b16 %v3649
  %v3844 = vunpack.c.h.b16 %v3649
  %v3845 = vunpack.c.l.b16 %v3650
  %v3846 = vunpack.c.h.b16 %v3650
  %v3847 = vunpack.c.l.b16 %v3651
  %v3848 = vunpack.c.h.b16 %v3651
  %v3849 = vunpack.c.l.b16 %v3652
  %v3850 = vunpack.c.h.b16 %v3652
  %v3851 = vunpack.c.l.b16 %v3653
  %v3852 = vunpack.c.h.b16 %v3653
  %v3853 = vunpack.c.l.b16 %v3654
  %v3854 = vunpack.c.h.b16 %v3654
  %v3855 = vunpack.c.l.b16 %v3655
  %v3856 = vunpack.c.h.b16 %v3655
  %v3857 = vunpack.c.l.b16 %v3656
  %v3858 = vunpack.c.h.b16 %v3656
  %v3859 = vunpack.c.l.b16 %v3657
  %v3860 = vunpack.c.h.b16 %v3657
  %v3861 = vunpack.c.l.b16 %v3658
  %v3862 = vunpack.c.h.b16 %v3658
  %v3863 = vunpack.c.l.b16 %v3659
  %v3864 = vunpack.c.h.b16 %v3659
  %v3865 = vunpack.c.l.b16 %v3660
  %v3866 = vunpack.c.h.b16 %v3660
  %v3867 = vunpack.c.l.b16 %v3661
  %v3868 = vunpack.c.h.b16 %v3661
  %v3869 = vunpack.c.l.b16 %v3662
  %v3870 = vunpack.c.h.b16 %v3662
  %v3871 = vunpack.c.l.b16 %v3663
  %v3872 = vunpack.c.h.b16 %v3663
  %v3873 = vunpack.c.l.b16 %v3664
  %v3874 = vunpack.c.h.b16 %v3664
  %v3875 = vunpack.c.l.b16 %v3665
  %v3876 = vunpack.c.h.b16 %v3665
  %v3877 = vunpack.c.l.b16 %v3666
  %v3878 = vunpack.c.h.b16 %v3666
  %v3879 = vunpack.c.l.b16 %v3667
  %v3880 = vunpack.c.h.b16 %v3667
  %v3881 = vunpack.c.l.b16 %v3668
  %v3882 = vunpack.c.h.b16 %v3668
  %v3883 = vunpack.c.l.b16 %v3669
  %v3884 = vunpack.c.h.b16 %v3669
  %v3885 = vunpack.c.l.b16 %v3670
  %v3886 = vunpack.c.h.b16 %v3670
  %v3887 = vunpack.c.l.b16 %v3671
  %v3888 = vunpack.c.h.b16 %v3671
  %v3889 = vunpack.c.l.b16 %v3672
  %v3890 = vunpack.c.h.b16 %v3672
  %v3891 = vunpack.c.l.b16 %v3673
  %v3892 = vunpack.c.h.b16 %v3673
  %v3893 = vunpack.c.l.b16 %v3674
  %v3894 = vunpack.c.h.b16 %v3674
  %v3895 = vunpack.c.l.b16 %v3675
  %v3896 = vunpack.c.h.b16 %v3675
  %v3897 = vunpack.c.l.b16 %v3676
  %v3898 = vunpack.c.h.b16 %v3676
  %v3899 = vunpack.c.l.b16 %v3677
  %v3900 = vunpack.c.h.b16 %v3677
  %v3901 = vunpack.c.l.b16 %v3678
  %v3902 = vunpack.c.h.b16 %v3678
  %v3903 = vunpack.c.l.b16 %v3679
  %v3904 = vunpack.c.h.b16 %v3679
  %v3905 = vunpack.c.l.b16 %v3680
  %v3906 = vunpack.c.h.b16 %v3680
  %v3907 = vunpack.c.l.b16 %v3681
  %v3908 = vunpack.c.h.b16 %v3681
  %v3909 = vunpack.c.l.b16 %v3682
  %v3910 = vunpack.c.h.b16 %v3682
  %v3911 = vunpack.c.l.b16 %v3683
  %v3912 = vunpack.c.h.b16 %v3683
  %v3913 = vunpack.c.l.b16 %v3684
  %v3914 = vunpack.c.h.b16 %v3684
  %v3915 = vunpack.c.l.b16 %v3685
  %v3916 = vunpack.c.h.b16 %v3685
  %v3917 = vunpack.c.l.b16 %v3686
  %v3918 = vunpack.c.h.b16 %v3686
  %v3919 = vunpack.c.l.b16 %v3687
  %v3920 = vunpack.c.h.b16 %v3687
  %v3921 = vunpack.c.l.b16 %v3688
  %v3922 = vunpack.c.h.b16 %v3688
  %v3923 = vunpack.c.l.b16 %v3689
  %v3924 = vunpack.c.h.b16 %v3689
  %v3925 = vunpack.c.l.b16 %v3690
  %v3926 = vunpack.c.h.b16 %v3690
  %v3927 = vunpack.c.l.b16 %v3691
  %v3928 = vunpack.c.h.b16 %v3691
  %v3929 = vunpack.c.l.b16 %v3692
  %v3930 = vunpack.c.h.b16 %v3692
  %v3931 = vunpack.c.l.b16 %v3693
  %v3932 = vunpack.c.h.b16 %v3693
  %v3933 = vunpack.c.l.b16 %v3694
  %v3934 = vunpack.c.h.b16 %v3694
  %v3935 = vpack.c.b16 %v3783, %v3775
  %v3936 = vpack.c.b16 %v3784, %v3776
  %v3937 = vpack.c.b16 %v3785, %v3777
  %v3938 = vpack.c.b16 %v3786, %v3778
  %v3939 = vpack.c.b16 %v3787, %v3779
  %v3940 = vpack.c.b16 %v3788, %v3780
  %v3941 = vpack.c.b16 %v3789, %v3781
  %v3942 = vpack.c.b16 %v3790, %v3782
  %v3943 = vpack.c.b16 %v3799, %v3791
  %v3944 = vpack.c.b16 %v3800, %v3792
  %v3945 = vpack.c.b16 %v3801, %v3793
  %v3946 = vpack.c.b16 %v3802, %v3794
  %v3947 = vpack.c.b16 %v3803, %v3795
  %v3948 = vpack.c.b16 %v3804, %v3796
  %v3949 = vpack.c.b16 %v3805, %v3797
  %v3950 = vpack.c.b16 %v3806, %v3798
  %v3951 = vpack.c.b16 %v3815, %v3807
  %v3952 = vpack.c.b16 %v3816, %v3808
  %v3953 = vpack.c.b16 %v3817, %v3809
  %v3954 = vpack.c.b16 %v3818, %v3810
  %v3955 = vpack.c.b16 %v3819, %v3811
  %v3956 = vpack.c.b16 %v3820, %v3812
  %v3957 = vpack.c.b16 %v3821, %v3813
  %v3958 = vpack.c.b16 %v3822, %v3814
  %v3959 = vpack.c.b16 %v3831, %v3823
  %v3960 = vpack.c.b16 %v3832, %v3824
  %v3961 = vpack.c.b16 %v3833, %v3825
  %v3962 = vpack.c.b16 %v3834, %v3826
  %v3963 = vpack.c.b16 %v3835, %v3827
  %v3964 = vpack.c.b16 %v3836, %v3828
  %v3965 = vpack.c.b16 %v3837, %v3829
  %v3966 = vpack.c.b16 %v3838, %v3830
  %v3967 = vpack.c.b16 %v3847, %v3839
  %v3968 = vpack.c.b16 %v3848, %v3840
  %v3969 = vpack.c.b16 %v3849, %v3841
  %v3970 = vpack.c.b16 %v3850, %v3842
  %v3971 = vpack.c.b16 %v3851, %v3843
  %v3972 = vpack.c.b16 %v3852, %v3844
  %v3973 = vpack.c.b16 %v3853, %v3845
  %v3974 = vpack.c.b16 %v3854, %v3846
  %v3975 = vpack.c.b16 %v3863, %v3855
  %v3976 = vpack.c.b16 %v3864, %v3856
  %v3977 = vpack.c.b16 %v3865, %v3857
  %v3978 = vpack.c.b16 %v3866, %v3858
  %v3979 = vpack.c.b16 %v3867, %v3859
  %v3980 = vpack.c.b16 %v3868, %v3860
  %v3981 = vpack.c.b16 %v3869, %v3861
  %v3982 = vpack.c.b16 %v3870, %v3862
  %v3983 = vpack.c.b16 %v3879, %v3871
  %v3984 = vpack.c.b16 %v3880, %v3872
  %v3985 = vpack.c.b16 %v3881, %v3873
  %v3986 = vpack.c.b16 %v3882, %v3874
  %v3987 = vpack.c.b16 %v3883, %v3875
  %v3988 = vpack.c.b16 %v3884, %v3876
  %v3989 = vpack.c.b16 %v3885, %v3877
  %v3990 = vpack.c.b16 %v3886, %v3878
  %v3991 = vpack.c.b16 %v3895, %v3887
  %v3992 = vpack.c.b16 %v3896, %v3888
  %v3993 = vpack.c.b16 %v3897, %v3889
  %v3994 = vpack.c.b16 %v3898, %v3890
  %v3995 = vpack.c.b16 %v3899, %v3891
  %v3996 = vpack.c.b16 %v3900, %v3892
  %v3997 = vpack.c.b16 %v3901, %v3893
  %v3998 = vpack.c.b16 %v3902, %v3894
  %v3999 = vpack.c.b16 %v3911, %v3903
  %v4000 = vpack.c.b16 %v3912, %v3904
  %v4001 = vpack.c.b16 %v3913, %v3905
  %v4002 = vpack.c.b16 %v3914, %v3906
  %v4003 = vpack.c.b16 %v3915, %v3907
  %v4004 = vpack.c.b16 %v3916, %v3908
  %v4005 = vpack.c.b16 %v3917, %v3909
  %v4006 = vpack.c.b16 %v3918, %v3910
  %v4007 = vpack.c.b16 %v3927, %v3919
  %v4008 = vpack.c.b16 %v3928, %v3920
  %v4009 = vpack.c.b16 %v3929, %v3921
  %v4010 = vpack.c.b16 %v3930, %v3922
  %v4011 = vpack.c.b16 %v3931, %v3923
  %v4012 = vpack.c.b16 %v3932, %v3924
  %v4013 = vpack.c.b16 %v3933, %v3925
  %v4014 = vpack.c.b16 %v3934, %v3926
  %vm4085 = vcmask 523264
  %v4087 = vsel %vm4085, %v3942, 0
  %v4090 = vsel %vm4085, %v3950, 0
  %v4093 = vsel %vm4085, %v3958, 0
  %v4096 = vsel %vm4085, %v3966, 0
  %v4099 = vsel %vm4085, %v3974, 0
  %v4102 = vsel %vm4085, %v3982, 0
  %v4105 = vsel %vm4085, %v3990, 0
  %v4108 = vsel %vm4085, %v3998, 0
  %v4111 = vsel %vm4085, %v4006, 0
  %v4114 = vsel %vm4085, %v4014, 0
  %4116 = vmatpush.bf16.msra.mxu0 %v3509
  %4117 = vmatpush.bf16.msra.mxu0 %v3507
  %4118 = vmatpush.bf16.msra.mxu0 %v3505
  %4119 = vmatpush.bf16.msra.mxu0 %v3503
  %4120 = vmatpush.bf16.msra.mxu0 %v3501
  %4121 = vmatpush.bf16.msra.mxu0 %v3499
  %4122 = vmatpush.bf16.msra.mxu0 %v3497
  %4123 = vmatpush.bf16.msra.mxu0 %v3495
  %4124 = vmatmul.bf16.gmra.mxu0 %v3935
  %v4125 = vpop.f32.mrf.mxu0
  %v4126 = vadd.f32 0.0, %v4125
  %v4127 = vpop.f32.mrf.mxu0
  %v4128 = vadd.f32 0.0, %v4127
  %4129 = vmatmul.bf16.gmra.mxu0 %v3943
  %v4130 = vpop.f32.mrf.mxu0
  %v4131 = vadd.f32 0.0, %v4130
  %v4132 = vpop.f32.mrf.mxu0
  %v4133 = vadd.f32 0.0, %v4132
  %4134 = vmatmul.bf16.gmra.mxu0 %v3951
  %v4135 = vpop.f32.mrf.mxu0
  %v4136 = vadd.f32 0.0, %v4135
  %v4137 = vpop.f32.mrf.mxu0
  %v4138 = vadd.f32 0.0, %v4137
  %4139 = vmatmul.bf16.gmra.mxu0 %v3959
  %v4140 = vpop.f32.mrf.mxu0
  %v4141 = vadd.f32 0.0, %v4140
  %v4142 = vpop.f32.mrf.mxu0
  %v4143 = vadd.f32 0.0, %v4142
  %4144 = vmatmul.bf16.gmra.mxu0 %v3967
  %v4145 = vpop.f32.mrf.mxu0
  %v4146 = vadd.f32 0.0, %v4145
  %v4147 = vpop.f32.mrf.mxu0
  %v4148 = vadd.f32 0.0, %v4147
  %4149 = vmatmul.bf16.gmra.mxu0 %v3975
  %v4150 = vpop.f32.mrf.mxu0
  %v4151 = vadd.f32 0.0, %v4150
  %v4152 = vpop.f32.mrf.mxu0
  %v4153 = vadd.f32 0.0, %v4152
  %4154 = vmatmul.bf16.gmra.mxu0 %v3983
  %v4155 = vpop.f32.mrf.mxu0
  %v4156 = vadd.f32 0.0, %v4155
  %v4157 = vpop.f32.mrf.mxu0
  %v4158 = vadd.f32 0.0, %v4157
  %4159 = vmatmul.bf16.gmra.mxu0 %v3991
  %v4160 = vpop.f32.mrf.mxu0
  %v4161 = vadd.f32 0.0, %v4160
  %v4162 = vpop.f32.mrf.mxu0
  %v4163 = vadd.f32 0.0, %v4162
  %4164 = vmatmul.bf16.gmra.mxu0 %v3999
  %v4165 = vpop.f32.mrf.mxu0
  %v4166 = vadd.f32 0.0, %v4165
  %v4167 = vpop.f32.mrf.mxu0
  %v4168 = vadd.f32 0.0, %v4167
  %4169 = vmatmul.bf16.gmra.mxu0 %v4007
  %v4170 = vpop.f32.mrf.mxu0
  %v4171 = vadd.f32 0.0, %v4170
  %v4172 = vpop.f32.mrf.mxu0
  %v4173 = vadd.f32 0.0, %v4172
  %4174 = vdwg.mxu0
  %4175 = vmatpush.bf16.msra.mxu0 %v3525
  %4176 = vmatpush.bf16.msra.mxu0 %v3523
  %4177 = vmatpush.bf16.msra.mxu0 %v3521
  %4178 = vmatpush.bf16.msra.mxu0 %v3519
  %4179 = vmatpush.bf16.msra.mxu0 %v3517
  %4180 = vmatpush.bf16.msra.mxu0 %v3515
  %4181 = vmatpush.bf16.msra.mxu0 %v3513
  %4182 = vmatpush.bf16.msra.mxu0 %v3511
  %4183 = vmatmul.bf16.gmra.mxu0 %v3936
  %v4184 = vpop.f32.mrf.mxu0
  %v4185 = vadd.f32 %v4126, %v4184
  %v4186 = vpop.f32.mrf.mxu0
  %v4187 = vadd.f32 %v4128, %v4186
  %4188 = vmatmul.bf16.gmra.mxu0 %v3944
  %v4189 = vpop.f32.mrf.mxu0
  %v4190 = vadd.f32 %v4131, %v4189
  %v4191 = vpop.f32.mrf.mxu0
  %v4192 = vadd.f32 %v4133, %v4191
  %4193 = vmatmul.bf16.gmra.mxu0 %v3952
  %v4194 = vpop.f32.mrf.mxu0
  %v4195 = vadd.f32 %v4136, %v4194
  %v4196 = vpop.f32.mrf.mxu0
  %v4197 = vadd.f32 %v4138, %v4196
  %4198 = vmatmul.bf16.gmra.mxu0 %v3960
  %v4199 = vpop.f32.mrf.mxu0
  %v4200 = vadd.f32 %v4141, %v4199
  %v4201 = vpop.f32.mrf.mxu0
  %v4202 = vadd.f32 %v4143, %v4201
  %4203 = vmatmul.bf16.gmra.mxu0 %v3968
  %v4204 = vpop.f32.mrf.mxu0
  %v4205 = vadd.f32 %v4146, %v4204
  %v4206 = vpop.f32.mrf.mxu0
  %v4207 = vadd.f32 %v4148, %v4206
  %4208 = vmatmul.bf16.gmra.mxu0 %v3976
  %v4209 = vpop.f32.mrf.mxu0
  %v4210 = vadd.f32 %v4151, %v4209
  %v4211 = vpop.f32.mrf.mxu0
  %v4212 = vadd.f32 %v4153, %v4211
  %4213 = vmatmul.bf16.gmra.mxu0 %v3984
  %v4214 = vpop.f32.mrf.mxu0
  %v4215 = vadd.f32 %v4156, %v4214
  %v4216 = vpop.f32.mrf.mxu0
  %v4217 = vadd.f32 %v4158, %v4216
  %4218 = vmatmul.bf16.gmra.mxu0 %v3992
  %v4219 = vpop.f32.mrf.mxu0
  %v4220 = vadd.f32 %v4161, %v4219
  %v4221 = vpop.f32.mrf.mxu0
  %v4222 = vadd.f32 %v4163, %v4221
  %4223 = vmatmul.bf16.gmra.mxu0 %v4000
  %v4224 = vpop.f32.mrf.mxu0
  %v4225 = vadd.f32 %v4166, %v4224
  %v4226 = vpop.f32.mrf.mxu0
  %v4227 = vadd.f32 %v4168, %v4226
  %4228 = vmatmul.bf16.gmra.mxu0 %v4008
  %v4229 = vpop.f32.mrf.mxu0
  %v4230 = vadd.f32 %v4171, %v4229
  %v4231 = vpop.f32.mrf.mxu0
  %v4232 = vadd.f32 %v4173, %v4231
  %4233 = vdwg.mxu0
  %4234 = vmatpush.bf16.msra.mxu0 %v3541
  %4235 = vmatpush.bf16.msra.mxu0 %v3539
  %4236 = vmatpush.bf16.msra.mxu0 %v3537
  %4237 = vmatpush.bf16.msra.mxu0 %v3535
  %4238 = vmatpush.bf16.msra.mxu0 %v3533
  %4239 = vmatpush.bf16.msra.mxu0 %v3531
  %4240 = vmatpush.bf16.msra.mxu0 %v3529
  %4241 = vmatpush.bf16.msra.mxu0 %v3527
  %4242 = vmatmul.bf16.gmra.mxu0 %v3937
  %v4243 = vpop.f32.mrf.mxu0
  %v4244 = vadd.f32 %v4185, %v4243
  %v4245 = vpop.f32.mrf.mxu0
  %v4246 = vadd.f32 %v4187, %v4245
  %4247 = vmatmul.bf16.gmra.mxu0 %v3945
  %v4248 = vpop.f32.mrf.mxu0
  %v4249 = vadd.f32 %v4190, %v4248
  %v4250 = vpop.f32.mrf.mxu0
  %v4251 = vadd.f32 %v4192, %v4250
  %4252 = vmatmul.bf16.gmra.mxu0 %v3953
  %v4253 = vpop.f32.mrf.mxu0
  %v4254 = vadd.f32 %v4195, %v4253
  %v4255 = vpop.f32.mrf.mxu0
  %v4256 = vadd.f32 %v4197, %v4255
  %4257 = vmatmul.bf16.gmra.mxu0 %v3961
  %v4258 = vpop.f32.mrf.mxu0
  %v4259 = vadd.f32 %v4200, %v4258
  %v4260 = vpop.f32.mrf.mxu0
  %v4261 = vadd.f32 %v4202, %v4260
  %4262 = vmatmul.bf16.gmra.mxu0 %v3969
  %v4263 = vpop.f32.mrf.mxu0
  %v4264 = vadd.f32 %v4205, %v4263
  %v4265 = vpop.f32.mrf.mxu0
  %v4266 = vadd.f32 %v4207, %v4265
  %4267 = vmatmul.bf16.gmra.mxu0 %v3977
  %v4268 = vpop.f32.mrf.mxu0
  %v4269 = vadd.f32 %v4210, %v4268
  %v4270 = vpop.f32.mrf.mxu0
  %v4271 = vadd.f32 %v4212, %v4270
  %4272 = vmatmul.bf16.gmra.mxu0 %v3985
  %v4273 = vpop.f32.mrf.mxu0
  %v4274 = vadd.f32 %v4215, %v4273
  %v4275 = vpop.f32.mrf.mxu0
  %v4276 = vadd.f32 %v4217, %v4275
  %4277 = vmatmul.bf16.gmra.mxu0 %v3993
  %v4278 = vpop.f32.mrf.mxu0
  %v4279 = vadd.f32 %v4220, %v4278
  %v4280 = vpop.f32.mrf.mxu0
  %v4281 = vadd.f32 %v4222, %v4280
  %4282 = vmatmul.bf16.gmra.mxu0 %v4001
  %v4283 = vpop.f32.mrf.mxu0
  %v4284 = vadd.f32 %v4225, %v4283
  %v4285 = vpop.f32.mrf.mxu0
  %v4286 = vadd.f32 %v4227, %v4285
  %4287 = vmatmul.bf16.gmra.mxu0 %v4009
  %v4288 = vpop.f32.mrf.mxu0
  %v4289 = vadd.f32 %v4230, %v4288
  %v4290 = vpop.f32.mrf.mxu0
  %v4291 = vadd.f32 %v4232, %v4290
  %4292 = vdwg.mxu0
  %4293 = vmatpush.bf16.msra.mxu0 %v3557
  %4294 = vmatpush.bf16.msra.mxu0 %v3555
  %4295 = vmatpush.bf16.msra.mxu0 %v3553
  %4296 = vmatpush.bf16.msra.mxu0 %v3551
  %4297 = vmatpush.bf16.msra.mxu0 %v3549
  %4298 = vmatpush.bf16.msra.mxu0 %v3547
  %4299 = vmatpush.bf16.msra.mxu0 %v3545
  %4300 = vmatpush.bf16.msra.mxu0 %v3543
  %4301 = vmatmul.bf16.gmra.mxu0 %v3938
  %v4302 = vpop.f32.mrf.mxu0
  %v4303 = vadd.f32 %v4244, %v4302
  %v4304 = vpop.f32.mrf.mxu0
  %v4305 = vadd.f32 %v4246, %v4304
  %4306 = vmatmul.bf16.gmra.mxu0 %v3946
  %v4307 = vpop.f32.mrf.mxu0
  %v4308 = vadd.f32 %v4249, %v4307
  %v4309 = vpop.f32.mrf.mxu0
  %v4310 = vadd.f32 %v4251, %v4309
  %4311 = vmatmul.bf16.gmra.mxu0 %v3954
  %v4312 = vpop.f32.mrf.mxu0
  %v4313 = vadd.f32 %v4254, %v4312
  %v4314 = vpop.f32.mrf.mxu0
  %v4315 = vadd.f32 %v4256, %v4314
  %4316 = vmatmul.bf16.gmra.mxu0 %v3962
  %v4317 = vpop.f32.mrf.mxu0
  %v4318 = vadd.f32 %v4259, %v4317
  %v4319 = vpop.f32.mrf.mxu0
  %v4320 = vadd.f32 %v4261, %v4319
  %4321 = vmatmul.bf16.gmra.mxu0 %v3970
  %v4322 = vpop.f32.mrf.mxu0
  %v4323 = vadd.f32 %v4264, %v4322
  %v4324 = vpop.f32.mrf.mxu0
  %v4325 = vadd.f32 %v4266, %v4324
  %4326 = vmatmul.bf16.gmra.mxu0 %v3978
  %v4327 = vpop.f32.mrf.mxu0
  %v4328 = vadd.f32 %v4269, %v4327
  %v4329 = vpop.f32.mrf.mxu0
  %v4330 = vadd.f32 %v4271, %v4329
  %4331 = vmatmul.bf16.gmra.mxu0 %v3986
  %v4332 = vpop.f32.mrf.mxu0
  %v4333 = vadd.f32 %v4274, %v4332
  %v4334 = vpop.f32.mrf.mxu0
  %v4335 = vadd.f32 %v4276, %v4334
  %4336 = vmatmul.bf16.gmra.mxu0 %v3994
  %v4337 = vpop.f32.mrf.mxu0
  %v4338 = vadd.f32 %v4279, %v4337
  %v4339 = vpop.f32.mrf.mxu0
  %v4340 = vadd.f32 %v4281, %v4339
  %4341 = vmatmul.bf16.gmra.mxu0 %v4002
  %v4342 = vpop.f32.mrf.mxu0
  %v4343 = vadd.f32 %v4284, %v4342
  %v4344 = vpop.f32.mrf.mxu0
  %v4345 = vadd.f32 %v4286, %v4344
  %4346 = vmatmul.bf16.gmra.mxu0 %v4010
  %v4347 = vpop.f32.mrf.mxu0
  %v4348 = vadd.f32 %v4289, %v4347
  %v4349 = vpop.f32.mrf.mxu0
  %v4350 = vadd.f32 %v4291, %v4349
  %4351 = vdwg.mxu0
  %4352 = vmatpush.bf16.msra.mxu0 %v3573
  %4353 = vmatpush.bf16.msra.mxu0 %v3571
  %4354 = vmatpush.bf16.msra.mxu0 %v3569
  %4355 = vmatpush.bf16.msra.mxu0 %v3567
  %4356 = vmatpush.bf16.msra.mxu0 %v3565
  %4357 = vmatpush.bf16.msra.mxu0 %v3563
  %4358 = vmatpush.bf16.msra.mxu0 %v3561
  %4359 = vmatpush.bf16.msra.mxu0 %v3559
  %4360 = vmatmul.bf16.gmra.mxu0 %v3939
  %v4361 = vpop.f32.mrf.mxu0
  %v4362 = vadd.f32 %v4303, %v4361
  %v4363 = vpop.f32.mrf.mxu0
  %v4364 = vadd.f32 %v4305, %v4363
  %4365 = vmatmul.bf16.gmra.mxu0 %v3947
  %v4366 = vpop.f32.mrf.mxu0
  %v4367 = vadd.f32 %v4308, %v4366
  %v4368 = vpop.f32.mrf.mxu0
  %v4369 = vadd.f32 %v4310, %v4368
  %4370 = vmatmul.bf16.gmra.mxu0 %v3955
  %v4371 = vpop.f32.mrf.mxu0
  %v4372 = vadd.f32 %v4313, %v4371
  %v4373 = vpop.f32.mrf.mxu0
  %v4374 = vadd.f32 %v4315, %v4373
  %4375 = vmatmul.bf16.gmra.mxu0 %v3963
  %v4376 = vpop.f32.mrf.mxu0
  %v4377 = vadd.f32 %v4318, %v4376
  %v4378 = vpop.f32.mrf.mxu0
  %v4379 = vadd.f32 %v4320, %v4378
  %4380 = vmatmul.bf16.gmra.mxu0 %v3971
  %v4381 = vpop.f32.mrf.mxu0
  %v4382 = vadd.f32 %v4323, %v4381
  %v4383 = vpop.f32.mrf.mxu0
  %v4384 = vadd.f32 %v4325, %v4383
  %4385 = vmatmul.bf16.gmra.mxu0 %v3979
  %v4386 = vpop.f32.mrf.mxu0
  %v4387 = vadd.f32 %v4328, %v4386
  %v4388 = vpop.f32.mrf.mxu0
  %v4389 = vadd.f32 %v4330, %v4388
  %4390 = vmatmul.bf16.gmra.mxu0 %v3987
  %v4391 = vpop.f32.mrf.mxu0
  %v4392 = vadd.f32 %v4333, %v4391
  %v4393 = vpop.f32.mrf.mxu0
  %v4394 = vadd.f32 %v4335, %v4393
  %4395 = vmatmul.bf16.gmra.mxu0 %v3995
  %v4396 = vpop.f32.mrf.mxu0
  %v4397 = vadd.f32 %v4338, %v4396
  %v4398 = vpop.f32.mrf.mxu0
  %v4399 = vadd.f32 %v4340, %v4398
  %4400 = vmatmul.bf16.gmra.mxu0 %v4003
  %v4401 = vpop.f32.mrf.mxu0
  %v4402 = vadd.f32 %v4343, %v4401
  %v4403 = vpop.f32.mrf.mxu0
  %v4404 = vadd.f32 %v4345, %v4403
  %4405 = vmatmul.bf16.gmra.mxu0 %v4011
  %v4406 = vpop.f32.mrf.mxu0
  %v4407 = vadd.f32 %v4348, %v4406
  %v4408 = vpop.f32.mrf.mxu0
  %v4409 = vadd.f32 %v4350, %v4408
  %4410 = vdwg.mxu0
  %4411 = vmatpush.bf16.msra.mxu0 %v3589
  %4412 = vmatpush.bf16.msra.mxu0 %v3587
  %4413 = vmatpush.bf16.msra.mxu0 %v3585
  %4414 = vmatpush.bf16.msra.mxu0 %v3583
  %4415 = vmatpush.bf16.msra.mxu0 %v3581
  %4416 = vmatpush.bf16.msra.mxu0 %v3579
  %4417 = vmatpush.bf16.msra.mxu0 %v3577
  %4418 = vmatpush.bf16.msra.mxu0 %v3575
  %4419 = vmatmul.bf16.gmra.mxu0 %v3940
  %v4420 = vpop.f32.mrf.mxu0
  %v4421 = vadd.f32 %v4362, %v4420
  %v4422 = vpop.f32.mrf.mxu0
  %v4423 = vadd.f32 %v4364, %v4422
  %4424 = vmatmul.bf16.gmra.mxu0 %v3948
  %v4425 = vpop.f32.mrf.mxu0
  %v4426 = vadd.f32 %v4367, %v4425
  %v4427 = vpop.f32.mrf.mxu0
  %v4428 = vadd.f32 %v4369, %v4427
  %4429 = vmatmul.bf16.gmra.mxu0 %v3956
  %v4430 = vpop.f32.mrf.mxu0
  %v4431 = vadd.f32 %v4372, %v4430
  %v4432 = vpop.f32.mrf.mxu0
  %v4433 = vadd.f32 %v4374, %v4432
  %4434 = vmatmul.bf16.gmra.mxu0 %v3964
  %v4435 = vpop.f32.mrf.mxu0
  %v4436 = vadd.f32 %v4377, %v4435
  %v4437 = vpop.f32.mrf.mxu0
  %v4438 = vadd.f32 %v4379, %v4437
  %4439 = vmatmul.bf16.gmra.mxu0 %v3972
  %v4440 = vpop.f32.mrf.mxu0
  %v4441 = vadd.f32 %v4382, %v4440
  %v4442 = vpop.f32.mrf.mxu0
  %v4443 = vadd.f32 %v4384, %v4442
  %4444 = vmatmul.bf16.gmra.mxu0 %v3980
  %v4445 = vpop.f32.mrf.mxu0
  %v4446 = vadd.f32 %v4387, %v4445
  %v4447 = vpop.f32.mrf.mxu0
  %v4448 = vadd.f32 %v4389, %v4447
  %4449 = vmatmul.bf16.gmra.mxu0 %v3988
  %v4450 = vpop.f32.mrf.mxu0
  %v4451 = vadd.f32 %v4392, %v4450
  %v4452 = vpop.f32.mrf.mxu0
  %v4453 = vadd.f32 %v4394, %v4452
  %4454 = vmatmul.bf16.gmra.mxu0 %v3996
  %v4455 = vpop.f32.mrf.mxu0
  %v4456 = vadd.f32 %v4397, %v4455
  %v4457 = vpop.f32.mrf.mxu0
  %v4458 = vadd.f32 %v4399, %v4457
  %4459 = vmatmul.bf16.gmra.mxu0 %v4004
  %v4460 = vpop.f32.mrf.mxu0
  %v4461 = vadd.f32 %v4402, %v4460
  %v4462 = vpop.f32.mrf.mxu0
  %v4463 = vadd.f32 %v4404, %v4462
  %4464 = vmatmul.bf16.gmra.mxu0 %v4012
  %v4465 = vpop.f32.mrf.mxu0
  %v4466 = vadd.f32 %v4407, %v4465
  %v4467 = vpop.f32.mrf.mxu0
  %v4468 = vadd.f32 %v4409, %v4467
  %4469 = vdwg.mxu0
  %4470 = vmatpush.bf16.msra.mxu0 %v3605
  %4471 = vmatpush.bf16.msra.mxu0 %v3603
  %4472 = vmatpush.bf16.msra.mxu0 %v3601
  %4473 = vmatpush.bf16.msra.mxu0 %v3599
  %4474 = vmatpush.bf16.msra.mxu0 %v3597
  %4475 = vmatpush.bf16.msra.mxu0 %v3595
  %4476 = vmatpush.bf16.msra.mxu0 %v3593
  %4477 = vmatpush.bf16.msra.mxu0 %v3591
  %4478 = vmatmul.bf16.gmra.mxu0 %v3941
  %v4479 = vpop.f32.mrf.mxu0
  %v4480 = vadd.f32 %v4421, %v4479
  %v4481 = vpop.f32.mrf.mxu0
  %v4482 = vadd.f32 %v4423, %v4481
  %4483 = vmatmul.bf16.gmra.mxu0 %v3949
  %v4484 = vpop.f32.mrf.mxu0
  %v4485 = vadd.f32 %v4426, %v4484
  %v4486 = vpop.f32.mrf.mxu0
  %v4487 = vadd.f32 %v4428, %v4486
  %4488 = vmatmul.bf16.gmra.mxu0 %v3957
  %v4489 = vpop.f32.mrf.mxu0
  %v4490 = vadd.f32 %v4431, %v4489
  %v4491 = vpop.f32.mrf.mxu0
  %v4492 = vadd.f32 %v4433, %v4491
  %4493 = vmatmul.bf16.gmra.mxu0 %v3965
  %v4494 = vpop.f32.mrf.mxu0
  %v4495 = vadd.f32 %v4436, %v4494
  %v4496 = vpop.f32.mrf.mxu0
  %v4497 = vadd.f32 %v4438, %v4496
  %4498 = vmatmul.bf16.gmra.mxu0 %v3973
  %v4499 = vpop.f32.mrf.mxu0
  %v4500 = vadd.f32 %v4441, %v4499
  %v4501 = vpop.f32.mrf.mxu0
  %v4502 = vadd.f32 %v4443, %v4501
  %4503 = vmatmul.bf16.gmra.mxu0 %v3981
  %v4504 = vpop.f32.mrf.mxu0
  %v4505 = vadd.f32 %v4446, %v4504
  %v4506 = vpop.f32.mrf.mxu0
  %v4507 = vadd.f32 %v4448, %v4506
  %4508 = vmatmul.bf16.gmra.mxu0 %v3989
  %v4509 = vpop.f32.mrf.mxu0
  %v4510 = vadd.f32 %v4451, %v4509
  %v4511 = vpop.f32.mrf.mxu0
  %v4512 = vadd.f32 %v4453, %v4511
  %4513 = vmatmul.bf16.gmra.mxu0 %v3997
  %v4514 = vpop.f32.mrf.mxu0
  %v4515 = vadd.f32 %v4456, %v4514
  %v4516 = vpop.f32.mrf.mxu0
  %v4517 = vadd.f32 %v4458, %v4516
  %4518 = vmatmul.bf16.gmra.mxu0 %v4005
  %v4519 = vpop.f32.mrf.mxu0
  %v4520 = vadd.f32 %v4461, %v4519
  %v4521 = vpop.f32.mrf.mxu0
  %v4522 = vadd.f32 %v4463, %v4521
  %4523 = vmatmul.bf16.gmra.mxu0 %v4013
  %v4524 = vpop.f32.mrf.mxu0
  %v4525 = vadd.f32 %v4466, %v4524
  %v4526 = vpop.f32.mrf.mxu0
  %v4527 = vadd.f32 %v4468, %v4526
  %4528 = vdwg.mxu0
  %4529 = vmatpush.bf16.msra.mxu0 0
  %4530 = vmatpush.bf16.msra.mxu0 0
  %4531 = vmatpush.bf16.msra.mxu0 0
  %4532 = vmatpush.bf16.msra.mxu0 0
  %4533 = vmatpush.bf16.msra.mxu0 %v3613
  %4534 = vmatpush.bf16.msra.mxu0 %v3611
  %4535 = vmatpush.bf16.msra.mxu0 %v3609
  %4536 = vmatpush.bf16.msra.mxu0 %v3607
  %4537 = vmatmul.bf16.gmra.mxu0 %v4087
  %v4538 = vpop.f32.mrf.mxu0
  %v4539 = vadd.f32 %v4480, %v4538
  %v4540 = vpop.f32.mrf.mxu0
  %v4541 = vadd.f32 %v4482, %v4540
  %4542 = vmatmul.bf16.gmra.mxu0 %v4090
  %v4543 = vpop.f32.mrf.mxu0
  %v4544 = vadd.f32 %v4485, %v4543
  %v4545 = vpop.f32.mrf.mxu0
  %v4546 = vadd.f32 %v4487, %v4545
  %4547 = vmatmul.bf16.gmra.mxu0 %v4093
  %v4548 = vpop.f32.mrf.mxu0
  %v4549 = vadd.f32 %v4490, %v4548
  %v4550 = vpop.f32.mrf.mxu0
  %v4551 = vadd.f32 %v4492, %v4550
  %4552 = vmatmul.bf16.gmra.mxu0 %v4096
  %v4553 = vpop.f32.mrf.mxu0
  %v4554 = vadd.f32 %v4495, %v4553
  %v4555 = vpop.f32.mrf.mxu0
  %v4556 = vadd.f32 %v4497, %v4555
  %4557 = vmatmul.bf16.gmra.mxu0 %v4099
  %v4558 = vpop.f32.mrf.mxu0
  %v4559 = vadd.f32 %v4500, %v4558
  %v4560 = vpop.f32.mrf.mxu0
  %v4561 = vadd.f32 %v4502, %v4560
  %4562 = vmatmul.bf16.gmra.mxu0 %v4102
  %v4563 = vpop.f32.mrf.mxu0
  %v4564 = vadd.f32 %v4505, %v4563
  %v4565 = vpop.f32.mrf.mxu0
  %v4566 = vadd.f32 %v4507, %v4565
  %4567 = vmatmul.bf16.gmra.mxu0 %v4105
  %v4568 = vpop.f32.mrf.mxu0
  %v4569 = vadd.f32 %v4510, %v4568
  %v4570 = vpop.f32.mrf.mxu0
  %v4571 = vadd.f32 %v4512, %v4570
  %4572 = vmatmul.bf16.gmra.mxu0 %v4108
  %v4573 = vpop.f32.mrf.mxu0
  %v4574 = vadd.f32 %v4515, %v4573
  %v4575 = vpop.f32.mrf.mxu0
  %v4576 = vadd.f32 %v4517, %v4575
  %4577 = vmatmul.bf16.gmra.mxu0 %v4111
  %v4578 = vpop.f32.mrf.mxu0
  %v4579 = vadd.f32 %v4520, %v4578
  %v4580 = vpop.f32.mrf.mxu0
  %v4581 = vadd.f32 %v4522, %v4580
  %4582 = vmatmul.bf16.gmra.mxu0 %v4114
  %v4583 = vpop.f32.mrf.mxu0
  %v4584 = vadd.f32 %v4525, %v4583
  %v4585 = vpop.f32.mrf.mxu0
  %v4586 = vadd.f32 %v4527, %v4585
  %4587 = vdwg.mxu0
  %4588 = vmatpush.bf16.msra.mxu0 %v3510
  %4589 = vmatpush.bf16.msra.mxu0 %v3508
  %4590 = vmatpush.bf16.msra.mxu0 %v3506
  %4591 = vmatpush.bf16.msra.mxu0 %v3504
  %4592 = vmatpush.bf16.msra.mxu0 %v3502
  %4593 = vmatpush.bf16.msra.mxu0 %v3500
  %4594 = vmatpush.bf16.msra.mxu0 %v3498
  %4595 = vmatpush.bf16.msra.mxu0 %v3496
  %4596 = vmatmul.bf16.gmra.mxu0 %v3935
  %v4597 = vpop.f32.mrf.mxu0
  %v4598 = vadd.f32 0.0, %v4597
  %v4599 = vpop.f32.mrf.mxu0
  %v4600 = vadd.f32 0.0, %v4599
  %4601 = vmatmul.bf16.gmra.mxu0 %v3943
  %v4602 = vpop.f32.mrf.mxu0
  %v4603 = vadd.f32 0.0, %v4602
  %v4604 = vpop.f32.mrf.mxu0
  %v4605 = vadd.f32 0.0, %v4604
  %4606 = vmatmul.bf16.gmra.mxu0 %v3951
  %v4607 = vpop.f32.mrf.mxu0
  %v4608 = vadd.f32 0.0, %v4607
  %v4609 = vpop.f32.mrf.mxu0
  %v4610 = vadd.f32 0.0, %v4609
  %4611 = vmatmul.bf16.gmra.mxu0 %v3959
  %v4612 = vpop.f32.mrf.mxu0
  %v4613 = vadd.f32 0.0, %v4612
  %v4614 = vpop.f32.mrf.mxu0
  %v4615 = vadd.f32 0.0, %v4614
  %4616 = vmatmul.bf16.gmra.mxu0 %v3967
  %v4617 = vpop.f32.mrf.mxu0
  %v4618 = vadd.f32 0.0, %v4617
  %v4619 = vpop.f32.mrf.mxu0
  %v4620 = vadd.f32 0.0, %v4619
  %4621 = vmatmul.bf16.gmra.mxu0 %v3975
  %v4622 = vpop.f32.mrf.mxu0
  %v4623 = vadd.f32 0.0, %v4622
  %v4624 = vpop.f32.mrf.mxu0
  %v4625 = vadd.f32 0.0, %v4624
  %4626 = vmatmul.bf16.gmra.mxu0 %v3983
  %v4627 = vpop.f32.mrf.mxu0
  %v4628 = vadd.f32 0.0, %v4627
  %v4629 = vpop.f32.mrf.mxu0
  %v4630 = vadd.f32 0.0, %v4629
  %4631 = vmatmul.bf16.gmra.mxu0 %v3991
  %v4632 = vpop.f32.mrf.mxu0
  %v4633 = vadd.f32 0.0, %v4632
  %v4634 = vpop.f32.mrf.mxu0
  %v4635 = vadd.f32 0.0, %v4634
  %4636 = vmatmul.bf16.gmra.mxu0 %v3999
  %v4637 = vpop.f32.mrf.mxu0
  %v4638 = vadd.f32 0.0, %v4637
  %v4639 = vpop.f32.mrf.mxu0
  %v4640 = vadd.f32 0.0, %v4639
  %4641 = vmatmul.bf16.gmra.mxu0 %v4007
  %v4642 = vpop.f32.mrf.mxu0
  %v4643 = vadd.f32 0.0, %v4642
  %v4644 = vpop.f32.mrf.mxu0
  %v4645 = vadd.f32 0.0, %v4644
  %4646 = vdwg.mxu0
  %4647 = vmatpush.bf16.msra.mxu0 %v3526
  %4648 = vmatpush.bf16.msra.mxu0 %v3524
  %4649 = vmatpush.bf16.msra.mxu0 %v3522
  %4650 = vmatpush.bf16.msra.mxu0 %v3520
  %4651 = vmatpush.bf16.msra.mxu0 %v3518
  %4652 = vmatpush.bf16.msra.mxu0 %v3516
  %4653 = vmatpush.bf16.msra.mxu0 %v3514
  %4654 = vmatpush.bf16.msra.mxu0 %v3512
  %4655 = vmatmul.bf16.gmra.mxu0 %v3936
  %v4656 = vpop.f32.mrf.mxu0
  %v4657 = vadd.f32 %v4598, %v4656
  %v4658 = vpop.f32.mrf.mxu0
  %v4659 = vadd.f32 %v4600, %v4658
  %4660 = vmatmul.bf16.gmra.mxu0 %v3944
  %v4661 = vpop.f32.mrf.mxu0
  %v4662 = vadd.f32 %v4603, %v4661
  %v4663 = vpop.f32.mrf.mxu0
  %v4664 = vadd.f32 %v4605, %v4663
  %4665 = vmatmul.bf16.gmra.mxu0 %v3952
  %v4666 = vpop.f32.mrf.mxu0
  %v4667 = vadd.f32 %v4608, %v4666
  %v4668 = vpop.f32.mrf.mxu0
  %v4669 = vadd.f32 %v4610, %v4668
  %4670 = vmatmul.bf16.gmra.mxu0 %v3960
  %v4671 = vpop.f32.mrf.mxu0
  %v4672 = vadd.f32 %v4613, %v4671
  %v4673 = vpop.f32.mrf.mxu0
  %v4674 = vadd.f32 %v4615, %v4673
  %4675 = vmatmul.bf16.gmra.mxu0 %v3968
  %v4676 = vpop.f32.mrf.mxu0
  %v4677 = vadd.f32 %v4618, %v4676
  %v4678 = vpop.f32.mrf.mxu0
  %v4679 = vadd.f32 %v4620, %v4678
  %4680 = vmatmul.bf16.gmra.mxu0 %v3976
  %v4681 = vpop.f32.mrf.mxu0
  %v4682 = vadd.f32 %v4623, %v4681
  %v4683 = vpop.f32.mrf.mxu0
  %v4684 = vadd.f32 %v4625, %v4683
  %4685 = vmatmul.bf16.gmra.mxu0 %v3984
  %v4686 = vpop.f32.mrf.mxu0
  %v4687 = vadd.f32 %v4628, %v4686
  %v4688 = vpop.f32.mrf.mxu0
  %v4689 = vadd.f32 %v4630, %v4688
  %4690 = vmatmul.bf16.gmra.mxu0 %v3992
  %v4691 = vpop.f32.mrf.mxu0
  %v4692 = vadd.f32 %v4633, %v4691
  %v4693 = vpop.f32.mrf.mxu0
  %v4694 = vadd.f32 %v4635, %v4693
  %4695 = vmatmul.bf16.gmra.mxu0 %v4000
  %v4696 = vpop.f32.mrf.mxu0
  %v4697 = vadd.f32 %v4638, %v4696
  %v4698 = vpop.f32.mrf.mxu0
  %v4699 = vadd.f32 %v4640, %v4698
  %4700 = vmatmul.bf16.gmra.mxu0 %v4008
  %v4701 = vpop.f32.mrf.mxu0
  %v4702 = vadd.f32 %v4643, %v4701
  %v4703 = vpop.f32.mrf.mxu0
  %v4704 = vadd.f32 %v4645, %v4703
  %4705 = vdwg.mxu0
  %4706 = vmatpush.bf16.msra.mxu0 %v3542
  %4707 = vmatpush.bf16.msra.mxu0 %v3540
  %4708 = vmatpush.bf16.msra.mxu0 %v3538
  %4709 = vmatpush.bf16.msra.mxu0 %v3536
  %4710 = vmatpush.bf16.msra.mxu0 %v3534
  %4711 = vmatpush.bf16.msra.mxu0 %v3532
  %4712 = vmatpush.bf16.msra.mxu0 %v3530
  %4713 = vmatpush.bf16.msra.mxu0 %v3528
  %4714 = vmatmul.bf16.gmra.mxu0 %v3937
  %v4715 = vpop.f32.mrf.mxu0
  %v4716 = vadd.f32 %v4657, %v4715
  %v4717 = vpop.f32.mrf.mxu0
  %v4718 = vadd.f32 %v4659, %v4717
  %4719 = vmatmul.bf16.gmra.mxu0 %v3945
  %v4720 = vpop.f32.mrf.mxu0
  %v4721 = vadd.f32 %v4662, %v4720
  %v4722 = vpop.f32.mrf.mxu0
  %v4723 = vadd.f32 %v4664, %v4722
  %4724 = vmatmul.bf16.gmra.mxu0 %v3953
  %v4725 = vpop.f32.mrf.mxu0
  %v4726 = vadd.f32 %v4667, %v4725
  %v4727 = vpop.f32.mrf.mxu0
  %v4728 = vadd.f32 %v4669, %v4727
  %4729 = vmatmul.bf16.gmra.mxu0 %v3961
  %v4730 = vpop.f32.mrf.mxu0
  %v4731 = vadd.f32 %v4672, %v4730
  %v4732 = vpop.f32.mrf.mxu0
  %v4733 = vadd.f32 %v4674, %v4732
  %4734 = vmatmul.bf16.gmra.mxu0 %v3969
  %v4735 = vpop.f32.mrf.mxu0
  %v4736 = vadd.f32 %v4677, %v4735
  %v4737 = vpop.f32.mrf.mxu0
  %v4738 = vadd.f32 %v4679, %v4737
  %4739 = vmatmul.bf16.gmra.mxu0 %v3977
  %v4740 = vpop.f32.mrf.mxu0
  %v4741 = vadd.f32 %v4682, %v4740
  %v4742 = vpop.f32.mrf.mxu0
  %v4743 = vadd.f32 %v4684, %v4742
  %4744 = vmatmul.bf16.gmra.mxu0 %v3985
  %v4745 = vpop.f32.mrf.mxu0
  %v4746 = vadd.f32 %v4687, %v4745
  %v4747 = vpop.f32.mrf.mxu0
  %v4748 = vadd.f32 %v4689, %v4747
  %4749 = vmatmul.bf16.gmra.mxu0 %v3993
  %v4750 = vpop.f32.mrf.mxu0
  %v4751 = vadd.f32 %v4692, %v4750
  %v4752 = vpop.f32.mrf.mxu0
  %v4753 = vadd.f32 %v4694, %v4752
  %4754 = vmatmul.bf16.gmra.mxu0 %v4001
  %v4755 = vpop.f32.mrf.mxu0
  %v4756 = vadd.f32 %v4697, %v4755
  %v4757 = vpop.f32.mrf.mxu0
  %v4758 = vadd.f32 %v4699, %v4757
  %4759 = vmatmul.bf16.gmra.mxu0 %v4009
  %v4760 = vpop.f32.mrf.mxu0
  %v4761 = vadd.f32 %v4702, %v4760
  %v4762 = vpop.f32.mrf.mxu0
  %v4763 = vadd.f32 %v4704, %v4762
  %4764 = vdwg.mxu0
  %4765 = vmatpush.bf16.msra.mxu0 %v3558
  %4766 = vmatpush.bf16.msra.mxu0 %v3556
  %4767 = vmatpush.bf16.msra.mxu0 %v3554
  %4768 = vmatpush.bf16.msra.mxu0 %v3552
  %4769 = vmatpush.bf16.msra.mxu0 %v3550
  %4770 = vmatpush.bf16.msra.mxu0 %v3548
  %4771 = vmatpush.bf16.msra.mxu0 %v3546
  %4772 = vmatpush.bf16.msra.mxu0 %v3544
  %4773 = vmatmul.bf16.gmra.mxu0 %v3938
  %v4774 = vpop.f32.mrf.mxu0
  %v4775 = vadd.f32 %v4716, %v4774
  %v4776 = vpop.f32.mrf.mxu0
  %v4777 = vadd.f32 %v4718, %v4776
  %4778 = vmatmul.bf16.gmra.mxu0 %v3946
  %v4779 = vpop.f32.mrf.mxu0
  %v4780 = vadd.f32 %v4721, %v4779
  %v4781 = vpop.f32.mrf.mxu0
  %v4782 = vadd.f32 %v4723, %v4781
  %4783 = vmatmul.bf16.gmra.mxu0 %v3954
  %v4784 = vpop.f32.mrf.mxu0
  %v4785 = vadd.f32 %v4726, %v4784
  %v4786 = vpop.f32.mrf.mxu0
  %v4787 = vadd.f32 %v4728, %v4786
  %4788 = vmatmul.bf16.gmra.mxu0 %v3962
  %v4789 = vpop.f32.mrf.mxu0
  %v4790 = vadd.f32 %v4731, %v4789
  %v4791 = vpop.f32.mrf.mxu0
  %v4792 = vadd.f32 %v4733, %v4791
  %4793 = vmatmul.bf16.gmra.mxu0 %v3970
  %v4794 = vpop.f32.mrf.mxu0
  %v4795 = vadd.f32 %v4736, %v4794
  %v4796 = vpop.f32.mrf.mxu0
  %v4797 = vadd.f32 %v4738, %v4796
  %4798 = vmatmul.bf16.gmra.mxu0 %v3978
  %v4799 = vpop.f32.mrf.mxu0
  %v4800 = vadd.f32 %v4741, %v4799
  %v4801 = vpop.f32.mrf.mxu0
  %v4802 = vadd.f32 %v4743, %v4801
  %4803 = vmatmul.bf16.gmra.mxu0 %v3986
  %v4804 = vpop.f32.mrf.mxu0
  %v4805 = vadd.f32 %v4746, %v4804
  %v4806 = vpop.f32.mrf.mxu0
  %v4807 = vadd.f32 %v4748, %v4806
  %4808 = vmatmul.bf16.gmra.mxu0 %v3994
  %v4809 = vpop.f32.mrf.mxu0
  %v4810 = vadd.f32 %v4751, %v4809
  %v4811 = vpop.f32.mrf.mxu0
  %v4812 = vadd.f32 %v4753, %v4811
  %4813 = vmatmul.bf16.gmra.mxu0 %v4002
  %v4814 = vpop.f32.mrf.mxu0
  %v4815 = vadd.f32 %v4756, %v4814
  %v4816 = vpop.f32.mrf.mxu0
  %v4817 = vadd.f32 %v4758, %v4816
  %4818 = vmatmul.bf16.gmra.mxu0 %v4010
  %v4819 = vpop.f32.mrf.mxu0
  %v4820 = vadd.f32 %v4761, %v4819
  %v4821 = vpop.f32.mrf.mxu0
  %v4822 = vadd.f32 %v4763, %v4821
  %4823 = vdwg.mxu0
  %4824 = vmatpush.bf16.msra.mxu0 %v3574
  %4825 = vmatpush.bf16.msra.mxu0 %v3572
  %4826 = vmatpush.bf16.msra.mxu0 %v3570
  %4827 = vmatpush.bf16.msra.mxu0 %v3568
  %4828 = vmatpush.bf16.msra.mxu0 %v3566
  %4829 = vmatpush.bf16.msra.mxu0 %v3564
  %4830 = vmatpush.bf16.msra.mxu0 %v3562
  %4831 = vmatpush.bf16.msra.mxu0 %v3560
  %4832 = vmatmul.bf16.gmra.mxu0 %v3939
  %v4833 = vpop.f32.mrf.mxu0
  %v4834 = vadd.f32 %v4775, %v4833
  %v4835 = vpop.f32.mrf.mxu0
  %v4836 = vadd.f32 %v4777, %v4835
  %4837 = vmatmul.bf16.gmra.mxu0 %v3947
  %v4838 = vpop.f32.mrf.mxu0
  %v4839 = vadd.f32 %v4780, %v4838
  %v4840 = vpop.f32.mrf.mxu0
  %v4841 = vadd.f32 %v4782, %v4840
  %4842 = vmatmul.bf16.gmra.mxu0 %v3955
  %v4843 = vpop.f32.mrf.mxu0
  %v4844 = vadd.f32 %v4785, %v4843
  %v4845 = vpop.f32.mrf.mxu0
  %v4846 = vadd.f32 %v4787, %v4845
  %4847 = vmatmul.bf16.gmra.mxu0 %v3963
  %v4848 = vpop.f32.mrf.mxu0
  %v4849 = vadd.f32 %v4790, %v4848
  %v4850 = vpop.f32.mrf.mxu0
  %v4851 = vadd.f32 %v4792, %v4850
  %4852 = vmatmul.bf16.gmra.mxu0 %v3971
  %v4853 = vpop.f32.mrf.mxu0
  %v4854 = vadd.f32 %v4795, %v4853
  %v4855 = vpop.f32.mrf.mxu0
  %v4856 = vadd.f32 %v4797, %v4855
  %4857 = vmatmul.bf16.gmra.mxu0 %v3979
  %v4858 = vpop.f32.mrf.mxu0
  %v4859 = vadd.f32 %v4800, %v4858
  %v4860 = vpop.f32.mrf.mxu0
  %v4861 = vadd.f32 %v4802, %v4860
  %4862 = vmatmul.bf16.gmra.mxu0 %v3987
  %v4863 = vpop.f32.mrf.mxu0
  %v4864 = vadd.f32 %v4805, %v4863
  %v4865 = vpop.f32.mrf.mxu0
  %v4866 = vadd.f32 %v4807, %v4865
  %4867 = vmatmul.bf16.gmra.mxu0 %v3995
  %v4868 = vpop.f32.mrf.mxu0
  %v4869 = vadd.f32 %v4810, %v4868
  %v4870 = vpop.f32.mrf.mxu0
  %v4871 = vadd.f32 %v4812, %v4870
  %4872 = vmatmul.bf16.gmra.mxu0 %v4003
  %v4873 = vpop.f32.mrf.mxu0
  %v4874 = vadd.f32 %v4815, %v4873
  %v4875 = vpop.f32.mrf.mxu0
  %v4876 = vadd.f32 %v4817, %v4875
  %4877 = vmatmul.bf16.gmra.mxu0 %v4011
  %v4878 = vpop.f32.mrf.mxu0
  %v4879 = vadd.f32 %v4820, %v4878
  %v4880 = vpop.f32.mrf.mxu0
  %v4881 = vadd.f32 %v4822, %v4880
  %4882 = vdwg.mxu0
  %4883 = vmatpush.bf16.msra.mxu0 %v3590
  %4884 = vmatpush.bf16.msra.mxu0 %v3588
  %4885 = vmatpush.bf16.msra.mxu0 %v3586
  %4886 = vmatpush.bf16.msra.mxu0 %v3584
  %4887 = vmatpush.bf16.msra.mxu0 %v3582
  %4888 = vmatpush.bf16.msra.mxu0 %v3580
  %4889 = vmatpush.bf16.msra.mxu0 %v3578
  %4890 = vmatpush.bf16.msra.mxu0 %v3576
  %4891 = vmatmul.bf16.gmra.mxu0 %v3940
  %v4892 = vpop.f32.mrf.mxu0
  %v4893 = vadd.f32 %v4834, %v4892
  %v4894 = vpop.f32.mrf.mxu0
  %v4895 = vadd.f32 %v4836, %v4894
  %4896 = vmatmul.bf16.gmra.mxu0 %v3948
  %v4897 = vpop.f32.mrf.mxu0
  %v4898 = vadd.f32 %v4839, %v4897
  %v4899 = vpop.f32.mrf.mxu0
  %v4900 = vadd.f32 %v4841, %v4899
  %4901 = vmatmul.bf16.gmra.mxu0 %v3956
  %v4902 = vpop.f32.mrf.mxu0
  %v4903 = vadd.f32 %v4844, %v4902
  %v4904 = vpop.f32.mrf.mxu0
  %v4905 = vadd.f32 %v4846, %v4904
  %4906 = vmatmul.bf16.gmra.mxu0 %v3964
  %v4907 = vpop.f32.mrf.mxu0
  %v4908 = vadd.f32 %v4849, %v4907
  %v4909 = vpop.f32.mrf.mxu0
  %v4910 = vadd.f32 %v4851, %v4909
  %4911 = vmatmul.bf16.gmra.mxu0 %v3972
  %v4912 = vpop.f32.mrf.mxu0
  %v4913 = vadd.f32 %v4854, %v4912
  %v4914 = vpop.f32.mrf.mxu0
  %v4915 = vadd.f32 %v4856, %v4914
  %4916 = vmatmul.bf16.gmra.mxu0 %v3980
  %v4917 = vpop.f32.mrf.mxu0
  %v4918 = vadd.f32 %v4859, %v4917
  %v4919 = vpop.f32.mrf.mxu0
  %v4920 = vadd.f32 %v4861, %v4919
  %4921 = vmatmul.bf16.gmra.mxu0 %v3988
  %v4922 = vpop.f32.mrf.mxu0
  %v4923 = vadd.f32 %v4864, %v4922
  %v4924 = vpop.f32.mrf.mxu0
  %v4925 = vadd.f32 %v4866, %v4924
  %4926 = vmatmul.bf16.gmra.mxu0 %v3996
  %v4927 = vpop.f32.mrf.mxu0
  %v4928 = vadd.f32 %v4869, %v4927
  %v4929 = vpop.f32.mrf.mxu0
  %v4930 = vadd.f32 %v4871, %v4929
  %4931 = vmatmul.bf16.gmra.mxu0 %v4004
  %v4932 = vpop.f32.mrf.mxu0
  %v4933 = vadd.f32 %v4874, %v4932
  %v4934 = vpop.f32.mrf.mxu0
  %v4935 = vadd.f32 %v4876, %v4934
  %4936 = vmatmul.bf16.gmra.mxu0 %v4012
  %v4937 = vpop.f32.mrf.mxu0
  %v4938 = vadd.f32 %v4879, %v4937
  %v4939 = vpop.f32.mrf.mxu0
  %v4940 = vadd.f32 %v4881, %v4939
  %4941 = vdwg.mxu0
  %4942 = vmatpush.bf16.msra.mxu0 %v3606
  %4943 = vmatpush.bf16.msra.mxu0 %v3604
  %4944 = vmatpush.bf16.msra.mxu0 %v3602
  %4945 = vmatpush.bf16.msra.mxu0 %v3600
  %4946 = vmatpush.bf16.msra.mxu0 %v3598
  %4947 = vmatpush.bf16.msra.mxu0 %v3596
  %4948 = vmatpush.bf16.msra.mxu0 %v3594
  %4949 = vmatpush.bf16.msra.mxu0 %v3592
  %4950 = vmatmul.bf16.gmra.mxu0 %v3941
  %v4951 = vpop.f32.mrf.mxu0
  %v4952 = vadd.f32 %v4893, %v4951
  %v4953 = vpop.f32.mrf.mxu0
  %v4954 = vadd.f32 %v4895, %v4953
  %4955 = vmatmul.bf16.gmra.mxu0 %v3949
  %v4956 = vpop.f32.mrf.mxu0
  %v4957 = vadd.f32 %v4898, %v4956
  %v4958 = vpop.f32.mrf.mxu0
  %v4959 = vadd.f32 %v4900, %v4958
  %4960 = vmatmul.bf16.gmra.mxu0 %v3957
  %v4961 = vpop.f32.mrf.mxu0
  %v4962 = vadd.f32 %v4903, %v4961
  %v4963 = vpop.f32.mrf.mxu0
  %v4964 = vadd.f32 %v4905, %v4963
  %4965 = vmatmul.bf16.gmra.mxu0 %v3965
  %v4966 = vpop.f32.mrf.mxu0
  %v4967 = vadd.f32 %v4908, %v4966
  %v4968 = vpop.f32.mrf.mxu0
  %v4969 = vadd.f32 %v4910, %v4968
  %4970 = vmatmul.bf16.gmra.mxu0 %v3973
  %v4971 = vpop.f32.mrf.mxu0
  %v4972 = vadd.f32 %v4913, %v4971
  %v4973 = vpop.f32.mrf.mxu0
  %v4974 = vadd.f32 %v4915, %v4973
  %4975 = vmatmul.bf16.gmra.mxu0 %v3981
  %v4976 = vpop.f32.mrf.mxu0
  %v4977 = vadd.f32 %v4918, %v4976
  %v4978 = vpop.f32.mrf.mxu0
  %v4979 = vadd.f32 %v4920, %v4978
  %4980 = vmatmul.bf16.gmra.mxu0 %v3989
  %v4981 = vpop.f32.mrf.mxu0
  %v4982 = vadd.f32 %v4923, %v4981
  %v4983 = vpop.f32.mrf.mxu0
  %v4984 = vadd.f32 %v4925, %v4983
  %4985 = vmatmul.bf16.gmra.mxu0 %v3997
  %v4986 = vpop.f32.mrf.mxu0
  %v4987 = vadd.f32 %v4928, %v4986
  %v4988 = vpop.f32.mrf.mxu0
  %v4989 = vadd.f32 %v4930, %v4988
  %4990 = vmatmul.bf16.gmra.mxu0 %v4005
  %v4991 = vpop.f32.mrf.mxu0
  %v4992 = vadd.f32 %v4933, %v4991
  %v4993 = vpop.f32.mrf.mxu0
  %v4994 = vadd.f32 %v4935, %v4993
  %4995 = vmatmul.bf16.gmra.mxu0 %v4013
  %v4996 = vpop.f32.mrf.mxu0
  %v4997 = vadd.f32 %v4938, %v4996
  %v4998 = vpop.f32.mrf.mxu0
  %v4999 = vadd.f32 %v4940, %v4998
  %5000 = vdwg.mxu0
  %5001 = vmatpush.bf16.msra.mxu0 0
  %5002 = vmatpush.bf16.msra.mxu0 0
  %5003 = vmatpush.bf16.msra.mxu0 0
  %5004 = vmatpush.bf16.msra.mxu0 0
  %5005 = vmatpush.bf16.msra.mxu0 %v3614
  %5006 = vmatpush.bf16.msra.mxu0 %v3612
  %5007 = vmatpush.bf16.msra.mxu0 %v3610
  %5008 = vmatpush.bf16.msra.mxu0 %v3608
  %5009 = vmatmul.bf16.gmra.mxu0 %v4087
  %v5010 = vpop.f32.mrf.mxu0
  %v5011 = vadd.f32 %v4952, %v5010
  %v5012 = vpop.f32.mrf.mxu0
  %v5013 = vadd.f32 %v4954, %v5012
  %5014 = vmatmul.bf16.gmra.mxu0 %v4090
  %v5015 = vpop.f32.mrf.mxu0
  %v5016 = vadd.f32 %v4957, %v5015
  %v5017 = vpop.f32.mrf.mxu0
  %v5018 = vadd.f32 %v4959, %v5017
  %5019 = vmatmul.bf16.gmra.mxu0 %v4093
  %v5020 = vpop.f32.mrf.mxu0
  %v5021 = vadd.f32 %v4962, %v5020
  %v5022 = vpop.f32.mrf.mxu0
  %v5023 = vadd.f32 %v4964, %v5022
  %5024 = vmatmul.bf16.gmra.mxu0 %v4096
  %v5025 = vpop.f32.mrf.mxu0
  %v5026 = vadd.f32 %v4967, %v5025
  %v5027 = vpop.f32.mrf.mxu0
  %v5028 = vadd.f32 %v4969, %v5027
  %5029 = vmatmul.bf16.gmra.mxu0 %v4099
  %v5030 = vpop.f32.mrf.mxu0
  %v5031 = vadd.f32 %v4972, %v5030
  %v5032 = vpop.f32.mrf.mxu0
  %v5033 = vadd.f32 %v4974, %v5032
  %5034 = vmatmul.bf16.gmra.mxu0 %v4102
  %v5035 = vpop.f32.mrf.mxu0
  %v5036 = vadd.f32 %v4977, %v5035
  %v5037 = vpop.f32.mrf.mxu0
  %v5038 = vadd.f32 %v4979, %v5037
  %5039 = vmatmul.bf16.gmra.mxu0 %v4105
  %v5040 = vpop.f32.mrf.mxu0
  %v5041 = vadd.f32 %v4982, %v5040
  %v5042 = vpop.f32.mrf.mxu0
  %v5043 = vadd.f32 %v4984, %v5042
  %5044 = vmatmul.bf16.gmra.mxu0 %v4108
  %v5045 = vpop.f32.mrf.mxu0
  %v5046 = vadd.f32 %v4987, %v5045
  %v5047 = vpop.f32.mrf.mxu0
  %v5048 = vadd.f32 %v4989, %v5047
  %5049 = vmatmul.bf16.gmra.mxu0 %v4111
  %v5050 = vpop.f32.mrf.mxu0
  %v5051 = vadd.f32 %v4992, %v5050
  %v5052 = vpop.f32.mrf.mxu0
  %v5053 = vadd.f32 %v4994, %v5052
  %5054 = vmatmul.bf16.gmra.mxu0 %v4114
  %v5055 = vpop.f32.mrf.mxu0
  %v5056 = vadd.f32 %v4997, %v5055
  %v5057 = vpop.f32.mrf.mxu0
  %v5058 = vadd.f32 %v4999, %v5057
  %5059 = vdwg.mxu0
  %5060 = vst [vmem:[%s3] sm:$0xff] %v4539
  %vm5061 = vcmask 556032
  %5062 = vst.msk [vmem:[%s3 + $0x8] sm:$0xff] %vm5061, %v5011
  %5063 = vst [vmem:[%s3 + $0x10] sm:$0xff] %v4541
  %5064 = vst.msk [vmem:[%s3 + $0x18] sm:$0xff] %vm5061, %v5013
  %5065 = vst [vmem:[%s3 + $0x20] sm:$0xff] %v4544
  %5066 = vst.msk [vmem:[%s3 + $0x28] sm:$0xff] %vm5061, %v5016
  %5067 = vst [vmem:[%s3 + $0x30] sm:$0xff] %v4546
  %5068 = vst.msk [vmem:[%s3 + $0x38] sm:$0xff] %vm5061, %v5018
  %5069 = vst [vmem:[%s3 + $0x40] sm:$0xff] %v4549
  %5070 = vst.msk [vmem:[%s3 + $0x48] sm:$0xff] %vm5061, %v5021
  %5071 = vst [vmem:[%s3 + $0x50] sm:$0xff] %v4551
  %5072 = vst.msk [vmem:[%s3 + $0x58] sm:$0xff] %vm5061, %v5023
  %5073 = vst [vmem:[%s3 + $0x60] sm:$0xff] %v4554
  %5074 = vst.msk [vmem:[%s3 + $0x68] sm:$0xff] %vm5061, %v5026
  %5075 = vst [vmem:[%s3 + $0x70] sm:$0xff] %v4556
  %5076 = vst.msk [vmem:[%s3 + $0x78] sm:$0xff] %vm5061, %v5028
  %5077 = vst [vmem:[%s3 + $0x80] sm:$0xff] %v4559
  %5078 = vst.msk [vmem:[%s3 + $0x88] sm:$0xff] %vm5061, %v5031
  %5079 = vst [vmem:[%s3 + $0x90] sm:$0xff] %v4561
  %5080 = vst.msk [vmem:[%s3 + $0x98] sm:$0xff] %vm5061, %v5033
  %5081 = vst [vmem:[%s3 + $0xa0] sm:$0xff] %v4564
  %5082 = vst.msk [vmem:[%s3 + $0xa8] sm:$0xff] %vm5061, %v5036
  %5083 = vst [vmem:[%s3 + $0xb0] sm:$0xff] %v4566
  %5084 = vst.msk [vmem:[%s3 + $0xb8] sm:$0xff] %vm5061, %v5038
  %5085 = vst [vmem:[%s3 + $0xc0] sm:$0xff] %v4569
  %5086 = vst.msk [vmem:[%s3 + $0xc8] sm:$0xff] %vm5061, %v5041
  %5087 = vst [vmem:[%s3 + $0xd0] sm:$0xff] %v4571
  %5088 = vst.msk [vmem:[%s3 + $0xd8] sm:$0xff] %vm5061, %v5043
  %5089 = vst [vmem:[%s3 + $0xe0] sm:$0xff] %v4574
  %5090 = vst.msk [vmem:[%s3 + $0xe8] sm:$0xff] %vm5061, %v5046
  %5091 = vst [vmem:[%s3 + $0xf0] sm:$0xff] %v4576
  %5092 = vst.msk [vmem:[%s3 + $0xf8] sm:$0xff] %vm5061, %v5048
  %5093 = vst [vmem:[%s3 + $0x100] sm:$0xff] %v4579
  %5094 = vst.msk [vmem:[%s3 + $0x108] sm:$0xff] %vm5061, %v5051
  %5095 = vst [vmem:[%s3 + $0x110] sm:$0xff] %v4581
  %5096 = vst.msk [vmem:[%s3 + $0x118] sm:$0xff] %vm5061, %v5053
  %5097 = vst [vmem:[%s3 + $0x120] sm:$0xff] %v4584
  %5098 = vst.msk [vmem:[%s3 + $0x128] sm:$0xff] %vm5061, %v5056
  %5099 = vst [vmem:[%s3 + $0x130] sm:$0xff] %v4586
  %5100 = vst.msk [vmem:[%s3 + $0x138] sm:$0xff] %vm5061, %v5058
  // Predicated region
  $region14: #{se_gate_1x1conv.1} parent=0 // pred_check
    _
  $region15: #{se_gate_1x1conv.1} parent=0 // pred_check_branch
    %5102 = sbr.rel (0) target = $region17
  $region16: #{se_gate_1x1conv.1} parent=0 // pred_region
    _
  $region17: #{se_gate_1x1conv.1} parent=0 // pred_fallthru
    _
  // Predicated region
  $region18: #{se_gate_1x1conv.1} parent=0 // pred_check
    _
  $region19: #{se_gate_1x1conv.1} parent=0 // pred_check_branch
    %5104 = sbr.rel (0) target = $region21
  $region20: #{se_gate_1x1conv.1} parent=0 // pred_region
    _
  $region21: #{se_gate_1x1conv.1} parent=0 // pred_fallthru
    _

</llo_original>
